<compile_context>
chip_gen: v7x
topology: tpu7x:2x2x1
jax: 0.10.0
libtpu: 0.0.40
codegen_flags: <defaults>
</compile_context>

<pallas_src>
import functools

import jax
import jax.numpy as jnp
from jax import lax
from jax.experimental import pallas as pl
from jax.experimental.pallas import tpu as pltpu

KMAX = 9           # largest pyramid kernel (PyConv4: 3,5,7,9)
PAD = KMAX // 2    # global halo = 4
KY_CHUNKS = 3      # grid axis 1: ky rows of the 9x9 window per step (divides 9)


def _pyconv4_kernel(H, W, Cin, kpc, n_chunks, WP, PW, LX,
                    x_ref, w_ref, o_ref, xpad_ref, patch_ref, acc_ref):
    """One grid step = one batch element x one ky-chunk (kpc ky rows).

    x_ref     : (1, Cin, H*W)        NCHW-flat input (no wrapper pad/transpose)
    w_ref     : (1, planes, kpc*KMAX*Cin)  merged dense weight chunk
    o_ref     : (1, planes, H*W)     NCHW-flat output
    xpad_ref  : (n_chunks, Cin, LX)  zero-padded flat image + pre-shifted copies
    patch_ref : (kpc*KMAX*Cin, PW)   transposed im2col block (lane-dense stores)
    acc_ref   : (planes, PW) f32     cross-chunk accumulator
    """
    t = pl.program_id(1)

    # ---- once per batch element: build padded flat image + shifted copies ----
    @pl.when(t == 0)
    def _():
        # Zero everything (pad lanes must be 0); interior is overwritten below.
        xpad_ref[...] = jnp.zeros(xpad_ref.shape, xpad_ref.dtype)
        # Copy 0: padded image in (Cin, Hp*WP) flat lane-major layout.
        for y in range(H):
            dst = (y + PAD) * WP + PAD
            xpad_ref[0, :, dst:dst + W] = x_ref[0, :, y * W:(y + 1) * W]
        # Copies c>0: same image pre-shifted by c*kpc*WP lanes so the per-tap
        # slice offset inside a chunk is a small STATIC immediate (no dynamic
        # lane indexing in the hot loop); the chunk id only picks the copy.
        for c in range(1, n_chunks):
            s = c * kpc * WP
            xpad_ref[c, :, 0:LX - s] = xpad_ref[0, :, s:LX]
        acc_ref[...] = jnp.zeros(acc_ref.shape, acc_ref.dtype)

    # ---- this chunk's transposed im2col: (kpc*KMAX*Cin, PW) ------------------
    img = xpad_ref[t]                       # (Cin, LX); dynamic major index only
    for j in range(kpc):                    # ky within chunk (global ky = t*kpc+j)
        for kx in range(KMAX):
            off = j * WP + kx               # static lane offset (< 128)
            r0 = (j * KMAX + kx) * Cin      # static, 8-aligned sublane offset
            patch_ref[r0:r0 + Cin, :] = img[:, off:off + PW].astype(patch_ref.dtype)

    # ---- one MXU matmul per chunk, f32 accumulation --------------------------
    partial = jnp.dot(w_ref[0], patch_ref[...],
                      preferred_element_type=jnp.float32)        # (planes, PW)

    @pl.when(t < n_chunks - 1)
    def _():
        acc_ref[...] += partial

    @pl.when(t == n_chunks - 1)
    def _():
        res = (acc_ref[...] + partial).astype(o_ref.dtype)       # (planes, PW)
        # Compact the WP-strided pixel columns into the dense NCHW-flat output
        # (planes, H*W); the wrapper reshape to (N, planes, H, W) is free.
        for y in range(H):
            o_ref[0, :, y * W:(y + 1) * W] = res[:, y * WP:y * WP + W]


def pack_pyconv4_weights(weights, pyconv_kernels, pyconv_groups, inplans,
                         ky_chunks=KY_CHUNKS, dtype=jnp.float32):
    """Merge the branch weights (torch layout (Cout_b, Cin/G, K, K)) into one
    dense (ky_chunks, planes, (KMAX//ky_chunks)*KMAX*Cin) matrix whose column
    order matches the kernel's shared 9x9 im2col: col = (j*KMAX + kx)*Cin + c.
    One-time host-side packing (module init); use dtype=bfloat16 on v6e/v7x
    for a bf16 MXU feed with f32 accumulation."""
    Cin = inplans
    assert KMAX % ky_chunks == 0
    kpc = KMAX // ky_chunks
    blocks = []
    for w, K, G in zip(weights, pyconv_kernels, pyconv_groups):
        w = jnp.asarray(w)
        Cout_b, Cin_g, _, _ = w.shape
        assert K % 2 == 1 and K <= KMAX and Cin_g * G == Cin
        Cout_g = Cout_b // G
        # Grouped -> dense block-diagonal over input channels (exact: zeros).
        dense = jnp.zeros((Cout_b, Cin, K, K), w.dtype)
        for g in range(G):
            dense = dense.at[g * Cout_g:(g + 1) * Cout_g,
                             g * Cin_g:(g + 1) * Cin_g].set(
                w[g * Cout_g:(g + 1) * Cout_g])
        dense = dense.transpose(0, 2, 3, 1)                  # (Cout_b, K, K, Cin)
        # Center the KxK taps inside the shared 9x9 window (same halo of 4).
        d = (KMAX - K) // 2
        full = jnp.zeros((Cout_b, KMAX, KMAX, Cin), w.dtype)
        full = full.at[:, d:d + K, d:d + K, :].set(dense)
        blocks.append(full)
    wm = jnp.concatenate(blocks, axis=0)                     # (planes, ky, kx, c)
    planes = wm.shape[0]
    wm = wm.transpose(1, 0, 2, 3)                            # (ky, o, kx, c)
    wm = wm.reshape(ky_chunks, kpc, planes, KMAX, Cin)       # (t, j, o, kx, c)
    wm = wm.transpose(0, 2, 1, 3, 4)                         # (t, o, j, kx, c)
    return wm.reshape(ky_chunks, planes, kpc * KMAX * Cin).astype(dtype)


def pyconv4_apply(x_nchw, w_packed):
    """x_nchw: (N, Cin, H, W), w_packed from pack_pyconv4_weights ->
    (N, planes, H, W)."""
    N, Cin, H, W = x_nchw.shape
    n_chunks, planes, cols = w_packed.shape
    kpc = KMAX // n_chunks
    assert n_chunks * kpc == KMAX
    assert cols == kpc * KMAX * Cin, (cols, kpc, KMAX, Cin)

    WP = W + 2 * PAD                                   # padded row stride (24)
    PW = -(-((H - 1) * WP + W) // 128) * 128           # matmul pixel width (384)
    LX = -(-max((H + 2 * PAD) * WP,
                (kpc - 1) * WP + (KMAX - 1) + PW) // 128) * 128  # flat buf (640)

    x_flat = x_nchw.reshape(N, Cin, H * W)             # free metadata reshape

    kernel = functools.partial(_pyconv4_kernel, H, W, Cin, kpc, n_chunks,
                               WP, PW, LX)

    out_flat = pl.pallas_call(
        kernel,
        out_shape=jax.ShapeDtypeStruct((N, planes, H * W), x_nchw.dtype),
        grid_spec=pltpu.PrefetchScalarGridSpec(
            num_scalar_prefetch=0,
            grid=(N, n_chunks),
            in_specs=[
                pl.BlockSpec((1, Cin, H * W), lambda n, t: (n, 0, 0)),
                pl.BlockSpec((1, planes, cols), lambda n, t: (t, 0, 0)),
            ],
            out_specs=pl.BlockSpec((1, planes, H * W), lambda n, t: (n, 0, 0)),
            scratch_shapes=[
                pltpu.VMEM((n_chunks, Cin, LX), x_nchw.dtype),   # padded image
                pltpu.VMEM((cols, PW), w_packed.dtype),          # im2col chunk
                pltpu.VMEM((planes, PW), jnp.float32),           # accumulator
            ],
        ),
        compiler_params=pltpu.CompilerParams(
            dimension_semantics=("parallel", "arbitrary")),
    )(x_flat, w_packed)

    # (N, planes, H*W) is already NCHW-flat; splitting the last dim is free.
    return out_flat.reshape(N, planes, H, W)


def pyconv4(x_nchw, weights, pyconv_kernels, pyconv_groups):
    """Convenience wrapper matching the PyTorch module's forward()."""
    w_packed = pack_pyconv4_weights(weights, pyconv_kernels, pyconv_groups,
                                    x_nchw.shape[1])
    return pyconv4_apply(x_nchw, w_packed)


def _reference(x_nchw, weights, pyconv_kernels, pyconv_groups):
    """Pure-JAX/XLA reference identical to the PyTorch module semantics."""
    outs = []
    for w, K, G in zip(weights, pyconv_kernels, pyconv_groups):
        pad = K // 2
        y = lax.conv_general_dilated(
            x_nchw, w,
            window_strides=(1, 1),
            padding=((pad, pad), (pad, pad)),
            dimension_numbers=("NCHW", "OIHW", "NCHW"),
            feature_group_count=G)
        outs.append(y)
    return jnp.concatenate(outs, axis=1)


if __name__ == "__main__":
    # Module config: inplans=16, planes=64 (each branch outputs planes//4 = 16).
    inplans, planes = 16, 64
    pyconv_kernels = (3, 5, 7, 9)
    pyconv_groups = (1, 4, 8, 16)
    N, H, W = 2, 16, 16

    key = jax.random.PRNGKey(0)
    kx_, *kws = jax.random.split(key, 1 + len(pyconv_kernels))
    x = jax.random.normal(kx_, (N, inplans, H, W), dtype=jnp.float32)

    # Deterministic weights in torch Conv2d layout (Cout, Cin/G, K, K).
    weights = []
    for kw, K, G in zip(kws, pyconv_kernels, pyconv_groups):
        cout = planes // 4
        cin_g = inplans // G
        fan_in = cin_g * K * K
        w = jax.random.normal(kw, (cout, cin_g, K, K), dtype=jnp.float32)
        weights.append(w * (1.0 / jnp.sqrt(fan_in)))

    # One-time weight packing (would live in module init in a real deployment).
    w_packed = jax.block_until_ready(
        pack_pyconv4_weights(weights, pyconv_kernels, pyconv_groups, inplans))

    fwd = jax.jit(pyconv4_apply)
    out = jax.block_until_ready(fwd(x, w_packed))

    ref = _reference(x, weights, pyconv_kernels, pyconv_groups)
    assert out.shape == (N, planes, H, W), out.shape
    # f32 MXU feeds; tolerance only covers accumulation-order differences.
    err = float(jnp.max(jnp.abs(out - ref)))
    assert err < 1e-3, err

    print("KERNEL_OK")
</pallas_src>

<mosaic_0001>
module attributes {stable_mosaic.version = 11 : i64} {
  func.func @_pyconv4_kernel(%arg0: i32, %arg1: i32, %arg2: memref<1x16x256xf32, #tpu.memory_space<vmem>>, %arg3: memref<1x64x432xf32, #tpu.memory_space<vmem>>, %arg4: memref<1x64x256xf32, #tpu.memory_space<vmem>>, %arg5: memref<3x16x640xf32, #tpu.memory_space<vmem>>, %arg6: memref<432x384xf32, #tpu.memory_space<vmem>>, %arg7: memref<64x384xf32, #tpu.memory_space<vmem>>) attributes {dimension_semantics = [#tpu.dimension_semantics<parallel>, #tpu.dimension_semantics<arbitrary>], iteration_bounds = array<i64: 2, 3>, scalar_prefetch = 0 : i64, scratch_operands = 3 : i64, tpu.core_type = #tpu.core_type<tc>, window_params = [{transform_indices = @transform_0, window_bounds = array<i64: 1, 16, 256>}, {transform_indices = @transform_1, window_bounds = array<i64: 1, 64, 432>}, {transform_indices = @transform_2, window_bounds = array<i64: 1, 64, 256>}]} {
    %c0_i32 = arith.constant 0 : i32
    %0 = arith.cmpi eq, %arg1, %c0_i32 : i32
    %1 = arith.extui %0 : i1 to i32
    %c0_i32_0 = arith.constant 0 : i32
    %2 = arith.cmpi ne, %1, %c0_i32_0 : i32
    scf.if %2 {
      %cst_38 = arith.constant 0.000000e+00 : f32
      %70 = vector.broadcast %cst_38 : f32 to vector<3x16x640xf32>
      %c0_39 = arith.constant 0 : index
      %c0_40 = arith.constant 0 : index
      %c0_41 = arith.constant 0 : index
      %71 = vector.load %arg5[%c0_39, %c0_40, %c0_41] : memref<3x16x640xf32, #tpu.memory_space<vmem>>, vector<3x16x640xf32>
      tpu.vector_store %arg5[%c0_39, %c0_40, %c0_41], %70 {strides = array<i32>} : memref<3x16x640xf32, #tpu.memory_space<vmem>>, vector<3x16x640xf32>,
      %c0_42 = arith.constant 0 : index
      %c0_43 = arith.constant 0 : index
      %c0_44 = arith.constant 0 : index
      %72 = vector.load %arg2[%c0_42, %c0_43, %c0_44] : memref<1x16x256xf32, #tpu.memory_space<vmem>>, vector<1x16x16xf32>
      %73 = vector.shape_cast %72 : vector<1x16x16xf32> to vector<16x16xf32>
      %c0_45 = arith.constant 0 : index
      %c0_46 = arith.constant 0 : index
      %c100 = arith.constant 100 : index
      %74 = vector.load %arg5[%c0_45, %c0_46, %c100] : memref<3x16x640xf32, #tpu.memory_space<vmem>>, vector<1x16x16xf32>
      %75 = vector.shape_cast %74 : vector<1x16x16xf32> to vector<16x16xf32>
      %76 = vector.shape_cast %73 : vector<16x16xf32> to vector<1x16x16xf32>
      tpu.vector_store %arg5[%c0_45, %c0_46, %c100], %76 {strides = array<i32>} : memref<3x16x640xf32, #tpu.memory_space<vmem>>, vector<1x16x16xf32>,
      %c0_47 = arith.constant 0 : index
      %c0_48 = arith.constant 0 : index
      %c16_49 = arith.constant 16 : index
      %77 = vector.load %arg2[%c0_47, %c0_48, %c16_49] : memref<1x16x256xf32, #tpu.memory_space<vmem>>, vector<1x16x16xf32>
      %78 = vector.shape_cast %77 : vector<1x16x16xf32> to vector<16x16xf32>
      %c0_50 = arith.constant 0 : index
      %c0_51 = arith.constant 0 : index
      %c124 = arith.constant 124 : index
      %79 = vector.load %arg5[%c0_50, %c0_51, %c124] : memref<3x16x640xf32, #tpu.memory_space<vmem>>, vector<1x16x16xf32>
      %80 = vector.shape_cast %79 : vector<1x16x16xf32> to vector<16x16xf32>
      %81 = vector.shape_cast %78 : vector<16x16xf32> to vector<1x16x16xf32>
      tpu.vector_store %arg5[%c0_50, %c0_51, %c124], %81 {strides = array<i32>} : memref<3x16x640xf32, #tpu.memory_space<vmem>>, vector<1x16x16xf32>,
      %c0_52 = arith.constant 0 : index
      %c0_53 = arith.constant 0 : index
      %c32_54 = arith.constant 32 : index
      %82 = vector.load %arg2[%c0_52, %c0_53, %c32_54] : memref<1x16x256xf32, #tpu.memory_space<vmem>>, vector<1x16x16xf32>
      %83 = vector.shape_cast %82 : vector<1x16x16xf32> to vector<16x16xf32>
      %c0_55 = arith.constant 0 : index
      %c0_56 = arith.constant 0 : index
      %c148 = arith.constant 148 : index
      %84 = vector.load %arg5[%c0_55, %c0_56, %c148] : memref<3x16x640xf32, #tpu.memory_space<vmem>>, vector<1x16x16xf32>
      %85 = vector.shape_cast %84 : vector<1x16x16xf32> to vector<16x16xf32>
      %86 = vector.shape_cast %83 : vector<16x16xf32> to vector<1x16x16xf32>
      tpu.vector_store %arg5[%c0_55, %c0_56, %c148], %86 {strides = array<i32>} : memref<3x16x640xf32, #tpu.memory_space<vmem>>, vector<1x16x16xf32>,
      %c0_57 = arith.constant 0 : index
      %c0_58 = arith.constant 0 : index
      %c48_59 = arith.constant 48 : index
      %87 = vector.load %arg2[%c0_57, %c0_58, %c48_59] : memref<1x16x256xf32, #tpu.memory_space<vmem>>, vector<1x16x16xf32>
      %88 = vector.shape_cast %87 : vector<1x16x16xf32> to vector<16x16xf32>
      %c0_60 = arith.constant 0 : index
      %c0_61 = arith.constant 0 : index
      %c172 = arith.constant 172 : index
      %89 = vector.load %arg5[%c0_60, %c0_61, %c172] : memref<3x16x640xf32, #tpu.memory_space<vmem>>, vector<1x16x16xf32>
      %90 = vector.shape_cast %89 : vector<1x16x16xf32> to vector<16x16xf32>
      %91 = vector.shape_cast %88 : vector<16x16xf32> to vector<1x16x16xf32>
      tpu.vector_store %arg5[%c0_60, %c0_61, %c172], %91 {strides = array<i32>} : memref<3x16x640xf32, #tpu.memory_space<vmem>>, vector<1x16x16xf32>,
      %c0_62 = arith.constant 0 : index
      %c0_63 = arith.constant 0 : index
      %c64_64 = arith.constant 64 : index
      %92 = vector.load %arg2[%c0_62, %c0_63, %c64_64] : memref<1x16x256xf32, #tpu.memory_space<vmem>>, vector<1x16x16xf32>
      %93 = vector.shape_cast %92 : vector<1x16x16xf32> to vector<16x16xf32>
      %c0_65 = arith.constant 0 : index
      %c0_66 = arith.constant 0 : index
      %c196 = arith.constant 196 : index
      %94 = vector.load %arg5[%c0_65, %c0_66, %c196] : memref<3x16x640xf32, #tpu.memory_space<vmem>>, vector<1x16x16xf32>
      %95 = vector.shape_cast %94 : vector<1x16x16xf32> to vector<16x16xf32>
      %96 = vector.shape_cast %93 : vector<16x16xf32> to vector<1x16x16xf32>
      tpu.vector_store %arg5[%c0_65, %c0_66, %c196], %96 {strides = array<i32>} : memref<3x16x640xf32, #tpu.memory_space<vmem>>, vector<1x16x16xf32>,
      %c0_67 = arith.constant 0 : index
      %c0_68 = arith.constant 0 : index
      %c80_69 = arith.constant 80 : index
      %97 = vector.load %arg2[%c0_67, %c0_68, %c80_69] : memref<1x16x256xf32, #tpu.memory_space<vmem>>, vector<1x16x16xf32>
      %98 = vector.shape_cast %97 : vector<1x16x16xf32> to vector<16x16xf32>
      %c0_70 = arith.constant 0 : index
      %c0_71 = arith.constant 0 : index
      %c220 = arith.constant 220 : index
      %99 = vector.load %arg5[%c0_70, %c0_71, %c220] : memref<3x16x640xf32, #tpu.memory_space<vmem>>, vector<1x16x16xf32>
      %100 = vector.shape_cast %99 : vector<1x16x16xf32> to vector<16x16xf32>
      %101 = vector.shape_cast %98 : vector<16x16xf32> to vector<1x16x16xf32>
      tpu.vector_store %arg5[%c0_70, %c0_71, %c220], %101 {strides = array<i32>} : memref<3x16x640xf32, #tpu.memory_space<vmem>>, vector<1x16x16xf32>,
      %c0_72 = arith.constant 0 : index
      %c0_73 = arith.constant 0 : index
      %c96_74 = arith.constant 96 : index
      %102 = vector.load %arg2[%c0_72, %c0_73, %c96_74] : memref<1x16x256xf32, #tpu.memory_space<vmem>>, vector<1x16x16xf32>
      %103 = vector.shape_cast %102 : vector<1x16x16xf32> to vector<16x16xf32>
      %c0_75 = arith.constant 0 : index
      %c0_76 = arith.constant 0 : index
      %c244 = arith.constant 244 : index
      %104 = vector.load %arg5[%c0_75, %c0_76, %c244] : memref<3x16x640xf32, #tpu.memory_space<vmem>>, vector<1x16x16xf32>
      %105 = vector.shape_cast %104 : vector<1x16x16xf32> to vector<16x16xf32>
      %106 = vector.shape_cast %103 : vector<16x16xf32> to vector<1x16x16xf32>
      tpu.vector_store %arg5[%c0_75, %c0_76, %c244], %106 {strides = array<i32>} : memref<3x16x640xf32, #tpu.memory_space<vmem>>, vector<1x16x16xf32>,
      %c0_77 = arith.constant 0 : index
      %c0_78 = arith.constant 0 : index
      %c112_79 = arith.constant 112 : index
      %107 = vector.load %arg2[%c0_77, %c0_78, %c112_79] : memref<1x16x256xf32, #tpu.memory_space<vmem>>, vector<1x16x16xf32>
      %108 = vector.shape_cast %107 : vector<1x16x16xf32> to vector<16x16xf32>
      %c0_80 = arith.constant 0 : index
      %c0_81 = arith.constant 0 : index
      %c268 = arith.constant 268 : index
      %109 = vector.load %arg5[%c0_80, %c0_81, %c268] : memref<3x16x640xf32, #tpu.memory_space<vmem>>, vector<1x16x16xf32>
      %110 = vector.shape_cast %109 : vector<1x16x16xf32> to vector<16x16xf32>
      %111 = vector.shape_cast %108 : vector<16x16xf32> to vector<1x16x16xf32>
      tpu.vector_store %arg5[%c0_80, %c0_81, %c268], %111 {strides = array<i32>} : memref<3x16x640xf32, #tpu.memory_space<vmem>>, vector<1x16x16xf32>,
      %c0_82 = arith.constant 0 : index
      %c0_83 = arith.constant 0 : index
      %c128_84 = arith.constant 128 : index
      %112 = vector.load %arg2[%c0_82, %c0_83, %c128_84] : memref<1x16x256xf32, #tpu.memory_space<vmem>>, vector<1x16x16xf32>
      %113 = vector.shape_cast %112 : vector<1x16x16xf32> to vector<16x16xf32>
      %c0_85 = arith.constant 0 : index
      %c0_86 = arith.constant 0 : index
      %c292 = arith.constant 292 : index
      %114 = vector.load %arg5[%c0_85, %c0_86, %c292] : memref<3x16x640xf32, #tpu.memory_space<vmem>>, vector<1x16x16xf32>
      %115 = vector.shape_cast %114 : vector<1x16x16xf32> to vector<16x16xf32>
      %116 = vector.shape_cast %113 : vector<16x16xf32> to vector<1x16x16xf32>
      tpu.vector_store %arg5[%c0_85, %c0_86, %c292], %116 {strides = array<i32>} : memref<3x16x640xf32, #tpu.memory_space<vmem>>, vector<1x16x16xf32>,
      %c0_87 = arith.constant 0 : index
      %c0_88 = arith.constant 0 : index
      %c144_89 = arith.constant 144 : index
      %117 = vector.load %arg2[%c0_87, %c0_88, %c144_89] : memref<1x16x256xf32, #tpu.memory_space<vmem>>, vector<1x16x16xf32>
      %118 = vector.shape_cast %117 : vector<1x16x16xf32> to vector<16x16xf32>
      %c0_90 = arith.constant 0 : index
      %c0_91 = arith.constant 0 : index
      %c316 = arith.constant 316 : index
      %119 = vector.load %arg5[%c0_90, %c0_91, %c316] : memref<3x16x640xf32, #tpu.memory_space<vmem>>, vector<1x16x16xf32>
      %120 = vector.shape_cast %119 : vector<1x16x16xf32> to vector<16x16xf32>
      %121 = vector.shape_cast %118 : vector<16x16xf32> to vector<1x16x16xf32>
      tpu.vector_store %arg5[%c0_90, %c0_91, %c316], %121 {strides = array<i32>} : memref<3x16x640xf32, #tpu.memory_space<vmem>>, vector<1x16x16xf32>,
      %c0_92 = arith.constant 0 : index
      %c0_93 = arith.constant 0 : index
      %c160_94 = arith.constant 160 : index
      %122 = vector.load %arg2[%c0_92, %c0_93, %c160_94] : memref<1x16x256xf32, #tpu.memory_space<vmem>>, vector<1x16x16xf32>
      %123 = vector.shape_cast %122 : vector<1x16x16xf32> to vector<16x16xf32>
      %c0_95 = arith.constant 0 : index
      %c0_96 = arith.constant 0 : index
      %c340 = arith.constant 340 : index
      %124 = vector.load %arg5[%c0_95, %c0_96, %c340] : memref<3x16x640xf32, #tpu.memory_space<vmem>>, vector<1x16x16xf32>
      %125 = vector.shape_cast %124 : vector<1x16x16xf32> to vector<16x16xf32>
      %126 = vector.shape_cast %123 : vector<16x16xf32> to vector<1x16x16xf32>
      tpu.vector_store %arg5[%c0_95, %c0_96, %c340], %126 {strides = array<i32>} : memref<3x16x640xf32, #tpu.memory_space<vmem>>, vector<1x16x16xf32>,
      %c0_97 = arith.constant 0 : index
      %c0_98 = arith.constant 0 : index
      %c176_99 = arith.constant 176 : index
      %127 = vector.load %arg2[%c0_97, %c0_98, %c176_99] : memref<1x16x256xf32, #tpu.memory_space<vmem>>, vector<1x16x16xf32>
      %128 = vector.shape_cast %127 : vector<1x16x16xf32> to vector<16x16xf32>
      %c0_100 = arith.constant 0 : index
      %c0_101 = arith.constant 0 : index
      %c364 = arith.constant 364 : index
      %129 = vector.load %arg5[%c0_100, %c0_101, %c364] : memref<3x16x640xf32, #tpu.memory_space<vmem>>, vector<1x16x16xf32>
      %130 = vector.shape_cast %129 : vector<1x16x16xf32> to vector<16x16xf32>
      %131 = vector.shape_cast %128 : vector<16x16xf32> to vector<1x16x16xf32>
      tpu.vector_store %arg5[%c0_100, %c0_101, %c364], %131 {strides = array<i32>} : memref<3x16x640xf32, #tpu.memory_space<vmem>>, vector<1x16x16xf32>,
      %c0_102 = arith.constant 0 : index
      %c0_103 = arith.constant 0 : index
      %c192_104 = arith.constant 192 : index
      %132 = vector.load %arg2[%c0_102, %c0_103, %c192_104] : memref<1x16x256xf32, #tpu.memory_space<vmem>>, vector<1x16x16xf32>
      %133 = vector.shape_cast %132 : vector<1x16x16xf32> to vector<16x16xf32>
      %c0_105 = arith.constant 0 : index
      %c0_106 = arith.constant 0 : index
      %c388 = arith.constant 388 : index
      %134 = vector.load %arg5[%c0_105, %c0_106, %c388] : memref<3x16x640xf32, #tpu.memory_space<vmem>>, vector<1x16x16xf32>
      %135 = vector.shape_cast %134 : vector<1x16x16xf32> to vector<16x16xf32>
      %136 = vector.shape_cast %133 : vector<16x16xf32> to vector<1x16x16xf32>
      tpu.vector_store %arg5[%c0_105, %c0_106, %c388], %136 {strides = array<i32>} : memref<3x16x640xf32, #tpu.memory_space<vmem>>, vector<1x16x16xf32>,
      %c0_107 = arith.constant 0 : index
      %c0_108 = arith.constant 0 : index
      %c208_109 = arith.constant 208 : index
      %137 = vector.load %arg2[%c0_107, %c0_108, %c208_109] : memref<1x16x256xf32, #tpu.memory_space<vmem>>, vector<1x16x16xf32>
      %138 = vector.shape_cast %137 : vector<1x16x16xf32> to vector<16x16xf32>
      %c0_110 = arith.constant 0 : index
      %c0_111 = arith.constant 0 : index
      %c412 = arith.constant 412 : index
      %139 = vector.load %arg5[%c0_110, %c0_111, %c412] : memref<3x16x640xf32, #tpu.memory_space<vmem>>, vector<1x16x16xf32>
      %140 = vector.shape_cast %139 : vector<1x16x16xf32> to vector<16x16xf32>
      %141 = vector.shape_cast %138 : vector<16x16xf32> to vector<1x16x16xf32>
      tpu.vector_store %arg5[%c0_110, %c0_111, %c412], %141 {strides = array<i32>} : memref<3x16x640xf32, #tpu.memory_space<vmem>>, vector<1x16x16xf32>,
      %c0_112 = arith.constant 0 : index
      %c0_113 = arith.constant 0 : index
      %c224_114 = arith.constant 224 : index
      %142 = vector.load %arg2[%c0_112, %c0_113, %c224_114] : memref<1x16x256xf32, #tpu.memory_space<vmem>>, vector<1x16x16xf32>
      %143 = vector.shape_cast %142 : vector<1x16x16xf32> to vector<16x16xf32>
      %c0_115 = arith.constant 0 : index
      %c0_116 = arith.constant 0 : index
      %c436 = arith.constant 436 : index
      %144 = vector.load %arg5[%c0_115, %c0_116, %c436] : memref<3x16x640xf32, #tpu.memory_space<vmem>>, vector<1x16x16xf32>
      %145 = vector.shape_cast %144 : vector<1x16x16xf32> to vector<16x16xf32>
      %146 = vector.shape_cast %143 : vector<16x16xf32> to vector<1x16x16xf32>
      tpu.vector_store %arg5[%c0_115, %c0_116, %c436], %146 {strides = array<i32>} : memref<3x16x640xf32, #tpu.memory_space<vmem>>, vector<1x16x16xf32>,
      %c0_117 = arith.constant 0 : index
      %c0_118 = arith.constant 0 : index
      %c240_119 = arith.constant 240 : index
      %147 = vector.load %arg2[%c0_117, %c0_118, %c240_119] : memref<1x16x256xf32, #tpu.memory_space<vmem>>, vector<1x16x16xf32>
      %148 = vector.shape_cast %147 : vector<1x16x16xf32> to vector<16x16xf32>
      %c0_120 = arith.constant 0 : index
      %c0_121 = arith.constant 0 : index
      %c460 = arith.constant 460 : index
      %149 = vector.load %arg5[%c0_120, %c0_121, %c460] : memref<3x16x640xf32, #tpu.memory_space<vmem>>, vector<1x16x16xf32>
      %150 = vector.shape_cast %149 : vector<1x16x16xf32> to vector<16x16xf32>
      %151 = vector.shape_cast %148 : vector<16x16xf32> to vector<1x16x16xf32>
      tpu.vector_store %arg5[%c0_120, %c0_121, %c460], %151 {strides = array<i32>} : memref<3x16x640xf32, #tpu.memory_space<vmem>>, vector<1x16x16xf32>,
      %c0_122 = arith.constant 0 : index
      %c0_123 = arith.constant 0 : index
      %c72 = arith.constant 72 : index
      %152 = vector.load %arg5[%c0_122, %c0_123, %c72] : memref<3x16x640xf32, #tpu.memory_space<vmem>>, vector<1x16x568xf32>
      %153 = vector.shape_cast %152 : vector<1x16x568xf32> to vector<16x568xf32>
      %c1 = arith.constant 1 : index
      %c0_124 = arith.constant 0 : index
      %c0_125 = arith.constant 0 : index
      %154 = vector.load %arg5[%c1, %c0_124, %c0_125] : memref<3x16x640xf32, #tpu.memory_space<vmem>>, vector<1x16x568xf32>
      %155 = vector.shape_cast %154 : vector<1x16x568xf32> to vector<16x568xf32>
      %156 = vector.shape_cast %153 : vector<16x568xf32> to vector<1x16x568xf32>
      tpu.vector_store %arg5[%c1, %c0_124, %c0_125], %156 {strides = array<i32>} : memref<3x16x640xf32, #tpu.memory_space<vmem>>, vector<1x16x568xf32>,
      %c0_126 = arith.constant 0 : index
      %c0_127 = arith.constant 0 : index
      %c144_128 = arith.constant 144 : index
      %157 = vector.load %arg5[%c0_126, %c0_127, %c144_128] : memref<3x16x640xf32, #tpu.memory_space<vmem>>, vector<1x16x496xf32>
      %158 = vector.shape_cast %157 : vector<1x16x496xf32> to vector<16x496xf32>
      %c2 = arith.constant 2 : index
      %c0_129 = arith.constant 0 : index
      %c0_130 = arith.constant 0 : index
      %159 = vector.load %arg5[%c2, %c0_129, %c0_130] : memref<3x16x640xf32, #tpu.memory_space<vmem>>, vector<1x16x496xf32>
      %160 = vector.shape_cast %159 : vector<1x16x496xf32> to vector<16x496xf32>
      %161 = vector.shape_cast %158 : vector<16x496xf32> to vector<1x16x496xf32>
      tpu.vector_store %arg5[%c2, %c0_129, %c0_130], %161 {strides = array<i32>} : memref<3x16x640xf32, #tpu.memory_space<vmem>>, vector<1x16x496xf32>,
      %cst_131 = arith.constant 0.000000e+00 : f32
      %162 = vector.broadcast %cst_131 : f32 to vector<64x384xf32>
      %c0_132 = arith.constant 0 : index
      %c0_133 = arith.constant 0 : index
      %163 = vector.load %arg7[%c0_132, %c0_133] : memref<64x384xf32, #tpu.memory_space<vmem>>, vector<64x384xf32>
      tpu.vector_store %arg7[%c0_132, %c0_133], %162 {strides = array<i32>} : memref<64x384xf32, #tpu.memory_space<vmem>>, vector<64x384xf32>,
    } else {
    }
    %3 = arith.index_cast %arg1 : i32 to index
    %c0 = arith.constant 0 : index
    %c0_1 = arith.constant 0 : index
    %4 = vector.load %arg5[%3, %c0, %c0_1] : memref<3x16x640xf32, #tpu.memory_space<vmem>>, vector<1x16x640xf32>
    %5 = vector.shape_cast %4 : vector<1x16x640xf32> to vector<16x640xf32>
    %6 = vector.extract_strided_slice %5 {offsets = [0, 0], sizes = [16, 384], strides = [1, 1]} : vector<16x640xf32> to vector<16x384xf32>
    %c0_2 = arith.constant 0 : index
    %c0_3 = arith.constant 0 : index
    %7 = vector.load %arg6[%c0_2, %c0_3] : memref<432x384xf32, #tpu.memory_space<vmem>>, vector<16x384xf32>
    tpu.vector_store %arg6[%c0_2, %c0_3], %6 {strides = array<i32>} : memref<432x384xf32, #tpu.memory_space<vmem>>, vector<16x384xf32>,
    %8 = vector.extract_strided_slice %5 {offsets = [0, 1], sizes = [16, 384], strides = [1, 1]} : vector<16x640xf32> to vector<16x384xf32>
    %c16 = arith.constant 16 : index
    %c0_4 = arith.constant 0 : index
    %9 = vector.load %arg6[%c16, %c0_4] : memref<432x384xf32, #tpu.memory_space<vmem>>, vector<16x384xf32>
    tpu.vector_store %arg6[%c16, %c0_4], %8 {strides = array<i32>} : memref<432x384xf32, #tpu.memory_space<vmem>>, vector<16x384xf32>,
    %10 = vector.extract_strided_slice %5 {offsets = [0, 2], sizes = [16, 384], strides = [1, 1]} : vector<16x640xf32> to vector<16x384xf32>
    %c32 = arith.constant 32 : index
    %c0_5 = arith.constant 0 : index
    %11 = vector.load %arg6[%c32, %c0_5] : memref<432x384xf32, #tpu.memory_space<vmem>>, vector<16x384xf32>
    tpu.vector_store %arg6[%c32, %c0_5], %10 {strides = array<i32>} : memref<432x384xf32, #tpu.memory_space<vmem>>, vector<16x384xf32>,
    %12 = vector.extract_strided_slice %5 {offsets = [0, 3], sizes = [16, 384], strides = [1, 1]} : vector<16x640xf32> to vector<16x384xf32>
    %c48 = arith.constant 48 : index
    %c0_6 = arith.constant 0 : index
    %13 = vector.load %arg6[%c48, %c0_6] : memref<432x384xf32, #tpu.memory_space<vmem>>, vector<16x384xf32>
    tpu.vector_store %arg6[%c48, %c0_6], %12 {strides = array<i32>} : memref<432x384xf32, #tpu.memory_space<vmem>>, vector<16x384xf32>,
    %14 = vector.extract_strided_slice %5 {offsets = [0, 4], sizes = [16, 384], strides = [1, 1]} : vector<16x640xf32> to vector<16x384xf32>
    %c64 = arith.constant 64 : index
    %c0_7 = arith.constant 0 : index
    %15 = vector.load %arg6[%c64, %c0_7] : memref<432x384xf32, #tpu.memory_space<vmem>>, vector<16x384xf32>
    tpu.vector_store %arg6[%c64, %c0_7], %14 {strides = array<i32>} : memref<432x384xf32, #tpu.memory_space<vmem>>, vector<16x384xf32>,
    %16 = vector.extract_strided_slice %5 {offsets = [0, 5], sizes = [16, 384], strides = [1, 1]} : vector<16x640xf32> to vector<16x384xf32>
    %c80 = arith.constant 80 : index
    %c0_8 = arith.constant 0 : index
    %17 = vector.load %arg6[%c80, %c0_8] : memref<432x384xf32, #tpu.memory_space<vmem>>, vector<16x384xf32>
    tpu.vector_store %arg6[%c80, %c0_8], %16 {strides = array<i32>} : memref<432x384xf32, #tpu.memory_space<vmem>>, vector<16x384xf32>,
    %18 = vector.extract_strided_slice %5 {offsets = [0, 6], sizes = [16, 384], strides = [1, 1]} : vector<16x640xf32> to vector<16x384xf32>
    %c96 = arith.constant 96 : index
    %c0_9 = arith.constant 0 : index
    %19 = vector.load %arg6[%c96, %c0_9] : memref<432x384xf32, #tpu.memory_space<vmem>>, vector<16x384xf32>
    tpu.vector_store %arg6[%c96, %c0_9], %18 {strides = array<i32>} : memref<432x384xf32, #tpu.memory_space<vmem>>, vector<16x384xf32>,
    %20 = vector.extract_strided_slice %5 {offsets = [0, 7], sizes = [16, 384], strides = [1, 1]} : vector<16x640xf32> to vector<16x384xf32>
    %c112 = arith.constant 112 : index
    %c0_10 = arith.constant 0 : index
    %21 = vector.load %arg6[%c112, %c0_10] : memref<432x384xf32, #tpu.memory_space<vmem>>, vector<16x384xf32>
    tpu.vector_store %arg6[%c112, %c0_10], %20 {strides = array<i32>} : memref<432x384xf32, #tpu.memory_space<vmem>>, vector<16x384xf32>,
    %22 = vector.extract_strided_slice %5 {offsets = [0, 8], sizes = [16, 384], strides = [1, 1]} : vector<16x640xf32> to vector<16x384xf32>
    %c128 = arith.constant 128 : index
    %c0_11 = arith.constant 0 : index
    %23 = vector.load %arg6[%c128, %c0_11] : memref<432x384xf32, #tpu.memory_space<vmem>>, vector<16x384xf32>
    tpu.vector_store %arg6[%c128, %c0_11], %22 {strides = array<i32>} : memref<432x384xf32, #tpu.memory_space<vmem>>, vector<16x384xf32>,
    %24 = vector.extract_strided_slice %5 {offsets = [0, 24], sizes = [16, 384], strides = [1, 1]} : vector<16x640xf32> to vector<16x384xf32>
    %c144 = arith.constant 144 : index
    %c0_12 = arith.constant 0 : index
    %25 = vector.load %arg6[%c144, %c0_12] : memref<432x384xf32, #tpu.memory_space<vmem>>, vector<16x384xf32>
    tpu.vector_store %arg6[%c144, %c0_12], %24 {strides = array<i32>} : memref<432x384xf32, #tpu.memory_space<vmem>>, vector<16x384xf32>,
    %26 = vector.extract_strided_slice %5 {offsets = [0, 25], sizes = [16, 384], strides = [1, 1]} : vector<16x640xf32> to vector<16x384xf32>
    %c160 = arith.constant 160 : index
    %c0_13 = arith.constant 0 : index
    %27 = vector.load %arg6[%c160, %c0_13] : memref<432x384xf32, #tpu.memory_space<vmem>>, vector<16x384xf32>
    tpu.vector_store %arg6[%c160, %c0_13], %26 {strides = array<i32>} : memref<432x384xf32, #tpu.memory_space<vmem>>, vector<16x384xf32>,
    %28 = vector.extract_strided_slice %5 {offsets = [0, 26], sizes = [16, 384], strides = [1, 1]} : vector<16x640xf32> to vector<16x384xf32>
    %c176 = arith.constant 176 : index
    %c0_14 = arith.constant 0 : index
    %29 = vector.load %arg6[%c176, %c0_14] : memref<432x384xf32, #tpu.memory_space<vmem>>, vector<16x384xf32>
    tpu.vector_store %arg6[%c176, %c0_14], %28 {strides = array<i32>} : memref<432x384xf32, #tpu.memory_space<vmem>>, vector<16x384xf32>,
    %30 = vector.extract_strided_slice %5 {offsets = [0, 27], sizes = [16, 384], strides = [1, 1]} : vector<16x640xf32> to vector<16x384xf32>
    %c192 = arith.constant 192 : index
    %c0_15 = arith.constant 0 : index
    %31 = vector.load %arg6[%c192, %c0_15] : memref<432x384xf32, #tpu.memory_space<vmem>>, vector<16x384xf32>
    tpu.vector_store %arg6[%c192, %c0_15], %30 {strides = array<i32>} : memref<432x384xf32, #tpu.memory_space<vmem>>, vector<16x384xf32>,
    %32 = vector.extract_strided_slice %5 {offsets = [0, 28], sizes = [16, 384], strides = [1, 1]} : vector<16x640xf32> to vector<16x384xf32>
    %c208 = arith.constant 208 : index
    %c0_16 = arith.constant 0 : index
    %33 = vector.load %arg6[%c208, %c0_16] : memref<432x384xf32, #tpu.memory_space<vmem>>, vector<16x384xf32>
    tpu.vector_store %arg6[%c208, %c0_16], %32 {strides = array<i32>} : memref<432x384xf32, #tpu.memory_space<vmem>>, vector<16x384xf32>,
    %34 = vector.extract_strided_slice %5 {offsets = [0, 29], sizes = [16, 384], strides = [1, 1]} : vector<16x640xf32> to vector<16x384xf32>
    %c224 = arith.constant 224 : index
    %c0_17 = arith.constant 0 : index
    %35 = vector.load %arg6[%c224, %c0_17] : memref<432x384xf32, #tpu.memory_space<vmem>>, vector<16x384xf32>
    tpu.vector_store %arg6[%c224, %c0_17], %34 {strides = array<i32>} : memref<432x384xf32, #tpu.memory_space<vmem>>, vector<16x384xf32>,
    %36 = vector.extract_strided_slice %5 {offsets = [0, 30], sizes = [16, 384], strides = [1, 1]} : vector<16x640xf32> to vector<16x384xf32>
    %c240 = arith.constant 240 : index
    %c0_18 = arith.constant 0 : index
    %37 = vector.load %arg6[%c240, %c0_18] : memref<432x384xf32, #tpu.memory_space<vmem>>, vector<16x384xf32>
    tpu.vector_store %arg6[%c240, %c0_18], %36 {strides = array<i32>} : memref<432x384xf32, #tpu.memory_space<vmem>>, vector<16x384xf32>,
    %38 = vector.extract_strided_slice %5 {offsets = [0, 31], sizes = [16, 384], strides = [1, 1]} : vector<16x640xf32> to vector<16x384xf32>
    %c256 = arith.constant 256 : index
    %c0_19 = arith.constant 0 : index
    %39 = vector.load %arg6[%c256, %c0_19] : memref<432x384xf32, #tpu.memory_space<vmem>>, vector<16x384xf32>
    tpu.vector_store %arg6[%c256, %c0_19], %38 {strides = array<i32>} : memref<432x384xf32, #tpu.memory_space<vmem>>, vector<16x384xf32>,
    %40 = vector.extract_strided_slice %5 {offsets = [0, 32], sizes = [16, 384], strides = [1, 1]} : vector<16x640xf32> to vector<16x384xf32>
    %c272 = arith.constant 272 : index
    %c0_20 = arith.constant 0 : index
    %41 = vector.load %arg6[%c272, %c0_20] : memref<432x384xf32, #tpu.memory_space<vmem>>, vector<16x384xf32>
    tpu.vector_store %arg6[%c272, %c0_20], %40 {strides = array<i32>} : memref<432x384xf32, #tpu.memory_space<vmem>>, vector<16x384xf32>,
    %42 = vector.extract_strided_slice %5 {offsets = [0, 48], sizes = [16, 384], strides = [1, 1]} : vector<16x640xf32> to vector<16x384xf32>
    %c288 = arith.constant 288 : index
    %c0_21 = arith.constant 0 : index
    %43 = vector.load %arg6[%c288, %c0_21] : memref<432x384xf32, #tpu.memory_space<vmem>>, vector<16x384xf32>
    tpu.vector_store %arg6[%c288, %c0_21], %42 {strides = array<i32>} : memref<432x384xf32, #tpu.memory_space<vmem>>, vector<16x384xf32>,
    %44 = vector.extract_strided_slice %5 {offsets = [0, 49], sizes = [16, 384], strides = [1, 1]} : vector<16x640xf32> to vector<16x384xf32>
    %c304 = arith.constant 304 : index
    %c0_22 = arith.constant 0 : index
    %45 = vector.load %arg6[%c304, %c0_22] : memref<432x384xf32, #tpu.memory_space<vmem>>, vector<16x384xf32>
    tpu.vector_store %arg6[%c304, %c0_22], %44 {strides = array<i32>} : memref<432x384xf32, #tpu.memory_space<vmem>>, vector<16x384xf32>,
    %46 = vector.extract_strided_slice %5 {offsets = [0, 50], sizes = [16, 384], strides = [1, 1]} : vector<16x640xf32> to vector<16x384xf32>
    %c320 = arith.constant 320 : index
    %c0_23 = arith.constant 0 : index
    %47 = vector.load %arg6[%c320, %c0_23] : memref<432x384xf32, #tpu.memory_space<vmem>>, vector<16x384xf32>
    tpu.vector_store %arg6[%c320, %c0_23], %46 {strides = array<i32>} : memref<432x384xf32, #tpu.memory_space<vmem>>, vector<16x384xf32>,
    %48 = vector.extract_strided_slice %5 {offsets = [0, 51], sizes = [16, 384], strides = [1, 1]} : vector<16x640xf32> to vector<16x384xf32>
    %c336 = arith.constant 336 : index
    %c0_24 = arith.constant 0 : index
    %49 = vector.load %arg6[%c336, %c0_24] : memref<432x384xf32, #tpu.memory_space<vmem>>, vector<16x384xf32>
    tpu.vector_store %arg6[%c336, %c0_24], %48 {strides = array<i32>} : memref<432x384xf32, #tpu.memory_space<vmem>>, vector<16x384xf32>,
    %50 = vector.extract_strided_slice %5 {offsets = [0, 52], sizes = [16, 384], strides = [1, 1]} : vector<16x640xf32> to vector<16x384xf32>
    %c352 = arith.constant 352 : index
    %c0_25 = arith.constant 0 : index
    %51 = vector.load %arg6[%c352, %c0_25] : memref<432x384xf32, #tpu.memory_space<vmem>>, vector<16x384xf32>
    tpu.vector_store %arg6[%c352, %c0_25], %50 {strides = array<i32>} : memref<432x384xf32, #tpu.memory_space<vmem>>, vector<16x384xf32>,
    %52 = vector.extract_strided_slice %5 {offsets = [0, 53], sizes = [16, 384], strides = [1, 1]} : vector<16x640xf32> to vector<16x384xf32>
    %c368 = arith.constant 368 : index
    %c0_26 = arith.constant 0 : index
    %53 = vector.load %arg6[%c368, %c0_26] : memref<432x384xf32, #tpu.memory_space<vmem>>, vector<16x384xf32>
    tpu.vector_store %arg6[%c368, %c0_26], %52 {strides = array<i32>} : memref<432x384xf32, #tpu.memory_space<vmem>>, vector<16x384xf32>,
    %54 = vector.extract_strided_slice %5 {offsets = [0, 54], sizes = [16, 384], strides = [1, 1]} : vector<16x640xf32> to vector<16x384xf32>
    %c384 = arith.constant 384 : index
    %c0_27 = arith.constant 0 : index
    %55 = vector.load %arg6[%c384, %c0_27] : memref<432x384xf32, #tpu.memory_space<vmem>>, vector<16x384xf32>
    tpu.vector_store %arg6[%c384, %c0_27], %54 {strides = array<i32>} : memref<432x384xf32, #tpu.memory_space<vmem>>, vector<16x384xf32>,
    %56 = vector.extract_strided_slice %5 {offsets = [0, 55], sizes = [16, 384], strides = [1, 1]} : vector<16x640xf32> to vector<16x384xf32>
    %c400 = arith.constant 400 : index
    %c0_28 = arith.constant 0 : index
    %57 = vector.load %arg6[%c400, %c0_28] : memref<432x384xf32, #tpu.memory_space<vmem>>, vector<16x384xf32>
    tpu.vector_store %arg6[%c400, %c0_28], %56 {strides = array<i32>} : memref<432x384xf32, #tpu.memory_space<vmem>>, vector<16x384xf32>,
    %58 = vector.extract_strided_slice %5 {offsets = [0, 56], sizes = [16, 384], strides = [1, 1]} : vector<16x640xf32> to vector<16x384xf32>
    %c416 = arith.constant 416 : index
    %c0_29 = arith.constant 0 : index
    %59 = vector.load %arg6[%c416, %c0_29] : memref<432x384xf32, #tpu.memory_space<vmem>>, vector<16x384xf32>
    tpu.vector_store %arg6[%c416, %c0_29], %58 {strides = array<i32>} : memref<432x384xf32, #tpu.memory_space<vmem>>, vector<16x384xf32>,
    %c0_30 = arith.constant 0 : index
    %c0_31 = arith.constant 0 : index
    %c0_32 = arith.constant 0 : index
    %60 = vector.load %arg3[%c0_30, %c0_31, %c0_32] : memref<1x64x432xf32, #tpu.memory_space<vmem>>, vector<1x64x432xf32>
    %61 = vector.shape_cast %60 : vector<1x64x432xf32> to vector<64x432xf32>
    %c0_33 = arith.constant 0 : index
    %c0_34 = arith.constant 0 : index
    %62 = vector.load %arg6[%c0_33, %c0_34] : memref<432x384xf32, #tpu.memory_space<vmem>>, vector<432x384xf32>
    %cst = arith.constant dense<0.000000e+00> : vector<64x384xf32>
    %63 = tpu.matmul %61, %62, %cst {dimension_numbers = #tpu.dot_dimension_numbers<[1], [0], [0], [1], [0, 0, 1, 1], [], []>} : vector<64x432xf32>, vector<432x384xf32>, vector<64x384xf32> -> vector<64x384xf32>
    %c2_i32 = arith.constant 2 : i32
    %64 = arith.cmpi slt, %arg1, %c2_i32 : i32
    %65 = arith.extui %64 : i1 to i32
    %c0_i32_35 = arith.constant 0 : i32
    %66 = arith.cmpi ne, %65, %c0_i32_35 : i32
    scf.if %66 {
      %c0_38 = arith.constant 0 : index
      %c0_39 = arith.constant 0 : index
      %70 = vector.load %arg7[%c0_38, %c0_39] : memref<64x384xf32, #tpu.memory_space<vmem>>, vector<64x384xf32>
      %71 = arith.addf %70, %63 : vector<64x384xf32>
      %c0_40 = arith.constant 0 : index
      %c0_41 = arith.constant 0 : index
      %72 = vector.load %arg7[%c0_40, %c0_41] : memref<64x384xf32, #tpu.memory_space<vmem>>, vector<64x384xf32>
      tpu.vector_store %arg7[%c0_40, %c0_41], %71 {strides = array<i32>} : memref<64x384xf32, #tpu.memory_space<vmem>>, vector<64x384xf32>,
    } else {
    }
    %c2_i32_36 = arith.constant 2 : i32
    %67 = arith.cmpi eq, %arg1, %c2_i32_36 : i32
    %68 = arith.extui %67 : i1 to i32
    %c0_i32_37 = arith.constant 0 : i32
    %69 = arith.cmpi ne, %68, %c0_i32_37 : i32
    scf.if %69 {
      %c0_38 = arith.constant 0 : index
      %c0_39 = arith.constant 0 : index
      %70 = vector.load %arg7[%c0_38, %c0_39] : memref<64x384xf32, #tpu.memory_space<vmem>>, vector<64x384xf32>
      %71 = arith.addf %70, %63 : vector<64x384xf32>
      %72 = vector.extract_strided_slice %71 {offsets = [0, 0], sizes = [64, 16], strides = [1, 1]} : vector<64x384xf32> to vector<64x16xf32>
      %c0_40 = arith.constant 0 : index
      %c0_41 = arith.constant 0 : index
      %c0_42 = arith.constant 0 : index
      %73 = vector.load %arg4[%c0_40, %c0_41, %c0_42] : memref<1x64x256xf32, #tpu.memory_space<vmem>>, vector<1x64x16xf32>
      %74 = vector.shape_cast %73 : vector<1x64x16xf32> to vector<64x16xf32>
      %75 = vector.shape_cast %72 : vector<64x16xf32> to vector<1x64x16xf32>
      tpu.vector_store %arg4[%c0_40, %c0_41, %c0_42], %75 {strides = array<i32>} : memref<1x64x256xf32, #tpu.memory_space<vmem>>, vector<1x64x16xf32>,
      %76 = vector.extract_strided_slice %71 {offsets = [0, 24], sizes = [64, 16], strides = [1, 1]} : vector<64x384xf32> to vector<64x16xf32>
      %c0_43 = arith.constant 0 : index
      %c0_44 = arith.constant 0 : index
      %c16_45 = arith.constant 16 : index
      %77 = vector.load %arg4[%c0_43, %c0_44, %c16_45] : memref<1x64x256xf32, #tpu.memory_space<vmem>>, vector<1x64x16xf32>
      %78 = vector.shape_cast %77 : vector<1x64x16xf32> to vector<64x16xf32>
      %79 = vector.shape_cast %76 : vector<64x16xf32> to vector<1x64x16xf32>
      tpu.vector_store %arg4[%c0_43, %c0_44, %c16_45], %79 {strides = array<i32>} : memref<1x64x256xf32, #tpu.memory_space<vmem>>, vector<1x64x16xf32>,
      %80 = vector.extract_strided_slice %71 {offsets = [0, 48], sizes = [64, 16], strides = [1, 1]} : vector<64x384xf32> to vector<64x16xf32>
      %c0_46 = arith.constant 0 : index
      %c0_47 = arith.constant 0 : index
      %c32_48 = arith.constant 32 : index
      %81 = vector.load %arg4[%c0_46, %c0_47, %c32_48] : memref<1x64x256xf32, #tpu.memory_space<vmem>>, vector<1x64x16xf32>
      %82 = vector.shape_cast %81 : vector<1x64x16xf32> to vector<64x16xf32>
      %83 = vector.shape_cast %80 : vector<64x16xf32> to vector<1x64x16xf32>
      tpu.vector_store %arg4[%c0_46, %c0_47, %c32_48], %83 {strides = array<i32>} : memref<1x64x256xf32, #tpu.memory_space<vmem>>, vector<1x64x16xf32>,
      %84 = vector.extract_strided_slice %71 {offsets = [0, 72], sizes = [64, 16], strides = [1, 1]} : vector<64x384xf32> to vector<64x16xf32>
      %c0_49 = arith.constant 0 : index
      %c0_50 = arith.constant 0 : index
      %c48_51 = arith.constant 48 : index
      %85 = vector.load %arg4[%c0_49, %c0_50, %c48_51] : memref<1x64x256xf32, #tpu.memory_space<vmem>>, vector<1x64x16xf32>
      %86 = vector.shape_cast %85 : vector<1x64x16xf32> to vector<64x16xf32>
      %87 = vector.shape_cast %84 : vector<64x16xf32> to vector<1x64x16xf32>
      tpu.vector_store %arg4[%c0_49, %c0_50, %c48_51], %87 {strides = array<i32>} : memref<1x64x256xf32, #tpu.memory_space<vmem>>, vector<1x64x16xf32>,
      %88 = vector.extract_strided_slice %71 {offsets = [0, 96], sizes = [64, 16], strides = [1, 1]} : vector<64x384xf32> to vector<64x16xf32>
      %c0_52 = arith.constant 0 : index
      %c0_53 = arith.constant 0 : index
      %c64_54 = arith.constant 64 : index
      %89 = vector.load %arg4[%c0_52, %c0_53, %c64_54] : memref<1x64x256xf32, #tpu.memory_space<vmem>>, vector<1x64x16xf32>
      %90 = vector.shape_cast %89 : vector<1x64x16xf32> to vector<64x16xf32>
      %91 = vector.shape_cast %88 : vector<64x16xf32> to vector<1x64x16xf32>
      tpu.vector_store %arg4[%c0_52, %c0_53, %c64_54], %91 {strides = array<i32>} : memref<1x64x256xf32, #tpu.memory_space<vmem>>, vector<1x64x16xf32>,
      %92 = vector.extract_strided_slice %71 {offsets = [0, 120], sizes = [64, 16], strides = [1, 1]} : vector<64x384xf32> to vector<64x16xf32>
      %c0_55 = arith.constant 0 : index
      %c0_56 = arith.constant 0 : index
      %c80_57 = arith.constant 80 : index
      %93 = vector.load %arg4[%c0_55, %c0_56, %c80_57] : memref<1x64x256xf32, #tpu.memory_space<vmem>>, vector<1x64x16xf32>
      %94 = vector.shape_cast %93 : vector<1x64x16xf32> to vector<64x16xf32>
      %95 = vector.shape_cast %92 : vector<64x16xf32> to vector<1x64x16xf32>
      tpu.vector_store %arg4[%c0_55, %c0_56, %c80_57], %95 {strides = array<i32>} : memref<1x64x256xf32, #tpu.memory_space<vmem>>, vector<1x64x16xf32>,
      %96 = vector.extract_strided_slice %71 {offsets = [0, 144], sizes = [64, 16], strides = [1, 1]} : vector<64x384xf32> to vector<64x16xf32>
      %c0_58 = arith.constant 0 : index
      %c0_59 = arith.constant 0 : index
      %c96_60 = arith.constant 96 : index
      %97 = vector.load %arg4[%c0_58, %c0_59, %c96_60] : memref<1x64x256xf32, #tpu.memory_space<vmem>>, vector<1x64x16xf32>
      %98 = vector.shape_cast %97 : vector<1x64x16xf32> to vector<64x16xf32>
      %99 = vector.shape_cast %96 : vector<64x16xf32> to vector<1x64x16xf32>
      tpu.vector_store %arg4[%c0_58, %c0_59, %c96_60], %99 {strides = array<i32>} : memref<1x64x256xf32, #tpu.memory_space<vmem>>, vector<1x64x16xf32>,
      %100 = vector.extract_strided_slice %71 {offsets = [0, 168], sizes = [64, 16], strides = [1, 1]} : vector<64x384xf32> to vector<64x16xf32>
      %c0_61 = arith.constant 0 : index
      %c0_62 = arith.constant 0 : index
      %c112_63 = arith.constant 112 : index
      %101 = vector.load %arg4[%c0_61, %c0_62, %c112_63] : memref<1x64x256xf32, #tpu.memory_space<vmem>>, vector<1x64x16xf32>
      %102 = vector.shape_cast %101 : vector<1x64x16xf32> to vector<64x16xf32>
      %103 = vector.shape_cast %100 : vector<64x16xf32> to vector<1x64x16xf32>
      tpu.vector_store %arg4[%c0_61, %c0_62, %c112_63], %103 {strides = array<i32>} : memref<1x64x256xf32, #tpu.memory_space<vmem>>, vector<1x64x16xf32>,
      %104 = vector.extract_strided_slice %71 {offsets = [0, 192], sizes = [64, 16], strides = [1, 1]} : vector<64x384xf32> to vector<64x16xf32>
      %c0_64 = arith.constant 0 : index
      %c0_65 = arith.constant 0 : index
      %c128_66 = arith.constant 128 : index
      %105 = vector.load %arg4[%c0_64, %c0_65, %c128_66] : memref<1x64x256xf32, #tpu.memory_space<vmem>>, vector<1x64x16xf32>
      %106 = vector.shape_cast %105 : vector<1x64x16xf32> to vector<64x16xf32>
      %107 = vector.shape_cast %104 : vector<64x16xf32> to vector<1x64x16xf32>
      tpu.vector_store %arg4[%c0_64, %c0_65, %c128_66], %107 {strides = array<i32>} : memref<1x64x256xf32, #tpu.memory_space<vmem>>, vector<1x64x16xf32>,
      %108 = vector.extract_strided_slice %71 {offsets = [0, 216], sizes = [64, 16], strides = [1, 1]} : vector<64x384xf32> to vector<64x16xf32>
      %c0_67 = arith.constant 0 : index
      %c0_68 = arith.constant 0 : index
      %c144_69 = arith.constant 144 : index
      %109 = vector.load %arg4[%c0_67, %c0_68, %c144_69] : memref<1x64x256xf32, #tpu.memory_space<vmem>>, vector<1x64x16xf32>
      %110 = vector.shape_cast %109 : vector<1x64x16xf32> to vector<64x16xf32>
      %111 = vector.shape_cast %108 : vector<64x16xf32> to vector<1x64x16xf32>
      tpu.vector_store %arg4[%c0_67, %c0_68, %c144_69], %111 {strides = array<i32>} : memref<1x64x256xf32, #tpu.memory_space<vmem>>, vector<1x64x16xf32>,
      %112 = vector.extract_strided_slice %71 {offsets = [0, 240], sizes = [64, 16], strides = [1, 1]} : vector<64x384xf32> to vector<64x16xf32>
      %c0_70 = arith.constant 0 : index
      %c0_71 = arith.constant 0 : index
      %c160_72 = arith.constant 160 : index
      %113 = vector.load %arg4[%c0_70, %c0_71, %c160_72] : memref<1x64x256xf32, #tpu.memory_space<vmem>>, vector<1x64x16xf32>
      %114 = vector.shape_cast %113 : vector<1x64x16xf32> to vector<64x16xf32>
      %115 = vector.shape_cast %112 : vector<64x16xf32> to vector<1x64x16xf32>
      tpu.vector_store %arg4[%c0_70, %c0_71, %c160_72], %115 {strides = array<i32>} : memref<1x64x256xf32, #tpu.memory_space<vmem>>, vector<1x64x16xf32>,
      %116 = vector.extract_strided_slice %71 {offsets = [0, 264], sizes = [64, 16], strides = [1, 1]} : vector<64x384xf32> to vector<64x16xf32>
      %c0_73 = arith.constant 0 : index
      %c0_74 = arith.constant 0 : index
      %c176_75 = arith.constant 176 : index
      %117 = vector.load %arg4[%c0_73, %c0_74, %c176_75] : memref<1x64x256xf32, #tpu.memory_space<vmem>>, vector<1x64x16xf32>
      %118 = vector.shape_cast %117 : vector<1x64x16xf32> to vector<64x16xf32>
      %119 = vector.shape_cast %116 : vector<64x16xf32> to vector<1x64x16xf32>
      tpu.vector_store %arg4[%c0_73, %c0_74, %c176_75], %119 {strides = array<i32>} : memref<1x64x256xf32, #tpu.memory_space<vmem>>, vector<1x64x16xf32>,
      %120 = vector.extract_strided_slice %71 {offsets = [0, 288], sizes = [64, 16], strides = [1, 1]} : vector<64x384xf32> to vector<64x16xf32>
      %c0_76 = arith.constant 0 : index
      %c0_77 = arith.constant 0 : index
      %c192_78 = arith.constant 192 : index
      %121 = vector.load %arg4[%c0_76, %c0_77, %c192_78] : memref<1x64x256xf32, #tpu.memory_space<vmem>>, vector<1x64x16xf32>
      %122 = vector.shape_cast %121 : vector<1x64x16xf32> to vector<64x16xf32>
      %123 = vector.shape_cast %120 : vector<64x16xf32> to vector<1x64x16xf32>
      tpu.vector_store %arg4[%c0_76, %c0_77, %c192_78], %123 {strides = array<i32>} : memref<1x64x256xf32, #tpu.memory_space<vmem>>, vector<1x64x16xf32>,
      %124 = vector.extract_strided_slice %71 {offsets = [0, 312], sizes = [64, 16], strides = [1, 1]} : vector<64x384xf32> to vector<64x16xf32>
      %c0_79 = arith.constant 0 : index
      %c0_80 = arith.constant 0 : index
      %c208_81 = arith.constant 208 : index
      %125 = vector.load %arg4[%c0_79, %c0_80, %c208_81] : memref<1x64x256xf32, #tpu.memory_space<vmem>>, vector<1x64x16xf32>
      %126 = vector.shape_cast %125 : vector<1x64x16xf32> to vector<64x16xf32>
      %127 = vector.shape_cast %124 : vector<64x16xf32> to vector<1x64x16xf32>
      tpu.vector_store %arg4[%c0_79, %c0_80, %c208_81], %127 {strides = array<i32>} : memref<1x64x256xf32, #tpu.memory_space<vmem>>, vector<1x64x16xf32>,
      %128 = vector.extract_strided_slice %71 {offsets = [0, 336], sizes = [64, 16], strides = [1, 1]} : vector<64x384xf32> to vector<64x16xf32>
      %c0_82 = arith.constant 0 : index
      %c0_83 = arith.constant 0 : index
      %c224_84 = arith.constant 224 : index
      %129 = vector.load %arg4[%c0_82, %c0_83, %c224_84] : memref<1x64x256xf32, #tpu.memory_space<vmem>>, vector<1x64x16xf32>
      %130 = vector.shape_cast %129 : vector<1x64x16xf32> to vector<64x16xf32>
      %131 = vector.shape_cast %128 : vector<64x16xf32> to vector<1x64x16xf32>
      tpu.vector_store %arg4[%c0_82, %c0_83, %c224_84], %131 {strides = array<i32>} : memref<1x64x256xf32, #tpu.memory_space<vmem>>, vector<1x64x16xf32>,
      %132 = vector.extract_strided_slice %71 {offsets = [0, 360], sizes = [64, 16], strides = [1, 1]} : vector<64x384xf32> to vector<64x16xf32>
      %c0_85 = arith.constant 0 : index
      %c0_86 = arith.constant 0 : index
      %c240_87 = arith.constant 240 : index
      %133 = vector.load %arg4[%c0_85, %c0_86, %c240_87] : memref<1x64x256xf32, #tpu.memory_space<vmem>>, vector<1x64x16xf32>
      %134 = vector.shape_cast %133 : vector<1x64x16xf32> to vector<64x16xf32>
      %135 = vector.shape_cast %132 : vector<64x16xf32> to vector<1x64x16xf32>
      tpu.vector_store %arg4[%c0_85, %c0_86, %c240_87], %135 {strides = array<i32>} : memref<1x64x256xf32, #tpu.memory_space<vmem>>, vector<1x64x16xf32>,
    } else {
    }
    return
  }
  func.func @transform_0(%arg0: i32, %arg1: i32) -> (i32, i32, i32) {
    %c0_i32 = arith.constant 0 : i32
    %c0_i32_0 = arith.constant 0 : i32
    %c0_i32_1 = arith.constant 0 : i32
    return %arg0, %c0_i32, %c0_i32_0 : i32, i32, i32
  }
  func.func @transform_1(%arg0: i32, %arg1: i32) -> (i32, i32, i32) {
    %c0_i32 = arith.constant 0 : i32
    %c0_i32_0 = arith.constant 0 : i32
    %c0_i32_1 = arith.constant 0 : i32
    return %arg1, %c0_i32, %c0_i32_0 : i32, i32, i32
  }
  func.func @transform_2(%arg0: i32, %arg1: i32) -> (i32, i32, i32) {
    %c0_i32 = arith.constant 0 : i32
    %c0_i32_0 = arith.constant 0 : i32
    %c0_i32_1 = arith.constant 0 : i32
    return %arg0, %c0_i32, %c0_i32_0 : i32, i32, i32
  }
}

</mosaic_0001>

<llo_original>
// kernel: pyconv4_apply.1
$region0: #{pyconv4_apply.1}
  #allocation0 [shape = 'u32[]', space=smem, size = 0x4, offset = 0x4, fixed_abs, tag = 'smem constant byte address 0x4 - core index']
  #allocation1 [shape = 'u32[144,128]{1,0:T(1,128)}', space=vmem, size = 0x12000, scoped, tag = 'internal scratch']
  #allocation2 [shape = 'f32[3,16,640]{2,1,0:T(8,128)}', space=vmem, size = 0x1e000, scoped, tag = 'scratch operand']
  #allocation3 [shape = 'f32[432,384]{1,0:T(8,128)}', space=vmem, size = 0xa2000, scoped, tag = 'scratch operand']
  #allocation4 [shape = 'f32[64,384]{1,0:T(8,128)}', space=vmem, size = 0x18000, scoped, tag = 'scratch operand']
  %s0 = inlined_call_operand.vmem [shape: f32[2,16,256], index: 0, kind: input, shape index: {}]
  %s1 = inlined_call_operand.hbm [shape: f32[3,64,432], index: 1, kind: input, shape index: {}]
  %s2 = inlined_call_operand.vmem [shape: f32[2,64,256], index: 2, kind: output, shape index: {}]
  %s3 = sld [smem:[#allocation0]]
  $region57: #{pyconv4_apply.1} parent=0
    _
  %s5 = ssub.s32 1, %s3
  %s6 = scalar_select 0, %s5, %s3
  $region1: #{pyconv4_apply.1} parent=0
    #allocation5 [shape = 'u8[262144]{0}', space=vmem, size = 0x40000, scoped, tag = 'input window, operand 1']
    #allocation6 [shape = 's32[2]{0}', space=sflag, size = 0x8, scoped, tag = 'scoped memory for pyconv4_apply.1']
    %7 = vsyncpa [#allocation6], 0
    %s8 = scalar_lea.sflag [#allocation6], 1
    %9 = vsyncpa %s8, 0
    loop: start=0, step=1, limit=8
    $region2: #{pyconv4_apply.1} parent=1 // loop_pre_header
      _
    $region3: #{pyconv4_apply.1} parent=1 // loop_header
      %s11 = sphi 0, %s15
      %p12 = scmp.ge.s32.totalorder %s11, 8
      %s18 = sphi 0, %s30
      %s19 = sphi 0, %s26
      %s20 = sphi 0, %s18
      %s21 = sphi 0, %s19
      %s22 = sphi 0, %s20
      %s23 = sphi 0, %s21
      %s33 = sphi 0, %s35
      %s36 = sphi 0, %s33
      %s37 = sphi 0, %s36
      %s53 = sphi 0, %s37
      %s59 = sphi 0, %s61
      %s62 = sphi 0, %s59
      %s63 = sphi 0, %s62
      %s79 = sphi 0, %s63
      %s85 = sphi 0, %s87
      %s88 = sphi 0, %s85
      %s89 = sphi 0, %s88
      %s105 = sphi 0, %s89
    $region4: #{pyconv4_apply.1} parent=1 // loop_header_branch
      %14 = sbr.rel (%p12) target = $region8
    $region5: #{pyconv4_apply.1} parent=1 // loop_body
      %s16 = ssub.s32 %s11, 1
      %s17 = ssub.s32 %s11, 2
      %s24 = sadd.s32 1, %s19
      %p25 = scmp.ge.s32.totalorder %s24, 3
      %s26 = scalar_select %p25, 0, %s24
      %s27 = sadd.s32 1, %s18
      %s28 = scalar_select %p25, %s27, %s18
      %p29 = scmp.ge.s32.totalorder %s28, 2
      %s30 = scalar_select %p29, 0, %s28
      %s31 = ssub.s32 %s18, %s30
      %p32 = scmp.eq.s32.totalorder %s31, 0
      %s34 = sadd.s32 %s33, 1
      %s35 = scalar_select %p32, %s33, %s34
      %p38 = pneg %p32
      %p39 = scmp.eq.s32.totalorder %s11, 5
      %p40 = por %p38, %p39
      %p41 = scmp.ne.s32.totalorder %s33, %s36
      %p42 = scmp.eq.s32.totalorder %s11, 0
      %p43 = por %p41, %p42
      %p44 = scmp.ne.s32.totalorder %s33, %s36
      %p45 = scmp.eq.s32.totalorder %s16, 5
      %p46 = por %p44, %p45
      %p47 = scmp.ne.s32.totalorder %s36, %s37
      %p48 = scmp.eq.s32.totalorder %s16, 0
      %p49 = por %p47, %p48
      %p50 = scmp.ne.s32.totalorder %s36, %s37
      %p51 = scmp.eq.s32.totalorder %s17, 5
      %p52 = por %p50, %p51
      %p54 = scmp.ne.s32.totalorder %s37, %s53
      %p55 = scmp.eq.s32.totalorder %s17, 0
      %p56 = por %p54, %p55
      %s57 = ssub.s32 %s19, %s26
      %p58 = scmp.eq.s32.totalorder %s57, 0
      %s60 = sadd.s32 %s59, 1
      %s61 = scalar_select %p58, %s59, %s60
      %p64 = pneg %p58
      %p65 = scmp.eq.s32.totalorder %s11, 5
      %p66 = por %p64, %p65
      %p67 = scmp.ne.s32.totalorder %s59, %s62
      %p68 = scmp.eq.s32.totalorder %s11, 0
      %p69 = por %p67, %p68
      %p70 = scmp.ne.s32.totalorder %s59, %s62
      %p71 = scmp.eq.s32.totalorder %s16, 5
      %p72 = por %p70, %p71
      %p73 = scmp.ne.s32.totalorder %s62, %s63
      %p74 = scmp.eq.s32.totalorder %s16, 0
      %p75 = por %p73, %p74
      %p76 = scmp.ne.s32.totalorder %s62, %s63
      %p77 = scmp.eq.s32.totalorder %s17, 5
      %p78 = por %p76, %p77
      %p80 = scmp.ne.s32.totalorder %s63, %s79
      %p81 = scmp.eq.s32.totalorder %s17, 0
      %p82 = por %p80, %p81
      %s83 = ssub.s32 %s18, %s30
      %p84 = scmp.eq.s32.totalorder %s83, 0
      %s86 = sadd.s32 %s85, 1
      %s87 = scalar_select %p84, %s85, %s86
      %p90 = pneg %p84
      %p91 = scmp.eq.s32.totalorder %s11, 5
      %p92 = por %p90, %p91
      %p93 = scmp.ne.s32.totalorder %s85, %s88
      %p94 = scmp.eq.s32.totalorder %s11, 0
      %p95 = por %p93, %p94
      %p96 = scmp.ne.s32.totalorder %s85, %s88
      %p97 = scmp.eq.s32.totalorder %s16, 5
      %p98 = por %p96, %p97
      %p99 = scmp.ne.s32.totalorder %s88, %s89
      %p100 = scmp.eq.s32.totalorder %s16, 0
      %p101 = por %p99, %p100
      %p102 = scmp.ne.s32.totalorder %s88, %s89
      %p103 = scmp.eq.s32.totalorder %s17, 5
      %p104 = por %p102, %p103
      %p106 = scmp.ne.s32.totalorder %s89, %s105
      %p107 = scmp.eq.s32.totalorder %s17, 0
      %p108 = por %p106, %p107
      %p109 = scmp.le.s32.totalorder 1, %s11
      %p110 = scmp.lt.s32.totalorder %s11, 7
      %p111 = pnand %p109, %p110
      %p112 = pneg %p111
      // Predicated region
      $region9: #{pyconv4_apply.1} parent=5 // pred_check
        _
      $region10: #{pyconv4_apply.1} parent=5 // pred_check_branch
        %114 = sbr.rel (%p111) target = $region12
      $region11: #{pyconv4_apply.1} parent=5 // pred_region
        %s115 = ssub.s32 %s11, 1
      $region12: #{pyconv4_apply.1} parent=5 // pred_fallthru
        _
      %p116 = scmp.lt.s32.totalorder %s11, 6
      // Predicated region
      $region13: #{pyconv4_apply.1} parent=5 // pred_check
        %p117 = pneg %p116
      $region14: #{pyconv4_apply.1} parent=5 // pred_check_branch
        %119 = sbr.rel (%p117) target = $region16
      $region15: #{pyconv4_apply.1} parent=5 // pred_region
        // Predicated region
        $region17: #{pyconv4_apply.1} parent=15 // pred_check
          %p120 = pneg %p43
        $region18: #{pyconv4_apply.1} parent=15 // pred_check_branch
          %122 = sbr.rel (%p120) target = $region20
        $region19: #{pyconv4_apply.1} parent=15 // pred_region
          %p123 = scmp.lt.s32.totalorder %s18, 1
          %s124 = scalar_select %p123, %s18, 1
          %s125 = smul.addr %s124, 4
          %s126 = smul.addr %s125, 8
          %s127 = scalar_lea.vmem %s0, %s126
        $region20: #{pyconv4_apply.1} parent=15 // pred_fallthru
          _
        // Predicated region
        $region21: #{pyconv4_apply.1} parent=15 // pred_check
          %p128 = pneg %p69
        $region22: #{pyconv4_apply.1} parent=15 // pred_check_branch
          %130 = sbr.rel (%p128) target = $region24
        $region23: #{pyconv4_apply.1} parent=15 // pred_region
          %s131 = sand.u32 %s59, 1
          %s132 = scalar_lea.sflag [#allocation6], %s131
          %s133 = sand.u32 %s59, 1
          %s134 = smul.addr %s133, 256
          %s135 = scalar_lea.vmem [#allocation5], %s134
          %s137 = ssub.s32 4096, 4096
          %138 = vsyncadd %s132, %s137
          %s139 = smul.addr %s19, 32
          %s140 = smul.addr %s139, 128
          %s141 = scalar_lea.hbm %s1, %s140
          %s142 = sshll.u32 %s135, 4
          %s143 = int_to_ptr.vmem [resolvable:$true] %s142
          %148 = dma.hbm_to_vmem [thread:$0]  %s141, 4096, %s143, %s132, 512, 512, 32
        $region24: #{pyconv4_apply.1} parent=15 // pred_fallthru
          _
      $region16: #{pyconv4_apply.1} parent=5 // pred_fallthru
        _
      %p149 = scmp.le.s32.totalorder 1, %s11
      %p150 = scmp.lt.s32.totalorder %s11, 7
      %p151 = pnand %p149, %p150
      %p152 = pneg %p151
      // Predicated region
      $region25: #{pyconv4_apply.1} parent=5 // pred_check
        _
      $region26: #{pyconv4_apply.1} parent=5 // pred_check_branch
        %154 = sbr.rel (%p151) target = $region28
      $region27: #{pyconv4_apply.1} parent=5 // pred_region
        %s155 = ssub.s32 %s11, 1
        %s156 = sand.u32 %s62, 1
        %s157 = scalar_lea.sflag [#allocation6], %s156
        %s158 = sand.u32 %s62, 1
        %s159 = smul.addr %s158, 256
        %s160 = scalar_lea.vmem [#allocation5], %s159
        // Predicated region
        $region29: #{pyconv4_apply.1} parent=27 // pred_check
          %p161 = pneg %p75
        $region30: #{pyconv4_apply.1} parent=27 // pred_check_branch
          %163 = sbr.rel (%p161) target = $region32
        $region31: #{pyconv4_apply.1} parent=27 // pred_region
          %164 = dma.done %s157, 4096
        $region32: #{pyconv4_apply.1} parent=27 // pred_fallthru
          _
        %p165 = scmp.lt.s32.totalorder %s20, 1
        %s166 = scalar_select %p165, %s20, 1
        %s167 = smul.addr %s166, 4
        %s168 = smul.addr %s167, 8
        %s169 = scalar_lea.vmem %s0, %s168
        %p170 = pneg %p49
        %p171 = pneg %p46
        %s172 = sand.u32 %s62, 1
        %s173 = scalar_lea.sflag [#allocation6], %s172
        %s174 = sand.u32 %s62, 1
        %s175 = smul.addr %s174, 256
        %s176 = scalar_lea.vmem [#allocation5], %s175
        %p177 = pneg %p75
        %p178 = pneg %p72
        %p179 = pneg %p101
        %p180 = pneg %p98
        %p181 = scmp.lt.s32.totalorder %s20, 1
        %s182 = scalar_select %p181, %s20, 1
        %s183 = smul.addr %s182, 16
        %s184 = smul.addr %s183, 8
        %s185 = scalar_lea.vmem %s2, %s184
        %p186 = scmp.lt.s32.totalorder %s20, 1
        %s187 = scalar_select %p186, %s20, 1
        %s188 = smul.addr %s187, 4
        %s189 = smul.addr %s188, 8
        %s190 = scalar_lea.vmem %s0, %s189
        %p191 = scmp.lt.s32.totalorder %s20, 1
        %s192 = scalar_select %p191, %s20, 1
        %s193 = smul.addr %s192, 16
        %s194 = smul.addr %s193, 8
        %s195 = scalar_lea.vmem %s2, %s194
        %p196 = scmp.eq.s32.totalorder %s21, 0
        // Predicated region
        $region33: #{pyconv4_apply.1} parent=27 // pred_check
          %p197 = pneg %p196
        $region34: #{pyconv4_apply.1} parent=27 // pred_check_branch
          %199 = sbr.rel (%p197) target = $region36
        $region35: #{pyconv4_apply.1} parent=27 // pred_region
          %200 = vst [vmem:[#allocation2] sm:$0xff] 0.0
          %201 = vst [vmem:[#allocation2 + $0x8] sm:$0xff] 0.0
          %202 = vst [vmem:[#allocation2 + $0x10] sm:$0xff] 0.0
          %203 = vst [vmem:[#allocation2 + $0x18] sm:$0xff] 0.0
          %204 = vst [vmem:[#allocation2 + $0x20] sm:$0xff] 0.0
          %205 = vst [vmem:[#allocation2 + $0x28] sm:$0xff] 0.0
          %206 = vst [vmem:[#allocation2 + $0x30] sm:$0xff] 0.0
          %207 = vst [vmem:[#allocation2 + $0x38] sm:$0xff] 0.0
          %208 = vst [vmem:[#allocation2 + $0x40] sm:$0xff] 0.0
          %209 = vst [vmem:[#allocation2 + $0x48] sm:$0xff] 0.0
          %210 = vst [vmem:[#allocation2 + $0x50] sm:$0xff] 0.0
          %211 = vst [vmem:[#allocation2 + $0x58] sm:$0xff] 0.0
          %212 = vst [vmem:[#allocation2 + $0x60] sm:$0xff] 0.0
          %213 = vst [vmem:[#allocation2 + $0x68] sm:$0xff] 0.0
          %214 = vst [vmem:[#allocation2 + $0x70] sm:$0xff] 0.0
          %215 = vst [vmem:[#allocation2 + $0x78] sm:$0xff] 0.0
          %216 = vst [vmem:[#allocation2 + $0x80] sm:$0xff] 0.0
          %217 = vst [vmem:[#allocation2 + $0x88] sm:$0xff] 0.0
          %218 = vst [vmem:[#allocation2 + $0x90] sm:$0xff] 0.0
          %219 = vst [vmem:[#allocation2 + $0x98] sm:$0xff] 0.0
          %220 = vst [vmem:[#allocation2 + $0xa0] sm:$0xff] 0.0
          %221 = vst [vmem:[#allocation2 + $0xa8] sm:$0xff] 0.0
          %222 = vst [vmem:[#allocation2 + $0xb0] sm:$0xff] 0.0
          %223 = vst [vmem:[#allocation2 + $0xb8] sm:$0xff] 0.0
          %224 = vst [vmem:[#allocation2 + $0xc0] sm:$0xff] 0.0
          %225 = vst [vmem:[#allocation2 + $0xc8] sm:$0xff] 0.0
          %226 = vst [vmem:[#allocation2 + $0xd0] sm:$0xff] 0.0
          %227 = vst [vmem:[#allocation2 + $0xd8] sm:$0xff] 0.0
          %228 = vst [vmem:[#allocation2 + $0xe0] sm:$0xff] 0.0
          %229 = vst [vmem:[#allocation2 + $0xe8] sm:$0xff] 0.0
          %v230 = vld [vmem:[%s190] sm:$0xff]
          %v231 = vld [vmem:[%s190 + $0x10] sm:$0xff]
          %234 = vrot.lane.b32.xlu0 %v230, 100
          %v235 = vpop.permute.xlu0 %234
          %236 = vrot.lane.b32.xlu0 %v231, 100
          %v237 = vpop.permute.xlu0 %236
          %vm240 = vcmask 950048
          %241 = vst.msk [vmem:[#allocation2] sm:$0xff] %vm240, %v235
          %242 = vst.msk [vmem:[#allocation2 + $0x28] sm:$0xff] %vm240, %v237
          %v243 = vld [vmem:[%s190] sm:$0xff]
          %v244 = vld [vmem:[%s190 + $0x10] sm:$0xff]
          %247 = vrot.lane.b32.xlu0 %v243, 108
          %v248 = vpop.permute.xlu0 %247
          %249 = vrot.lane.b32.xlu0 %v244, 108
          %v250 = vpop.permute.xlu0 %249
          %vm253 = vcmask 1048544
          %254 = vst.msk [vmem:[#allocation2] sm:$0xff] %vm253, %v248
          %vm255 = vcmask 97280
          %256 = vst.msk [vmem:[#allocation2 + $0x8] sm:$0xff] %vm255, %v248
          %257 = vst.msk [vmem:[#allocation2 + $0x28] sm:$0xff] %vm253, %v250
          %258 = vst.msk [vmem:[#allocation2 + $0x30] sm:$0xff] %vm255, %v250
          %v259 = vld [vmem:[%s190] sm:$0xff]
          %v260 = vld [vmem:[%s190 + $0x10] sm:$0xff]
          %263 = vrot.lane.b32.xlu0 %v259, 116
          %v264 = vpop.permute.xlu0 %263
          %265 = vrot.lane.b32.xlu0 %v260, 116
          %v266 = vpop.permute.xlu0 %265
          %vm269 = vcmask 294048
          %270 = vst.msk [vmem:[#allocation2 + $0x8] sm:$0xff] %vm269, %v264
          %271 = vst.msk [vmem:[#allocation2 + $0x30] sm:$0xff] %vm269, %v266
          %v272 = vld [vmem:[%s190] sm:$0xff]
          %v273 = vld [vmem:[%s190 + $0x10] sm:$0xff]
          %276 = vrot.lane.b32.xlu0 %v272, 124
          %v277 = vpop.permute.xlu0 %276
          %278 = vrot.lane.b32.xlu0 %v273, 124
          %v279 = vpop.permute.xlu0 %278
          %vm282 = vcmask 490848
          %283 = vst.msk [vmem:[#allocation2 + $0x8] sm:$0xff] %vm282, %v277
          %284 = vst.msk [vmem:[#allocation2 + $0x30] sm:$0xff] %vm282, %v279
          %v285 = vld [vmem:[%s190] sm:$0xff]
          %v286 = vld [vmem:[%s190 + $0x10] sm:$0xff]
          %289 = vrot.lane.b32.xlu0 %v285, 4
          %v290 = vpop.permute.xlu0 %289
          %291 = vrot.lane.b32.xlu0 %v286, 4
          %v292 = vpop.permute.xlu0 %291
          %vm295 = vcmask 687648
          %296 = vst.msk [vmem:[#allocation2 + $0x8] sm:$0xff] %vm295, %v290
          %297 = vst.msk [vmem:[#allocation2 + $0x30] sm:$0xff] %vm295, %v292
          %v298 = vld [vmem:[%s190] sm:$0xff]
          %v299 = vld [vmem:[%s190 + $0x10] sm:$0xff]
          %302 = vrot.lane.b32.xlu0 %v298, 12
          %v303 = vpop.permute.xlu0 %302
          %304 = vrot.lane.b32.xlu0 %v299, 12
          %v305 = vpop.permute.xlu0 %304
          %vm308 = vcmask 884448
          %309 = vst.msk [vmem:[#allocation2 + $0x8] sm:$0xff] %vm308, %v303
          %310 = vst.msk [vmem:[#allocation2 + $0x30] sm:$0xff] %vm308, %v305
          %v311 = vld [vmem:[%s190] sm:$0xff]
          %v312 = vld [vmem:[%s190 + $0x10] sm:$0xff]
          %315 = vrot.lane.b32.xlu0 %v311, 20
          %v316 = vpop.permute.xlu0 %315
          %317 = vrot.lane.b32.xlu0 %v312, 20
          %v318 = vpop.permute.xlu0 %317
          %vm321 = vcmask 1048480
          %322 = vst.msk [vmem:[#allocation2 + $0x8] sm:$0xff] %vm321, %v316
          %vm323 = vcmask 31744
          %324 = vst.msk [vmem:[#allocation2 + $0x10] sm:$0xff] %vm323, %v316
          %325 = vst.msk [vmem:[#allocation2 + $0x30] sm:$0xff] %vm321, %v318
          %326 = vst.msk [vmem:[#allocation2 + $0x38] sm:$0xff] %vm323, %v318
          %v327 = vld [vmem:[%s190] sm:$0xff]
          %v328 = vld [vmem:[%s190 + $0x10] sm:$0xff]
          %331 = vrot.lane.b32.xlu0 %v327, 28
          %v332 = vpop.permute.xlu0 %331
          %333 = vrot.lane.b32.xlu0 %v328, 28
          %v334 = vpop.permute.xlu0 %333
          %vm337 = vcmask 228448
          %338 = vst.msk [vmem:[#allocation2 + $0x10] sm:$0xff] %vm337, %v332
          %339 = vst.msk [vmem:[#allocation2 + $0x38] sm:$0xff] %vm337, %v334
          %v340 = vld [vmem:[%s190 + $0x8] sm:$0xff]
          %v341 = vld [vmem:[%s190 + $0x18] sm:$0xff]
          %344 = vrot.lane.b32.xlu0 %v340, 36
          %v345 = vpop.permute.xlu0 %344
          %346 = vrot.lane.b32.xlu0 %v341, 36
          %v347 = vpop.permute.xlu0 %346
          %vm350 = vcmask 425248
          %351 = vst.msk [vmem:[#allocation2 + $0x10] sm:$0xff] %vm350, %v345
          %352 = vst.msk [vmem:[#allocation2 + $0x38] sm:$0xff] %vm350, %v347
          %v353 = vld [vmem:[%s190 + $0x8] sm:$0xff]
          %v354 = vld [vmem:[%s190 + $0x18] sm:$0xff]
          %357 = vrot.lane.b32.xlu0 %v353, 44
          %v358 = vpop.permute.xlu0 %357
          %359 = vrot.lane.b32.xlu0 %v354, 44
          %v360 = vpop.permute.xlu0 %359
          %vm363 = vcmask 622048
          %364 = vst.msk [vmem:[#allocation2 + $0x10] sm:$0xff] %vm363, %v358
          %365 = vst.msk [vmem:[#allocation2 + $0x38] sm:$0xff] %vm363, %v360
          %v366 = vld [vmem:[%s190 + $0x8] sm:$0xff]
          %v367 = vld [vmem:[%s190 + $0x18] sm:$0xff]
          %370 = vrot.lane.b32.xlu0 %v366, 52
          %v371 = vpop.permute.xlu0 %370
          %372 = vrot.lane.b32.xlu0 %v367, 52
          %v373 = vpop.permute.xlu0 %372
          %vm376 = vcmask 818848
          %377 = vst.msk [vmem:[#allocation2 + $0x10] sm:$0xff] %vm376, %v371
          %378 = vst.msk [vmem:[#allocation2 + $0x38] sm:$0xff] %vm376, %v373
          %v379 = vld [vmem:[%s190 + $0x8] sm:$0xff]
          %v380 = vld [vmem:[%s190 + $0x18] sm:$0xff]
          %383 = vrot.lane.b32.xlu0 %v379, 60
          %v384 = vpop.permute.xlu0 %383
          %385 = vrot.lane.b32.xlu0 %v380, 60
          %v386 = vpop.permute.xlu0 %385
          %vm389 = vcmask 1015648
          %390 = vst.msk [vmem:[#allocation2 + $0x10] sm:$0xff] %vm389, %v384
          %391 = vst.msk [vmem:[#allocation2 + $0x38] sm:$0xff] %vm389, %v386
          %v392 = vld [vmem:[%s190 + $0x8] sm:$0xff]
          %v393 = vld [vmem:[%s190 + $0x18] sm:$0xff]
          %396 = vrot.lane.b32.xlu0 %v392, 68
          %v397 = vpop.permute.xlu0 %396
          %398 = vrot.lane.b32.xlu0 %v393, 68
          %v399 = vpop.permute.xlu0 %398
          %vm402 = vcmask 162848
          %403 = vst.msk [vmem:[#allocation2 + $0x18] sm:$0xff] %vm402, %v397
          %404 = vst.msk [vmem:[#allocation2 + $0x40] sm:$0xff] %vm402, %v399
          %v405 = vld [vmem:[%s190 + $0x8] sm:$0xff]
          %v406 = vld [vmem:[%s190 + $0x18] sm:$0xff]
          %409 = vrot.lane.b32.xlu0 %v405, 76
          %v410 = vpop.permute.xlu0 %409
          %411 = vrot.lane.b32.xlu0 %v406, 76
          %v412 = vpop.permute.xlu0 %411
          %vm415 = vcmask 359648
          %416 = vst.msk [vmem:[#allocation2 + $0x18] sm:$0xff] %vm415, %v410
          %417 = vst.msk [vmem:[#allocation2 + $0x40] sm:$0xff] %vm415, %v412
          %v418 = vld [vmem:[%s190 + $0x8] sm:$0xff]
          %v419 = vld [vmem:[%s190 + $0x18] sm:$0xff]
          %422 = vrot.lane.b32.xlu0 %v418, 84
          %v423 = vpop.permute.xlu0 %422
          %424 = vrot.lane.b32.xlu0 %v419, 84
          %v425 = vpop.permute.xlu0 %424
          %vm428 = vcmask 556448
          %429 = vst.msk [vmem:[#allocation2 + $0x18] sm:$0xff] %vm428, %v423
          %430 = vst.msk [vmem:[#allocation2 + $0x40] sm:$0xff] %vm428, %v425
          %v431 = vld [vmem:[%s190 + $0x8] sm:$0xff]
          %v432 = vld [vmem:[%s190 + $0x18] sm:$0xff]
          %435 = vrot.lane.b32.xlu0 %v431, 92
          %v436 = vpop.permute.xlu0 %435
          %437 = vrot.lane.b32.xlu0 %v432, 92
          %v438 = vpop.permute.xlu0 %437
          %vm441 = vcmask 753248
          %442 = vst.msk [vmem:[#allocation2 + $0x18] sm:$0xff] %vm441, %v436
          %443 = vst.msk [vmem:[#allocation2 + $0x40] sm:$0xff] %vm441, %v438
          %v444 = vld [vmem:[#allocation2] sm:$0xff]
          %v445 = vld [vmem:[#allocation2 + $0x8] sm:$0xff]
          %v446 = vld [vmem:[#allocation2 + $0x10] sm:$0xff]
          %v447 = vld [vmem:[#allocation2 + $0x18] sm:$0xff]
          %v448 = vld [vmem:[#allocation2 + $0x20] sm:$0xff]
          %v449 = vld [vmem:[#allocation2 + $0x28] sm:$0xff]
          %v450 = vld [vmem:[#allocation2 + $0x30] sm:$0xff]
          %v451 = vld [vmem:[#allocation2 + $0x38] sm:$0xff]
          %v452 = vld [vmem:[#allocation2 + $0x40] sm:$0xff]
          %v453 = vld [vmem:[#allocation2 + $0x48] sm:$0xff]
          %464 = vrot.lane.b32.xlu0 %v444, 56
          %v465 = vpop.permute.xlu0 %464
          %466 = vrot.lane.b32.xlu0 %v445, 56
          %v467 = vpop.permute.xlu0 %466
          %468 = vrot.lane.b32.xlu0 %v446, 56
          %v469 = vpop.permute.xlu0 %468
          %470 = vrot.lane.b32.xlu0 %v447, 56
          %v471 = vpop.permute.xlu0 %470
          %472 = vrot.lane.b32.xlu0 %v448, 56
          %v473 = vpop.permute.xlu0 %472
          %474 = vrot.lane.b32.xlu0 %v449, 56
          %v475 = vpop.permute.xlu0 %474
          %476 = vrot.lane.b32.xlu0 %v450, 56
          %v477 = vpop.permute.xlu0 %476
          %478 = vrot.lane.b32.xlu0 %v451, 56
          %v479 = vpop.permute.xlu0 %478
          %480 = vrot.lane.b32.xlu0 %v452, 56
          %v481 = vpop.permute.xlu0 %480
          %482 = vrot.lane.b32.xlu0 %v453, 56
          %v483 = vpop.permute.xlu0 %482
          %vm484 = vcmask 457728
          %v485 = vsel %vm484, %v465, %v467
          %v486 = vsel %vm484, %v467, %v469
          %v487 = vsel %vm484, %v469, %v471
          %v488 = vsel %vm484, %v471, %v473
          %v489 = vsel %vm484, %v475, %v477
          %v490 = vsel %vm484, %v477, %v479
          %v491 = vsel %vm484, %v479, %v481
          %v492 = vsel %vm484, %v481, %v483
          %s503 = scalar_lea.vmem [#allocation2], 80
          %504 = vst [vmem:[%s503] sm:$0xff] %v485
          %505 = vst [vmem:[%s503 + $0x8] sm:$0xff] %v486
          %506 = vst [vmem:[%s503 + $0x10] sm:$0xff] %v487
          %507 = vst [vmem:[%s503 + $0x18] sm:$0xff] %v488
          %508 = vst.msk [vmem:[%s503 + $0x20] sm:$0xff] %vm484, %v473
          %509 = vst [vmem:[%s503 + $0x28] sm:$0xff] %v489
          %510 = vst [vmem:[%s503 + $0x30] sm:$0xff] %v490
          %511 = vst [vmem:[%s503 + $0x38] sm:$0xff] %v491
          %512 = vst [vmem:[%s503 + $0x40] sm:$0xff] %v492
          %513 = vst.msk [vmem:[%s503 + $0x48] sm:$0xff] %vm484, %v483
          %v514 = vld [vmem:[#allocation2 + $0x8] sm:$0xff]
          %v515 = vld [vmem:[#allocation2 + $0x10] sm:$0xff]
          %v516 = vld [vmem:[#allocation2 + $0x18] sm:$0xff]
          %v517 = vld [vmem:[#allocation2 + $0x20] sm:$0xff]
          %v518 = vld [vmem:[#allocation2 + $0x30] sm:$0xff]
          %v519 = vld [vmem:[#allocation2 + $0x38] sm:$0xff]
          %v520 = vld [vmem:[#allocation2 + $0x40] sm:$0xff]
          %v521 = vld [vmem:[#allocation2 + $0x48] sm:$0xff]
          %530 = vrot.lane.b32.xlu0 %v514, 112
          %v531 = vpop.permute.xlu0 %530
          %532 = vrot.lane.b32.xlu0 %v515, 112
          %v533 = vpop.permute.xlu0 %532
          %534 = vrot.lane.b32.xlu0 %v516, 112
          %v535 = vpop.permute.xlu0 %534
          %536 = vrot.lane.b32.xlu0 %v517, 112
          %v537 = vpop.permute.xlu0 %536
          %538 = vrot.lane.b32.xlu0 %v518, 112
          %v539 = vpop.permute.xlu0 %538
          %540 = vrot.lane.b32.xlu0 %v519, 112
          %v541 = vpop.permute.xlu0 %540
          %542 = vrot.lane.b32.xlu0 %v520, 112
          %v543 = vpop.permute.xlu0 %542
          %544 = vrot.lane.b32.xlu0 %v521, 112
          %v545 = vpop.permute.xlu0 %544
          %vm546 = vcmask 916480
          %v547 = vsel %vm546, %v531, %v533
          %v548 = vsel %vm546, %v533, %v535
          %v549 = vsel %vm546, %v535, %v537
          %v550 = vsel %vm546, %v539, %v541
          %v551 = vsel %vm546, %v541, %v543
          %v552 = vsel %vm546, %v543, %v545
          %s561 = scalar_lea.vmem [#allocation2], 160
          %562 = vst [vmem:[%s561] sm:$0xff] %v547
          %563 = vst [vmem:[%s561 + $0x8] sm:$0xff] %v548
          %564 = vst [vmem:[%s561 + $0x10] sm:$0xff] %v549
          %565 = vst.msk [vmem:[%s561 + $0x18] sm:$0xff] %vm546, %v537
          %566 = vst [vmem:[%s561 + $0x28] sm:$0xff] %v550
          %567 = vst [vmem:[%s561 + $0x30] sm:$0xff] %v551
          %568 = vst [vmem:[%s561 + $0x38] sm:$0xff] %v552
          %569 = vst.msk [vmem:[%s561 + $0x40] sm:$0xff] %vm546, %v545
          %570 = vst [vmem:[#allocation4] sm:$0xff] 0.0
          %571 = vst [vmem:[#allocation4 + $0x8] sm:$0xff] 0.0
          %572 = vst [vmem:[#allocation4 + $0x10] sm:$0xff] 0.0
          %573 = vst [vmem:[#allocation4 + $0x18] sm:$0xff] 0.0
          %574 = vst [vmem:[#allocation4 + $0x20] sm:$0xff] 0.0
          %575 = vst [vmem:[#allocation4 + $0x28] sm:$0xff] 0.0
          %576 = vst [vmem:[#allocation4 + $0x30] sm:$0xff] 0.0
          %577 = vst [vmem:[#allocation4 + $0x38] sm:$0xff] 0.0
          %578 = vst [vmem:[#allocation4 + $0x40] sm:$0xff] 0.0
          %579 = vst [vmem:[#allocation4 + $0x48] sm:$0xff] 0.0
          %580 = vst [vmem:[#allocation4 + $0x50] sm:$0xff] 0.0
          %581 = vst [vmem:[#allocation4 + $0x58] sm:$0xff] 0.0
          %582 = vst [vmem:[#allocation4 + $0x60] sm:$0xff] 0.0
          %583 = vst [vmem:[#allocation4 + $0x68] sm:$0xff] 0.0
          %584 = vst [vmem:[#allocation4 + $0x70] sm:$0xff] 0.0
          %585 = vst [vmem:[#allocation4 + $0x78] sm:$0xff] 0.0
          %586 = vst [vmem:[#allocation4 + $0x80] sm:$0xff] 0.0
          %587 = vst [vmem:[#allocation4 + $0x88] sm:$0xff] 0.0
          %588 = vst [vmem:[#allocation4 + $0x90] sm:$0xff] 0.0
          %589 = vst [vmem:[#allocation4 + $0x98] sm:$0xff] 0.0
          %590 = vst [vmem:[#allocation4 + $0xa0] sm:$0xff] 0.0
          %591 = vst [vmem:[#allocation4 + $0xa8] sm:$0xff] 0.0
          %592 = vst [vmem:[#allocation4 + $0xb0] sm:$0xff] 0.0
          %593 = vst [vmem:[#allocation4 + $0xb8] sm:$0xff] 0.0
        $region36: #{pyconv4_apply.1} parent=27 // pred_fallthru
          _
        %s594 = smul.u32 %s21, 10
        %s595 = smul.addr %s594, 8
        %s596 = scalar_lea.vmem [#allocation2], %s595
        %v597 = vld [vmem:[%s596] sm:$0xff]
        %v598 = vld [vmem:[%s596 + $0x8] sm:$0xff]
        %v599 = vld [vmem:[%s596 + $0x10] sm:$0xff]
        %v600 = vld [vmem:[%s596 + $0x18] sm:$0xff]
        %v601 = vld [vmem:[%s596 + $0x28] sm:$0xff]
        %v602 = vld [vmem:[%s596 + $0x30] sm:$0xff]
        %v603 = vld [vmem:[%s596 + $0x38] sm:$0xff]
        %v604 = vld [vmem:[%s596 + $0x40] sm:$0xff]
        %605 = vst [vmem:[#allocation3] sm:$0xff] %v597
        %606 = vst [vmem:[#allocation3 + $0x8] sm:$0xff] %v598
        %607 = vst [vmem:[#allocation3 + $0x10] sm:$0xff] %v599
        %608 = vst [vmem:[#allocation3 + $0x18] sm:$0xff] %v601
        %609 = vst [vmem:[#allocation3 + $0x20] sm:$0xff] %v602
        %610 = vst [vmem:[#allocation3 + $0x28] sm:$0xff] %v603
        %619 = vrot.lane.b32.xlu0 %v597, 127
        %v620 = vpop.permute.xlu0 %619
        %621 = vrot.lane.b32.xlu0 %v598, 127
        %v622 = vpop.permute.xlu0 %621
        %623 = vrot.lane.b32.xlu0 %v599, 127
        %v624 = vpop.permute.xlu0 %623
        %625 = vrot.lane.b32.xlu0 %v600, 127
        %v626 = vpop.permute.xlu0 %625
        %627 = vrot.lane.b32.xlu0 %v601, 127
        %v628 = vpop.permute.xlu0 %627
        %629 = vrot.lane.b32.xlu0 %v602, 127
        %v630 = vpop.permute.xlu0 %629
        %631 = vrot.lane.b32.xlu0 %v603, 127
        %v632 = vpop.permute.xlu0 %631
        %633 = vrot.lane.b32.xlu0 %v604, 127
        %v634 = vpop.permute.xlu0 %633
        %vm635 = vcmask 1039360
        %v636 = vsel %vm635, %v620, %v622
        %v637 = vsel %vm635, %v622, %v624
        %v638 = vsel %vm635, %v624, %v626
        %v639 = vsel %vm635, %v628, %v630
        %v640 = vsel %vm635, %v630, %v632
        %v641 = vsel %vm635, %v632, %v634
        %648 = vst [vmem:[#allocation3 + $0x30] sm:$0xff] %v636
        %649 = vst [vmem:[#allocation3 + $0x38] sm:$0xff] %v637
        %650 = vst [vmem:[#allocation3 + $0x40] sm:$0xff] %v638
        %651 = vst [vmem:[#allocation3 + $0x48] sm:$0xff] %v639
        %652 = vst [vmem:[#allocation3 + $0x50] sm:$0xff] %v640
        %653 = vst [vmem:[#allocation3 + $0x58] sm:$0xff] %v641
        %654 = vrot.lane.b32.xlu0 %v597, 126
        %v655 = vpop.permute.xlu0 %654
        %656 = vrot.lane.b32.xlu0 %v598, 126
        %v657 = vpop.permute.xlu0 %656
        %658 = vrot.lane.b32.xlu0 %v599, 126
        %v659 = vpop.permute.xlu0 %658
        %660 = vrot.lane.b32.xlu0 %v600, 126
        %v661 = vpop.permute.xlu0 %660
        %662 = vrot.lane.b32.xlu0 %v601, 126
        %v663 = vpop.permute.xlu0 %662
        %664 = vrot.lane.b32.xlu0 %v602, 126
        %v665 = vpop.permute.xlu0 %664
        %666 = vrot.lane.b32.xlu0 %v603, 126
        %v667 = vpop.permute.xlu0 %666
        %668 = vrot.lane.b32.xlu0 %v604, 126
        %v669 = vpop.permute.xlu0 %668
        %vm670 = vcmask 1031168
        %v671 = vsel %vm670, %v655, %v657
        %v672 = vsel %vm670, %v657, %v659
        %v673 = vsel %vm670, %v659, %v661
        %v674 = vsel %vm670, %v663, %v665
        %v675 = vsel %vm670, %v665, %v667
        %v676 = vsel %vm670, %v667, %v669
        %683 = vst [vmem:[#allocation3 + $0x60] sm:$0xff] %v671
        %684 = vst [vmem:[#allocation3 + $0x68] sm:$0xff] %v672
        %685 = vst [vmem:[#allocation3 + $0x70] sm:$0xff] %v673
        %686 = vst [vmem:[#allocation3 + $0x78] sm:$0xff] %v674
        %687 = vst [vmem:[#allocation3 + $0x80] sm:$0xff] %v675
        %688 = vst [vmem:[#allocation3 + $0x88] sm:$0xff] %v676
        %689 = vrot.lane.b32.xlu0 %v597, 125
        %v690 = vpop.permute.xlu0 %689
        %691 = vrot.lane.b32.xlu0 %v598, 125
        %v692 = vpop.permute.xlu0 %691
        %693 = vrot.lane.b32.xlu0 %v599, 125
        %v694 = vpop.permute.xlu0 %693
        %695 = vrot.lane.b32.xlu0 %v600, 125
        %v696 = vpop.permute.xlu0 %695
        %697 = vrot.lane.b32.xlu0 %v601, 125
        %v698 = vpop.permute.xlu0 %697
        %699 = vrot.lane.b32.xlu0 %v602, 125
        %v700 = vpop.permute.xlu0 %699
        %701 = vrot.lane.b32.xlu0 %v603, 125
        %v702 = vpop.permute.xlu0 %701
        %703 = vrot.lane.b32.xlu0 %v604, 125
        %v704 = vpop.permute.xlu0 %703
        %vm705 = vcmask 1022976
        %v706 = vsel %vm705, %v690, %v692
        %v707 = vsel %vm705, %v692, %v694
        %v708 = vsel %vm705, %v694, %v696
        %v709 = vsel %vm705, %v698, %v700
        %v710 = vsel %vm705, %v700, %v702
        %v711 = vsel %vm705, %v702, %v704
        %718 = vst [vmem:[#allocation3 + $0x90] sm:$0xff] %v706
        %719 = vst [vmem:[#allocation3 + $0x98] sm:$0xff] %v707
        %720 = vst [vmem:[#allocation3 + $0xa0] sm:$0xff] %v708
        %721 = vst [vmem:[#allocation3 + $0xa8] sm:$0xff] %v709
        %722 = vst [vmem:[#allocation3 + $0xb0] sm:$0xff] %v710
        %723 = vst [vmem:[#allocation3 + $0xb8] sm:$0xff] %v711
        %724 = vrot.lane.b32.xlu0 %v597, 124
        %v725 = vpop.permute.xlu0 %724
        %726 = vrot.lane.b32.xlu0 %v598, 124
        %v727 = vpop.permute.xlu0 %726
        %728 = vrot.lane.b32.xlu0 %v599, 124
        %v729 = vpop.permute.xlu0 %728
        %730 = vrot.lane.b32.xlu0 %v600, 124
        %v731 = vpop.permute.xlu0 %730
        %732 = vrot.lane.b32.xlu0 %v601, 124
        %v733 = vpop.permute.xlu0 %732
        %734 = vrot.lane.b32.xlu0 %v602, 124
        %v735 = vpop.permute.xlu0 %734
        %736 = vrot.lane.b32.xlu0 %v603, 124
        %v737 = vpop.permute.xlu0 %736
        %738 = vrot.lane.b32.xlu0 %v604, 124
        %v739 = vpop.permute.xlu0 %738
        %vm740 = vcmask 1014784
        %v741 = vsel %vm740, %v725, %v727
        %v742 = vsel %vm740, %v727, %v729
        %v743 = vsel %vm740, %v729, %v731
        %v744 = vsel %vm740, %v733, %v735
        %v745 = vsel %vm740, %v735, %v737
        %v746 = vsel %vm740, %v737, %v739
        %753 = vst [vmem:[#allocation3 + $0xc0] sm:$0xff] %v741
        %754 = vst [vmem:[#allocation3 + $0xc8] sm:$0xff] %v742
        %755 = vst [vmem:[#allocation3 + $0xd0] sm:$0xff] %v743
        %756 = vst [vmem:[#allocation3 + $0xd8] sm:$0xff] %v744
        %757 = vst [vmem:[#allocation3 + $0xe0] sm:$0xff] %v745
        %758 = vst [vmem:[#allocation3 + $0xe8] sm:$0xff] %v746
        %759 = vrot.lane.b32.xlu0 %v597, 123
        %v760 = vpop.permute.xlu0 %759
        %761 = vrot.lane.b32.xlu0 %v598, 123
        %v762 = vpop.permute.xlu0 %761
        %763 = vrot.lane.b32.xlu0 %v599, 123
        %v764 = vpop.permute.xlu0 %763
        %765 = vrot.lane.b32.xlu0 %v600, 123
        %v766 = vpop.permute.xlu0 %765
        %767 = vrot.lane.b32.xlu0 %v601, 123
        %v768 = vpop.permute.xlu0 %767
        %769 = vrot.lane.b32.xlu0 %v602, 123
        %v770 = vpop.permute.xlu0 %769
        %771 = vrot.lane.b32.xlu0 %v603, 123
        %v772 = vpop.permute.xlu0 %771
        %773 = vrot.lane.b32.xlu0 %v604, 123
        %v774 = vpop.permute.xlu0 %773
        %vm775 = vcmask 1006592
        %v776 = vsel %vm775, %v760, %v762
        %v777 = vsel %vm775, %v762, %v764
        %v778 = vsel %vm775, %v764, %v766
        %v779 = vsel %vm775, %v768, %v770
        %v780 = vsel %vm775, %v770, %v772
        %v781 = vsel %vm775, %v772, %v774
        %788 = vst [vmem:[#allocation3 + $0xf0] sm:$0xff] %v776
        %789 = vst [vmem:[#allocation3 + $0xf8] sm:$0xff] %v777
        %790 = vst [vmem:[#allocation3 + $0x100] sm:$0xff] %v778
        %791 = vst [vmem:[#allocation3 + $0x108] sm:$0xff] %v779
        %792 = vst [vmem:[#allocation3 + $0x110] sm:$0xff] %v780
        %793 = vst [vmem:[#allocation3 + $0x118] sm:$0xff] %v781
        %794 = vrot.lane.b32.xlu0 %v597, 122
        %v795 = vpop.permute.xlu0 %794
        %796 = vrot.lane.b32.xlu0 %v598, 122
        %v797 = vpop.permute.xlu0 %796
        %798 = vrot.lane.b32.xlu0 %v599, 122
        %v799 = vpop.permute.xlu0 %798
        %800 = vrot.lane.b32.xlu0 %v600, 122
        %v801 = vpop.permute.xlu0 %800
        %802 = vrot.lane.b32.xlu0 %v601, 122
        %v803 = vpop.permute.xlu0 %802
        %804 = vrot.lane.b32.xlu0 %v602, 122
        %v805 = vpop.permute.xlu0 %804
        %806 = vrot.lane.b32.xlu0 %v603, 122
        %v807 = vpop.permute.xlu0 %806
        %808 = vrot.lane.b32.xlu0 %v604, 122
        %v809 = vpop.permute.xlu0 %808
        %vm810 = vcmask 998400
        %v811 = vsel %vm810, %v795, %v797
        %v812 = vsel %vm810, %v797, %v799
        %v813 = vsel %vm810, %v799, %v801
        %v814 = vsel %vm810, %v803, %v805
        %v815 = vsel %vm810, %v805, %v807
        %v816 = vsel %vm810, %v807, %v809
        %823 = vst [vmem:[#allocation3 + $0x120] sm:$0xff] %v811
        %824 = vst [vmem:[#allocation3 + $0x128] sm:$0xff] %v812
        %825 = vst [vmem:[#allocation3 + $0x130] sm:$0xff] %v813
        %826 = vst [vmem:[#allocation3 + $0x138] sm:$0xff] %v814
        %827 = vst [vmem:[#allocation3 + $0x140] sm:$0xff] %v815
        %828 = vst [vmem:[#allocation3 + $0x148] sm:$0xff] %v816
        %829 = vrot.lane.b32.xlu0 %v597, 121
        %v830 = vpop.permute.xlu0 %829
        %831 = vrot.lane.b32.xlu0 %v598, 121
        %v832 = vpop.permute.xlu0 %831
        %833 = vrot.lane.b32.xlu0 %v599, 121
        %v834 = vpop.permute.xlu0 %833
        %835 = vrot.lane.b32.xlu0 %v600, 121
        %v836 = vpop.permute.xlu0 %835
        %837 = vrot.lane.b32.xlu0 %v601, 121
        %v838 = vpop.permute.xlu0 %837
        %839 = vrot.lane.b32.xlu0 %v602, 121
        %v840 = vpop.permute.xlu0 %839
        %841 = vrot.lane.b32.xlu0 %v603, 121
        %v842 = vpop.permute.xlu0 %841
        %843 = vrot.lane.b32.xlu0 %v604, 121
        %v844 = vpop.permute.xlu0 %843
        %vm845 = vcmask 990208
        %v846 = vsel %vm845, %v830, %v832
        %v847 = vsel %vm845, %v832, %v834
        %v848 = vsel %vm845, %v834, %v836
        %v849 = vsel %vm845, %v838, %v840
        %v850 = vsel %vm845, %v840, %v842
        %v851 = vsel %vm845, %v842, %v844
        %858 = vst [vmem:[#allocation3 + $0x150] sm:$0xff] %v846
        %859 = vst [vmem:[#allocation3 + $0x158] sm:$0xff] %v847
        %860 = vst [vmem:[#allocation3 + $0x160] sm:$0xff] %v848
        %861 = vst [vmem:[#allocation3 + $0x168] sm:$0xff] %v849
        %862 = vst [vmem:[#allocation3 + $0x170] sm:$0xff] %v850
        %863 = vst [vmem:[#allocation3 + $0x178] sm:$0xff] %v851
        %864 = vrot.lane.b32.xlu0 %v597, 120
        %v865 = vpop.permute.xlu0 %864
        %866 = vrot.lane.b32.xlu0 %v598, 120
        %v867 = vpop.permute.xlu0 %866
        %868 = vrot.lane.b32.xlu0 %v599, 120
        %v869 = vpop.permute.xlu0 %868
        %870 = vrot.lane.b32.xlu0 %v600, 120
        %v871 = vpop.permute.xlu0 %870
        %872 = vrot.lane.b32.xlu0 %v601, 120
        %v873 = vpop.permute.xlu0 %872
        %874 = vrot.lane.b32.xlu0 %v602, 120
        %v875 = vpop.permute.xlu0 %874
        %876 = vrot.lane.b32.xlu0 %v603, 120
        %v877 = vpop.permute.xlu0 %876
        %878 = vrot.lane.b32.xlu0 %v604, 120
        %v879 = vpop.permute.xlu0 %878
        %vm880 = vcmask 982016
        %v881 = vsel %vm880, %v865, %v867
        %v882 = vsel %vm880, %v867, %v869
        %v883 = vsel %vm880, %v869, %v871
        %v884 = vsel %vm880, %v873, %v875
        %v885 = vsel %vm880, %v875, %v877
        %v886 = vsel %vm880, %v877, %v879
        %893 = vst [vmem:[#allocation3 + $0x180] sm:$0xff] %v881
        %894 = vst [vmem:[#allocation3 + $0x188] sm:$0xff] %v882
        %895 = vst [vmem:[#allocation3 + $0x190] sm:$0xff] %v883
        %896 = vst [vmem:[#allocation3 + $0x198] sm:$0xff] %v884
        %897 = vst [vmem:[#allocation3 + $0x1a0] sm:$0xff] %v885
        %898 = vst [vmem:[#allocation3 + $0x1a8] sm:$0xff] %v886
        %899 = vrot.lane.b32.xlu0 %v597, 104
        %v900 = vpop.permute.xlu0 %899
        %901 = vrot.lane.b32.xlu0 %v598, 104
        %v902 = vpop.permute.xlu0 %901
        %903 = vrot.lane.b32.xlu0 %v599, 104
        %v904 = vpop.permute.xlu0 %903
        %905 = vrot.lane.b32.xlu0 %v600, 104
        %v906 = vpop.permute.xlu0 %905
        %907 = vrot.lane.b32.xlu0 %v601, 104
        %v908 = vpop.permute.xlu0 %907
        %909 = vrot.lane.b32.xlu0 %v602, 104
        %v910 = vpop.permute.xlu0 %909
        %911 = vrot.lane.b32.xlu0 %v603, 104
        %v912 = vpop.permute.xlu0 %911
        %913 = vrot.lane.b32.xlu0 %v604, 104
        %v914 = vpop.permute.xlu0 %913
        %vm915 = vcmask 850944
        %v916 = vsel %vm915, %v900, %v902
        %v917 = vsel %vm915, %v902, %v904
        %v918 = vsel %vm915, %v904, %v906
        %v919 = vsel %vm915, %v908, %v910
        %v920 = vsel %vm915, %v910, %v912
        %v921 = vsel %vm915, %v912, %v914
        %928 = vst [vmem:[#allocation3 + $0x1b0] sm:$0xff] %v916
        %929 = vst [vmem:[#allocation3 + $0x1b8] sm:$0xff] %v917
        %930 = vst [vmem:[#allocation3 + $0x1c0] sm:$0xff] %v918
        %931 = vst [vmem:[#allocation3 + $0x1c8] sm:$0xff] %v919
        %932 = vst [vmem:[#allocation3 + $0x1d0] sm:$0xff] %v920
        %933 = vst [vmem:[#allocation3 + $0x1d8] sm:$0xff] %v921
        %934 = vrot.lane.b32.xlu0 %v597, 103
        %v935 = vpop.permute.xlu0 %934
        %936 = vrot.lane.b32.xlu0 %v598, 103
        %v937 = vpop.permute.xlu0 %936
        %938 = vrot.lane.b32.xlu0 %v599, 103
        %v939 = vpop.permute.xlu0 %938
        %940 = vrot.lane.b32.xlu0 %v600, 103
        %v941 = vpop.permute.xlu0 %940
        %942 = vrot.lane.b32.xlu0 %v601, 103
        %v943 = vpop.permute.xlu0 %942
        %944 = vrot.lane.b32.xlu0 %v602, 103
        %v945 = vpop.permute.xlu0 %944
        %946 = vrot.lane.b32.xlu0 %v603, 103
        %v947 = vpop.permute.xlu0 %946
        %948 = vrot.lane.b32.xlu0 %v604, 103
        %v949 = vpop.permute.xlu0 %948
        %vm950 = vcmask 842752
        %v951 = vsel %vm950, %v935, %v937
        %v952 = vsel %vm950, %v937, %v939
        %v953 = vsel %vm950, %v939, %v941
        %v954 = vsel %vm950, %v943, %v945
        %v955 = vsel %vm950, %v945, %v947
        %v956 = vsel %vm950, %v947, %v949
        %963 = vst [vmem:[#allocation3 + $0x1e0] sm:$0xff] %v951
        %964 = vst [vmem:[#allocation3 + $0x1e8] sm:$0xff] %v952
        %965 = vst [vmem:[#allocation3 + $0x1f0] sm:$0xff] %v953
        %966 = vst [vmem:[#allocation3 + $0x1f8] sm:$0xff] %v954
        %967 = vst [vmem:[#allocation3 + $0x200] sm:$0xff] %v955
        %968 = vst [vmem:[#allocation3 + $0x208] sm:$0xff] %v956
        %969 = vrot.lane.b32.xlu0 %v597, 102
        %v970 = vpop.permute.xlu0 %969
        %971 = vrot.lane.b32.xlu0 %v598, 102
        %v972 = vpop.permute.xlu0 %971
        %973 = vrot.lane.b32.xlu0 %v599, 102
        %v974 = vpop.permute.xlu0 %973
        %975 = vrot.lane.b32.xlu0 %v600, 102
        %v976 = vpop.permute.xlu0 %975
        %977 = vrot.lane.b32.xlu0 %v601, 102
        %v978 = vpop.permute.xlu0 %977
        %979 = vrot.lane.b32.xlu0 %v602, 102
        %v980 = vpop.permute.xlu0 %979
        %981 = vrot.lane.b32.xlu0 %v603, 102
        %v982 = vpop.permute.xlu0 %981
        %983 = vrot.lane.b32.xlu0 %v604, 102
        %v984 = vpop.permute.xlu0 %983
        %vm985 = vcmask 834560
        %v986 = vsel %vm985, %v970, %v972
        %v987 = vsel %vm985, %v972, %v974
        %v988 = vsel %vm985, %v974, %v976
        %v989 = vsel %vm985, %v978, %v980
        %v990 = vsel %vm985, %v980, %v982
        %v991 = vsel %vm985, %v982, %v984
        %998 = vst [vmem:[#allocation3 + $0x210] sm:$0xff] %v986
        %999 = vst [vmem:[#allocation3 + $0x218] sm:$0xff] %v987
        %1000 = vst [vmem:[#allocation3 + $0x220] sm:$0xff] %v988
        %1001 = vst [vmem:[#allocation3 + $0x228] sm:$0xff] %v989
        %1002 = vst [vmem:[#allocation3 + $0x230] sm:$0xff] %v990
        %1003 = vst [vmem:[#allocation3 + $0x238] sm:$0xff] %v991
        %1004 = vrot.lane.b32.xlu0 %v597, 101
        %v1005 = vpop.permute.xlu0 %1004
        %1006 = vrot.lane.b32.xlu0 %v598, 101
        %v1007 = vpop.permute.xlu0 %1006
        %1008 = vrot.lane.b32.xlu0 %v599, 101
        %v1009 = vpop.permute.xlu0 %1008
        %1010 = vrot.lane.b32.xlu0 %v600, 101
        %v1011 = vpop.permute.xlu0 %1010
        %1012 = vrot.lane.b32.xlu0 %v601, 101
        %v1013 = vpop.permute.xlu0 %1012
        %1014 = vrot.lane.b32.xlu0 %v602, 101
        %v1015 = vpop.permute.xlu0 %1014
        %1016 = vrot.lane.b32.xlu0 %v603, 101
        %v1017 = vpop.permute.xlu0 %1016
        %1018 = vrot.lane.b32.xlu0 %v604, 101
        %v1019 = vpop.permute.xlu0 %1018
        %vm1020 = vcmask 826368
        %v1021 = vsel %vm1020, %v1005, %v1007
        %v1022 = vsel %vm1020, %v1007, %v1009
        %v1023 = vsel %vm1020, %v1009, %v1011
        %v1024 = vsel %vm1020, %v1013, %v1015
        %v1025 = vsel %vm1020, %v1015, %v1017
        %v1026 = vsel %vm1020, %v1017, %v1019
        %1033 = vst [vmem:[#allocation3 + $0x240] sm:$0xff] %v1021
        %1034 = vst [vmem:[#allocation3 + $0x248] sm:$0xff] %v1022
        %1035 = vst [vmem:[#allocation3 + $0x250] sm:$0xff] %v1023
        %1036 = vst [vmem:[#allocation3 + $0x258] sm:$0xff] %v1024
        %1037 = vst [vmem:[#allocation3 + $0x260] sm:$0xff] %v1025
        %1038 = vst [vmem:[#allocation3 + $0x268] sm:$0xff] %v1026
        %1039 = vrot.lane.b32.xlu0 %v597, 100
        %v1040 = vpop.permute.xlu0 %1039
        %1041 = vrot.lane.b32.xlu0 %v598, 100
        %v1042 = vpop.permute.xlu0 %1041
        %1043 = vrot.lane.b32.xlu0 %v599, 100
        %v1044 = vpop.permute.xlu0 %1043
        %1045 = vrot.lane.b32.xlu0 %v600, 100
        %v1046 = vpop.permute.xlu0 %1045
        %1047 = vrot.lane.b32.xlu0 %v601, 100
        %v1048 = vpop.permute.xlu0 %1047
        %1049 = vrot.lane.b32.xlu0 %v602, 100
        %v1050 = vpop.permute.xlu0 %1049
        %1051 = vrot.lane.b32.xlu0 %v603, 100
        %v1052 = vpop.permute.xlu0 %1051
        %1053 = vrot.lane.b32.xlu0 %v604, 100
        %v1054 = vpop.permute.xlu0 %1053
        %vm1055 = vcmask 818176
        %v1056 = vsel %vm1055, %v1040, %v1042
        %v1057 = vsel %vm1055, %v1042, %v1044
        %v1058 = vsel %vm1055, %v1044, %v1046
        %v1059 = vsel %vm1055, %v1048, %v1050
        %v1060 = vsel %vm1055, %v1050, %v1052
        %v1061 = vsel %vm1055, %v1052, %v1054
        %1068 = vst [vmem:[#allocation3 + $0x270] sm:$0xff] %v1056
        %1069 = vst [vmem:[#allocation3 + $0x278] sm:$0xff] %v1057
        %1070 = vst [vmem:[#allocation3 + $0x280] sm:$0xff] %v1058
        %1071 = vst [vmem:[#allocation3 + $0x288] sm:$0xff] %v1059
        %1072 = vst [vmem:[#allocation3 + $0x290] sm:$0xff] %v1060
        %1073 = vst [vmem:[#allocation3 + $0x298] sm:$0xff] %v1061
        %1074 = vrot.lane.b32.xlu0 %v597, 99
        %v1075 = vpop.permute.xlu0 %1074
        %1076 = vrot.lane.b32.xlu0 %v598, 99
        %v1077 = vpop.permute.xlu0 %1076
        %1078 = vrot.lane.b32.xlu0 %v599, 99
        %v1079 = vpop.permute.xlu0 %1078
        %1080 = vrot.lane.b32.xlu0 %v600, 99
        %v1081 = vpop.permute.xlu0 %1080
        %1082 = vrot.lane.b32.xlu0 %v601, 99
        %v1083 = vpop.permute.xlu0 %1082
        %1084 = vrot.lane.b32.xlu0 %v602, 99
        %v1085 = vpop.permute.xlu0 %1084
        %1086 = vrot.lane.b32.xlu0 %v603, 99
        %v1087 = vpop.permute.xlu0 %1086
        %1088 = vrot.lane.b32.xlu0 %v604, 99
        %v1089 = vpop.permute.xlu0 %1088
        %vm1090 = vcmask 809984
        %v1091 = vsel %vm1090, %v1075, %v1077
        %v1092 = vsel %vm1090, %v1077, %v1079
        %v1093 = vsel %vm1090, %v1079, %v1081
        %v1094 = vsel %vm1090, %v1083, %v1085
        %v1095 = vsel %vm1090, %v1085, %v1087
        %v1096 = vsel %vm1090, %v1087, %v1089
        %1103 = vst [vmem:[#allocation3 + $0x2a0] sm:$0xff] %v1091
        %1104 = vst [vmem:[#allocation3 + $0x2a8] sm:$0xff] %v1092
        %1105 = vst [vmem:[#allocation3 + $0x2b0] sm:$0xff] %v1093
        %1106 = vst [vmem:[#allocation3 + $0x2b8] sm:$0xff] %v1094
        %1107 = vst [vmem:[#allocation3 + $0x2c0] sm:$0xff] %v1095
        %1108 = vst [vmem:[#allocation3 + $0x2c8] sm:$0xff] %v1096
        %1109 = vrot.lane.b32.xlu0 %v597, 98
        %v1110 = vpop.permute.xlu0 %1109
        %1111 = vrot.lane.b32.xlu0 %v598, 98
        %v1112 = vpop.permute.xlu0 %1111
        %1113 = vrot.lane.b32.xlu0 %v599, 98
        %v1114 = vpop.permute.xlu0 %1113
        %1115 = vrot.lane.b32.xlu0 %v600, 98
        %v1116 = vpop.permute.xlu0 %1115
        %1117 = vrot.lane.b32.xlu0 %v601, 98
        %v1118 = vpop.permute.xlu0 %1117
        %1119 = vrot.lane.b32.xlu0 %v602, 98
        %v1120 = vpop.permute.xlu0 %1119
        %1121 = vrot.lane.b32.xlu0 %v603, 98
        %v1122 = vpop.permute.xlu0 %1121
        %1123 = vrot.lane.b32.xlu0 %v604, 98
        %v1124 = vpop.permute.xlu0 %1123
        %vm1125 = vcmask 801792
        %v1126 = vsel %vm1125, %v1110, %v1112
        %v1127 = vsel %vm1125, %v1112, %v1114
        %v1128 = vsel %vm1125, %v1114, %v1116
        %v1129 = vsel %vm1125, %v1118, %v1120
        %v1130 = vsel %vm1125, %v1120, %v1122
        %v1131 = vsel %vm1125, %v1122, %v1124
        %1138 = vst [vmem:[#allocation3 + $0x2d0] sm:$0xff] %v1126
        %1139 = vst [vmem:[#allocation3 + $0x2d8] sm:$0xff] %v1127
        %1140 = vst [vmem:[#allocation3 + $0x2e0] sm:$0xff] %v1128
        %1141 = vst [vmem:[#allocation3 + $0x2e8] sm:$0xff] %v1129
        %1142 = vst [vmem:[#allocation3 + $0x2f0] sm:$0xff] %v1130
        %1143 = vst [vmem:[#allocation3 + $0x2f8] sm:$0xff] %v1131
        %1144 = vrot.lane.b32.xlu0 %v597, 97
        %v1145 = vpop.permute.xlu0 %1144
        %1146 = vrot.lane.b32.xlu0 %v598, 97
        %v1147 = vpop.permute.xlu0 %1146
        %1148 = vrot.lane.b32.xlu0 %v599, 97
        %v1149 = vpop.permute.xlu0 %1148
        %1150 = vrot.lane.b32.xlu0 %v600, 97
        %v1151 = vpop.permute.xlu0 %1150
        %1152 = vrot.lane.b32.xlu0 %v601, 97
        %v1153 = vpop.permute.xlu0 %1152
        %1154 = vrot.lane.b32.xlu0 %v602, 97
        %v1155 = vpop.permute.xlu0 %1154
        %1156 = vrot.lane.b32.xlu0 %v603, 97
        %v1157 = vpop.permute.xlu0 %1156
        %1158 = vrot.lane.b32.xlu0 %v604, 97
        %v1159 = vpop.permute.xlu0 %1158
        %vm1160 = vcmask 793600
        %v1161 = vsel %vm1160, %v1145, %v1147
        %v1162 = vsel %vm1160, %v1147, %v1149
        %v1163 = vsel %vm1160, %v1149, %v1151
        %v1164 = vsel %vm1160, %v1153, %v1155
        %v1165 = vsel %vm1160, %v1155, %v1157
        %v1166 = vsel %vm1160, %v1157, %v1159
        %1173 = vst [vmem:[#allocation3 + $0x300] sm:$0xff] %v1161
        %1174 = vst [vmem:[#allocation3 + $0x308] sm:$0xff] %v1162
        %1175 = vst [vmem:[#allocation3 + $0x310] sm:$0xff] %v1163
        %1176 = vst [vmem:[#allocation3 + $0x318] sm:$0xff] %v1164
        %1177 = vst [vmem:[#allocation3 + $0x320] sm:$0xff] %v1165
        %1178 = vst [vmem:[#allocation3 + $0x328] sm:$0xff] %v1166
        %1179 = vrot.lane.b32.xlu0 %v597, 96
        %v1180 = vpop.permute.xlu0 %1179
        %1181 = vrot.lane.b32.xlu0 %v598, 96
        %v1182 = vpop.permute.xlu0 %1181
        %1183 = vrot.lane.b32.xlu0 %v599, 96
        %v1184 = vpop.permute.xlu0 %1183
        %1185 = vrot.lane.b32.xlu0 %v600, 96
        %v1186 = vpop.permute.xlu0 %1185
        %1187 = vrot.lane.b32.xlu0 %v601, 96
        %v1188 = vpop.permute.xlu0 %1187
        %1189 = vrot.lane.b32.xlu0 %v602, 96
        %v1190 = vpop.permute.xlu0 %1189
        %1191 = vrot.lane.b32.xlu0 %v603, 96
        %v1192 = vpop.permute.xlu0 %1191
        %1193 = vrot.lane.b32.xlu0 %v604, 96
        %v1194 = vpop.permute.xlu0 %1193
        %vm1195 = vcmask 785408
        %v1196 = vsel %vm1195, %v1180, %v1182
        %v1197 = vsel %vm1195, %v1182, %v1184
        %v1198 = vsel %vm1195, %v1184, %v1186
        %v1199 = vsel %vm1195, %v1188, %v1190
        %v1200 = vsel %vm1195, %v1190, %v1192
        %v1201 = vsel %vm1195, %v1192, %v1194
        %1208 = vst [vmem:[#allocation3 + $0x330] sm:$0xff] %v1196
        %1209 = vst [vmem:[#allocation3 + $0x338] sm:$0xff] %v1197
        %1210 = vst [vmem:[#allocation3 + $0x340] sm:$0xff] %v1198
        %1211 = vst [vmem:[#allocation3 + $0x348] sm:$0xff] %v1199
        %1212 = vst [vmem:[#allocation3 + $0x350] sm:$0xff] %v1200
        %1213 = vst [vmem:[#allocation3 + $0x358] sm:$0xff] %v1201
        %1214 = vrot.lane.b32.xlu0 %v597, 80
        %v1215 = vpop.permute.xlu0 %1214
        %1216 = vrot.lane.b32.xlu0 %v598, 80
        %v1217 = vpop.permute.xlu0 %1216
        %1218 = vrot.lane.b32.xlu0 %v599, 80
        %v1219 = vpop.permute.xlu0 %1218
        %1220 = vrot.lane.b32.xlu0 %v600, 80
        %v1221 = vpop.permute.xlu0 %1220
        %1222 = vrot.lane.b32.xlu0 %v601, 80
        %v1223 = vpop.permute.xlu0 %1222
        %1224 = vrot.lane.b32.xlu0 %v602, 80
        %v1225 = vpop.permute.xlu0 %1224
        %1226 = vrot.lane.b32.xlu0 %v603, 80
        %v1227 = vpop.permute.xlu0 %1226
        %1228 = vrot.lane.b32.xlu0 %v604, 80
        %v1229 = vpop.permute.xlu0 %1228
        %vm1230 = vcmask 654336
        %v1231 = vsel %vm1230, %v1215, %v1217
        %v1232 = vsel %vm1230, %v1217, %v1219
        %v1233 = vsel %vm1230, %v1219, %v1221
        %v1234 = vsel %vm1230, %v1223, %v1225
        %v1235 = vsel %vm1230, %v1225, %v1227
        %v1236 = vsel %vm1230, %v1227, %v1229
        %1243 = vst [vmem:[#allocation3 + $0x360] sm:$0xff] %v1231
        %1244 = vst [vmem:[#allocation3 + $0x368] sm:$0xff] %v1232
        %1245 = vst [vmem:[#allocation3 + $0x370] sm:$0xff] %v1233
        %1246 = vst [vmem:[#allocation3 + $0x378] sm:$0xff] %v1234
        %1247 = vst [vmem:[#allocation3 + $0x380] sm:$0xff] %v1235
        %1248 = vst [vmem:[#allocation3 + $0x388] sm:$0xff] %v1236
        %1249 = vrot.lane.b32.xlu0 %v597, 79
        %v1250 = vpop.permute.xlu0 %1249
        %1251 = vrot.lane.b32.xlu0 %v598, 79
        %v1252 = vpop.permute.xlu0 %1251
        %1253 = vrot.lane.b32.xlu0 %v599, 79
        %v1254 = vpop.permute.xlu0 %1253
        %1255 = vrot.lane.b32.xlu0 %v600, 79
        %v1256 = vpop.permute.xlu0 %1255
        %1257 = vrot.lane.b32.xlu0 %v601, 79
        %v1258 = vpop.permute.xlu0 %1257
        %1259 = vrot.lane.b32.xlu0 %v602, 79
        %v1260 = vpop.permute.xlu0 %1259
        %1261 = vrot.lane.b32.xlu0 %v603, 79
        %v1262 = vpop.permute.xlu0 %1261
        %1263 = vrot.lane.b32.xlu0 %v604, 79
        %v1264 = vpop.permute.xlu0 %1263
        %vm1265 = vcmask 646144
        %v1266 = vsel %vm1265, %v1250, %v1252
        %v1267 = vsel %vm1265, %v1252, %v1254
        %v1268 = vsel %vm1265, %v1254, %v1256
        %v1269 = vsel %vm1265, %v1258, %v1260
        %v1270 = vsel %vm1265, %v1260, %v1262
        %v1271 = vsel %vm1265, %v1262, %v1264
        %1278 = vst [vmem:[#allocation3 + $0x390] sm:$0xff] %v1266
        %1279 = vst [vmem:[#allocation3 + $0x398] sm:$0xff] %v1267
        %1280 = vst [vmem:[#allocation3 + $0x3a0] sm:$0xff] %v1268
        %1281 = vst [vmem:[#allocation3 + $0x3a8] sm:$0xff] %v1269
        %1282 = vst [vmem:[#allocation3 + $0x3b0] sm:$0xff] %v1270
        %1283 = vst [vmem:[#allocation3 + $0x3b8] sm:$0xff] %v1271
        %1284 = vrot.lane.b32.xlu0 %v597, 78
        %v1285 = vpop.permute.xlu0 %1284
        %1286 = vrot.lane.b32.xlu0 %v598, 78
        %v1287 = vpop.permute.xlu0 %1286
        %1288 = vrot.lane.b32.xlu0 %v599, 78
        %v1289 = vpop.permute.xlu0 %1288
        %1290 = vrot.lane.b32.xlu0 %v600, 78
        %v1291 = vpop.permute.xlu0 %1290
        %1292 = vrot.lane.b32.xlu0 %v601, 78
        %v1293 = vpop.permute.xlu0 %1292
        %1294 = vrot.lane.b32.xlu0 %v602, 78
        %v1295 = vpop.permute.xlu0 %1294
        %1296 = vrot.lane.b32.xlu0 %v603, 78
        %v1297 = vpop.permute.xlu0 %1296
        %1298 = vrot.lane.b32.xlu0 %v604, 78
        %v1299 = vpop.permute.xlu0 %1298
        %vm1300 = vcmask 637952
        %v1301 = vsel %vm1300, %v1285, %v1287
        %v1302 = vsel %vm1300, %v1287, %v1289
        %v1303 = vsel %vm1300, %v1289, %v1291
        %v1304 = vsel %vm1300, %v1293, %v1295
        %v1305 = vsel %vm1300, %v1295, %v1297
        %v1306 = vsel %vm1300, %v1297, %v1299
        %1313 = vst [vmem:[#allocation3 + $0x3c0] sm:$0xff] %v1301
        %1314 = vst [vmem:[#allocation3 + $0x3c8] sm:$0xff] %v1302
        %1315 = vst [vmem:[#allocation3 + $0x3d0] sm:$0xff] %v1303
        %1316 = vst [vmem:[#allocation3 + $0x3d8] sm:$0xff] %v1304
        %1317 = vst [vmem:[#allocation3 + $0x3e0] sm:$0xff] %v1305
        %1318 = vst [vmem:[#allocation3 + $0x3e8] sm:$0xff] %v1306
        %1319 = vrot.lane.b32.xlu0 %v597, 77
        %v1320 = vpop.permute.xlu0 %1319
        %1321 = vrot.lane.b32.xlu0 %v598, 77
        %v1322 = vpop.permute.xlu0 %1321
        %1323 = vrot.lane.b32.xlu0 %v599, 77
        %v1324 = vpop.permute.xlu0 %1323
        %1325 = vrot.lane.b32.xlu0 %v600, 77
        %v1326 = vpop.permute.xlu0 %1325
        %1327 = vrot.lane.b32.xlu0 %v601, 77
        %v1328 = vpop.permute.xlu0 %1327
        %1329 = vrot.lane.b32.xlu0 %v602, 77
        %v1330 = vpop.permute.xlu0 %1329
        %1331 = vrot.lane.b32.xlu0 %v603, 77
        %v1332 = vpop.permute.xlu0 %1331
        %1333 = vrot.lane.b32.xlu0 %v604, 77
        %v1334 = vpop.permute.xlu0 %1333
        %vm1335 = vcmask 629760
        %v1336 = vsel %vm1335, %v1320, %v1322
        %v1337 = vsel %vm1335, %v1322, %v1324
        %v1338 = vsel %vm1335, %v1324, %v1326
        %v1339 = vsel %vm1335, %v1328, %v1330
        %v1340 = vsel %vm1335, %v1330, %v1332
        %v1341 = vsel %vm1335, %v1332, %v1334
        %1348 = vst [vmem:[#allocation3 + $0x3f0] sm:$0xff] %v1336
        %1349 = vst [vmem:[#allocation3 + $0x3f8] sm:$0xff] %v1337
        %1350 = vst [vmem:[#allocation3 + $0x400] sm:$0xff] %v1338
        %1351 = vst [vmem:[#allocation3 + $0x408] sm:$0xff] %v1339
        %1352 = vst [vmem:[#allocation3 + $0x410] sm:$0xff] %v1340
        %1353 = vst [vmem:[#allocation3 + $0x418] sm:$0xff] %v1341
        %1354 = vrot.lane.b32.xlu0 %v597, 76
        %v1355 = vpop.permute.xlu0 %1354
        %1356 = vrot.lane.b32.xlu0 %v598, 76
        %v1357 = vpop.permute.xlu0 %1356
        %1358 = vrot.lane.b32.xlu0 %v599, 76
        %v1359 = vpop.permute.xlu0 %1358
        %1360 = vrot.lane.b32.xlu0 %v600, 76
        %v1361 = vpop.permute.xlu0 %1360
        %1362 = vrot.lane.b32.xlu0 %v601, 76
        %v1363 = vpop.permute.xlu0 %1362
        %1364 = vrot.lane.b32.xlu0 %v602, 76
        %v1365 = vpop.permute.xlu0 %1364
        %1366 = vrot.lane.b32.xlu0 %v603, 76
        %v1367 = vpop.permute.xlu0 %1366
        %1368 = vrot.lane.b32.xlu0 %v604, 76
        %v1369 = vpop.permute.xlu0 %1368
        %vm1370 = vcmask 621568
        %v1371 = vsel %vm1370, %v1355, %v1357
        %v1372 = vsel %vm1370, %v1357, %v1359
        %v1373 = vsel %vm1370, %v1359, %v1361
        %v1374 = vsel %vm1370, %v1363, %v1365
        %v1375 = vsel %vm1370, %v1365, %v1367
        %v1376 = vsel %vm1370, %v1367, %v1369
        %1383 = vst [vmem:[#allocation3 + $0x420] sm:$0xff] %v1371
        %1384 = vst [vmem:[#allocation3 + $0x428] sm:$0xff] %v1372
        %1385 = vst [vmem:[#allocation3 + $0x430] sm:$0xff] %v1373
        %1386 = vst [vmem:[#allocation3 + $0x438] sm:$0xff] %v1374
        %1387 = vst [vmem:[#allocation3 + $0x440] sm:$0xff] %v1375
        %1388 = vst [vmem:[#allocation3 + $0x448] sm:$0xff] %v1376
        %1389 = vrot.lane.b32.xlu0 %v597, 75
        %v1390 = vpop.permute.xlu0 %1389
        %1391 = vrot.lane.b32.xlu0 %v598, 75
        %v1392 = vpop.permute.xlu0 %1391
        %1393 = vrot.lane.b32.xlu0 %v599, 75
        %v1394 = vpop.permute.xlu0 %1393
        %1395 = vrot.lane.b32.xlu0 %v600, 75
        %v1396 = vpop.permute.xlu0 %1395
        %1397 = vrot.lane.b32.xlu0 %v601, 75
        %v1398 = vpop.permute.xlu0 %1397
        %1399 = vrot.lane.b32.xlu0 %v602, 75
        %v1400 = vpop.permute.xlu0 %1399
        %1401 = vrot.lane.b32.xlu0 %v603, 75
        %v1402 = vpop.permute.xlu0 %1401
        %1403 = vrot.lane.b32.xlu0 %v604, 75
        %v1404 = vpop.permute.xlu0 %1403
        %vm1405 = vcmask 613376
        %v1406 = vsel %vm1405, %v1390, %v1392
        %v1407 = vsel %vm1405, %v1392, %v1394
        %v1408 = vsel %vm1405, %v1394, %v1396
        %v1409 = vsel %vm1405, %v1398, %v1400
        %v1410 = vsel %vm1405, %v1400, %v1402
        %v1411 = vsel %vm1405, %v1402, %v1404
        %1418 = vst [vmem:[#allocation3 + $0x450] sm:$0xff] %v1406
        %1419 = vst [vmem:[#allocation3 + $0x458] sm:$0xff] %v1407
        %1420 = vst [vmem:[#allocation3 + $0x460] sm:$0xff] %v1408
        %1421 = vst [vmem:[#allocation3 + $0x468] sm:$0xff] %v1409
        %1422 = vst [vmem:[#allocation3 + $0x470] sm:$0xff] %v1410
        %1423 = vst [vmem:[#allocation3 + $0x478] sm:$0xff] %v1411
        %1424 = vrot.lane.b32.xlu0 %v597, 74
        %v1425 = vpop.permute.xlu0 %1424
        %1426 = vrot.lane.b32.xlu0 %v598, 74
        %v1427 = vpop.permute.xlu0 %1426
        %1428 = vrot.lane.b32.xlu0 %v599, 74
        %v1429 = vpop.permute.xlu0 %1428
        %1430 = vrot.lane.b32.xlu0 %v600, 74
        %v1431 = vpop.permute.xlu0 %1430
        %1432 = vrot.lane.b32.xlu0 %v601, 74
        %v1433 = vpop.permute.xlu0 %1432
        %1434 = vrot.lane.b32.xlu0 %v602, 74
        %v1435 = vpop.permute.xlu0 %1434
        %1436 = vrot.lane.b32.xlu0 %v603, 74
        %v1437 = vpop.permute.xlu0 %1436
        %1438 = vrot.lane.b32.xlu0 %v604, 74
        %v1439 = vpop.permute.xlu0 %1438
        %vm1440 = vcmask 605184
        %v1441 = vsel %vm1440, %v1425, %v1427
        %v1442 = vsel %vm1440, %v1427, %v1429
        %v1443 = vsel %vm1440, %v1429, %v1431
        %v1444 = vsel %vm1440, %v1433, %v1435
        %v1445 = vsel %vm1440, %v1435, %v1437
        %v1446 = vsel %vm1440, %v1437, %v1439
        %1453 = vst [vmem:[#allocation3 + $0x480] sm:$0xff] %v1441
        %1454 = vst [vmem:[#allocation3 + $0x488] sm:$0xff] %v1442
        %1455 = vst [vmem:[#allocation3 + $0x490] sm:$0xff] %v1443
        %1456 = vst [vmem:[#allocation3 + $0x498] sm:$0xff] %v1444
        %1457 = vst [vmem:[#allocation3 + $0x4a0] sm:$0xff] %v1445
        %1458 = vst [vmem:[#allocation3 + $0x4a8] sm:$0xff] %v1446
        %1459 = vrot.lane.b32.xlu0 %v597, 73
        %v1460 = vpop.permute.xlu0 %1459
        %1461 = vrot.lane.b32.xlu0 %v598, 73
        %v1462 = vpop.permute.xlu0 %1461
        %1463 = vrot.lane.b32.xlu0 %v599, 73
        %v1464 = vpop.permute.xlu0 %1463
        %1465 = vrot.lane.b32.xlu0 %v600, 73
        %v1466 = vpop.permute.xlu0 %1465
        %1467 = vrot.lane.b32.xlu0 %v601, 73
        %v1468 = vpop.permute.xlu0 %1467
        %1469 = vrot.lane.b32.xlu0 %v602, 73
        %v1470 = vpop.permute.xlu0 %1469
        %1471 = vrot.lane.b32.xlu0 %v603, 73
        %v1472 = vpop.permute.xlu0 %1471
        %1473 = vrot.lane.b32.xlu0 %v604, 73
        %v1474 = vpop.permute.xlu0 %1473
        %vm1475 = vcmask 596992
        %v1476 = vsel %vm1475, %v1460, %v1462
        %v1477 = vsel %vm1475, %v1462, %v1464
        %v1478 = vsel %vm1475, %v1464, %v1466
        %v1479 = vsel %vm1475, %v1468, %v1470
        %v1480 = vsel %vm1475, %v1470, %v1472
        %v1481 = vsel %vm1475, %v1472, %v1474
        %1488 = vst [vmem:[#allocation3 + $0x4b0] sm:$0xff] %v1476
        %1489 = vst [vmem:[#allocation3 + $0x4b8] sm:$0xff] %v1477
        %1490 = vst [vmem:[#allocation3 + $0x4c0] sm:$0xff] %v1478
        %1491 = vst [vmem:[#allocation3 + $0x4c8] sm:$0xff] %v1479
        %1492 = vst [vmem:[#allocation3 + $0x4d0] sm:$0xff] %v1480
        %1493 = vst [vmem:[#allocation3 + $0x4d8] sm:$0xff] %v1481
        %1494 = vrot.lane.b32.xlu0 %v597, 72
        %v1495 = vpop.permute.xlu0 %1494
        %1496 = vrot.lane.b32.xlu0 %v598, 72
        %v1497 = vpop.permute.xlu0 %1496
        %1498 = vrot.lane.b32.xlu0 %v599, 72
        %v1499 = vpop.permute.xlu0 %1498
        %1500 = vrot.lane.b32.xlu0 %v600, 72
        %v1501 = vpop.permute.xlu0 %1500
        %1502 = vrot.lane.b32.xlu0 %v601, 72
        %v1503 = vpop.permute.xlu0 %1502
        %1504 = vrot.lane.b32.xlu0 %v602, 72
        %v1505 = vpop.permute.xlu0 %1504
        %1506 = vrot.lane.b32.xlu0 %v603, 72
        %v1507 = vpop.permute.xlu0 %1506
        %1508 = vrot.lane.b32.xlu0 %v604, 72
        %v1509 = vpop.permute.xlu0 %1508
        %vm1510 = vcmask 588800
        %v1511 = vsel %vm1510, %v1495, %v1497
        %v1512 = vsel %vm1510, %v1497, %v1499
        %v1513 = vsel %vm1510, %v1499, %v1501
        %v1514 = vsel %vm1510, %v1503, %v1505
        %v1515 = vsel %vm1510, %v1505, %v1507
        %v1516 = vsel %vm1510, %v1507, %v1509
        %1523 = vst [vmem:[#allocation3 + $0x4e0] sm:$0xff] %v1511
        %1524 = vst [vmem:[#allocation3 + $0x4e8] sm:$0xff] %v1512
        %1525 = vst [vmem:[#allocation3 + $0x4f0] sm:$0xff] %v1513
        %1526 = vst [vmem:[#allocation3 + $0x4f8] sm:$0xff] %v1514
        %1527 = vst [vmem:[#allocation3 + $0x500] sm:$0xff] %v1515
        %1528 = vst [vmem:[#allocation3 + $0x508] sm:$0xff] %v1516
        %v1529 = vld [vmem:[%s160] sm:$0xff]
        %v1530 = vld [vmem:[%s160 + $0x8] sm:$0xff]
        %v1531 = vld [vmem:[%s160 + $0x10] sm:$0xff]
        %v1532 = vld [vmem:[%s160 + $0x18] sm:$0xff]
        %v1533 = vld [vmem:[%s160 + $0x20] sm:$0xff]
        %v1534 = vld [vmem:[%s160 + $0x28] sm:$0xff]
        %v1535 = vld [vmem:[%s160 + $0x30] sm:$0xff]
        %v1536 = vld [vmem:[%s160 + $0x38] sm:$0xff]
        %v1537 = vld [vmem:[%s160 + $0x40] sm:$0xff]
        %v1538 = vld [vmem:[%s160 + $0x48] sm:$0xff]
        %v1539 = vld [vmem:[%s160 + $0x50] sm:$0xff]
        %v1540 = vld [vmem:[%s160 + $0x58] sm:$0xff]
        %v1541 = vld [vmem:[%s160 + $0x60] sm:$0xff]
        %v1542 = vld [vmem:[%s160 + $0x68] sm:$0xff]
        %v1543 = vld [vmem:[%s160 + $0x70] sm:$0xff]
        %v1544 = vld [vmem:[%s160 + $0x78] sm:$0xff]
        %v1545 = vld [vmem:[%s160 + $0x80] sm:$0xff]
        %v1546 = vld [vmem:[%s160 + $0x88] sm:$0xff]
        %v1547 = vld [vmem:[%s160 + $0x90] sm:$0xff]
        %v1548 = vld [vmem:[%s160 + $0x98] sm:$0xff]
        %v1549 = vld [vmem:[%s160 + $0xa0] sm:$0xff]
        %v1550 = vld [vmem:[%s160 + $0xa8] sm:$0xff]
        %v1551 = vld [vmem:[%s160 + $0xb0] sm:$0xff]
        %v1552 = vld [vmem:[%s160 + $0xb8] sm:$0xff]
        %v1553 = vld [vmem:[%s160 + $0xc0] sm:$0xff]
        %v1554 = vld [vmem:[%s160 + $0xc8] sm:$0xff]
        %v1555 = vld [vmem:[%s160 + $0xd0] sm:$0xff]
        %v1556 = vld [vmem:[%s160 + $0xd8] sm:$0xff]
        %v1557 = vld [vmem:[%s160 + $0xe0] sm:$0xff]
        %v1558 = vld [vmem:[%s160 + $0xe8] sm:$0xff]
        %v1559 = vld [vmem:[%s160 + $0xf0] sm:$0xff]
        %v1560 = vld [vmem:[%s160 + $0xf8] sm:$0xff]
        %v1561 = vld [vmem:[#allocation3] sm:$0xff]
        %v1562 = vld [vmem:[#allocation3 + $0x8] sm:$0xff]
        %v1563 = vld [vmem:[#allocation3 + $0x10] sm:$0xff]
        %v1564 = vld [vmem:[#allocation3 + $0x18] sm:$0xff]
        %v1565 = vld [vmem:[#allocation3 + $0x20] sm:$0xff]
        %v1566 = vld [vmem:[#allocation3 + $0x28] sm:$0xff]
        %v1567 = vld [vmem:[#allocation3 + $0x30] sm:$0xff]
        %v1568 = vld [vmem:[#allocation3 + $0x38] sm:$0xff]
        %v1569 = vld [vmem:[#allocation3 + $0x40] sm:$0xff]
        %v1570 = vld [vmem:[#allocation3 + $0x48] sm:$0xff]
        %v1571 = vld [vmem:[#allocation3 + $0x50] sm:$0xff]
        %v1572 = vld [vmem:[#allocation3 + $0x58] sm:$0xff]
        %v1573 = vld [vmem:[#allocation3 + $0x60] sm:$0xff]
        %v1574 = vld [vmem:[#allocation3 + $0x68] sm:$0xff]
        %v1575 = vld [vmem:[#allocation3 + $0x70] sm:$0xff]
        %v1576 = vld [vmem:[#allocation3 + $0x78] sm:$0xff]
        %v1577 = vld [vmem:[#allocation3 + $0x80] sm:$0xff]
        %v1578 = vld [vmem:[#allocation3 + $0x88] sm:$0xff]
        %v1579 = vld [vmem:[#allocation3 + $0x90] sm:$0xff]
        %v1580 = vld [vmem:[#allocation3 + $0x98] sm:$0xff]
        %v1581 = vld [vmem:[#allocation3 + $0xa0] sm:$0xff]
        %v1582 = vld [vmem:[#allocation3 + $0xa8] sm:$0xff]
        %v1583 = vld [vmem:[#allocation3 + $0xb0] sm:$0xff]
        %v1584 = vld [vmem:[#allocation3 + $0xb8] sm:$0xff]
        %v1585 = vld [vmem:[#allocation3 + $0xc0] sm:$0xff]
        %v1586 = vld [vmem:[#allocation3 + $0xc8] sm:$0xff]
        %v1587 = vld [vmem:[#allocation3 + $0xd0] sm:$0xff]
        %v1588 = vld [vmem:[#allocation3 + $0xd8] sm:$0xff]
        %v1589 = vld [vmem:[#allocation3 + $0xe0] sm:$0xff]
        %v1590 = vld [vmem:[#allocation3 + $0xe8] sm:$0xff]
        %v1591 = vld [vmem:[#allocation3 + $0xf0] sm:$0xff]
        %v1592 = vld [vmem:[#allocation3 + $0xf8] sm:$0xff]
        %v1593 = vld [vmem:[#allocation3 + $0x100] sm:$0xff]
        %v1594 = vld [vmem:[#allocation3 + $0x108] sm:$0xff]
        %v1595 = vld [vmem:[#allocation3 + $0x110] sm:$0xff]
        %v1596 = vld [vmem:[#allocation3 + $0x118] sm:$0xff]
        %v1597 = vld [vmem:[#allocation3 + $0x120] sm:$0xff]
        %v1598 = vld [vmem:[#allocation3 + $0x128] sm:$0xff]
        %v1599 = vld [vmem:[#allocation3 + $0x130] sm:$0xff]
        %v1600 = vld [vmem:[#allocation3 + $0x138] sm:$0xff]
        %v1601 = vld [vmem:[#allocation3 + $0x140] sm:$0xff]
        %v1602 = vld [vmem:[#allocation3 + $0x148] sm:$0xff]
        %v1603 = vld [vmem:[#allocation3 + $0x150] sm:$0xff]
        %v1604 = vld [vmem:[#allocation3 + $0x158] sm:$0xff]
        %v1605 = vld [vmem:[#allocation3 + $0x160] sm:$0xff]
        %v1606 = vld [vmem:[#allocation3 + $0x168] sm:$0xff]
        %v1607 = vld [vmem:[#allocation3 + $0x170] sm:$0xff]
        %v1608 = vld [vmem:[#allocation3 + $0x178] sm:$0xff]
        %v1609 = vld [vmem:[#allocation3 + $0x180] sm:$0xff]
        %v1610 = vld [vmem:[#allocation3 + $0x188] sm:$0xff]
        %v1611 = vld [vmem:[#allocation3 + $0x190] sm:$0xff]
        %v1612 = vld [vmem:[#allocation3 + $0x198] sm:$0xff]
        %v1613 = vld [vmem:[#allocation3 + $0x1a0] sm:$0xff]
        %v1614 = vld [vmem:[#allocation3 + $0x1a8] sm:$0xff]
        %v1615 = vld [vmem:[#allocation3 + $0x1b0] sm:$0xff]
        %v1616 = vld [vmem:[#allocation3 + $0x1b8] sm:$0xff]
        %v1617 = vld [vmem:[#allocation3 + $0x1c0] sm:$0xff]
        %v1618 = vld [vmem:[#allocation3 + $0x1c8] sm:$0xff]
        %v1619 = vld [vmem:[#allocation3 + $0x1d0] sm:$0xff]
        %v1620 = vld [vmem:[#allocation3 + $0x1d8] sm:$0xff]
        %v1621 = vld [vmem:[#allocation3 + $0x1e0] sm:$0xff]
        %v1622 = vld [vmem:[#allocation3 + $0x1e8] sm:$0xff]
        %v1623 = vld [vmem:[#allocation3 + $0x1f0] sm:$0xff]
        %v1624 = vld [vmem:[#allocation3 + $0x1f8] sm:$0xff]
        %v1625 = vld [vmem:[#allocation3 + $0x200] sm:$0xff]
        %v1626 = vld [vmem:[#allocation3 + $0x208] sm:$0xff]
        %v1627 = vld [vmem:[#allocation3 + $0x210] sm:$0xff]
        %v1628 = vld [vmem:[#allocation3 + $0x218] sm:$0xff]
        %v1629 = vld [vmem:[#allocation3 + $0x220] sm:$0xff]
        %v1630 = vld [vmem:[#allocation3 + $0x228] sm:$0xff]
        %v1631 = vld [vmem:[#allocation3 + $0x230] sm:$0xff]
        %v1632 = vld [vmem:[#allocation3 + $0x238] sm:$0xff]
        %v1633 = vld [vmem:[#allocation3 + $0x240] sm:$0xff]
        %v1634 = vld [vmem:[#allocation3 + $0x248] sm:$0xff]
        %v1635 = vld [vmem:[#allocation3 + $0x250] sm:$0xff]
        %v1636 = vld [vmem:[#allocation3 + $0x258] sm:$0xff]
        %v1637 = vld [vmem:[#allocation3 + $0x260] sm:$0xff]
        %v1638 = vld [vmem:[#allocation3 + $0x268] sm:$0xff]
        %v1639 = vld [vmem:[#allocation3 + $0x270] sm:$0xff]
        %v1640 = vld [vmem:[#allocation3 + $0x278] sm:$0xff]
        %v1641 = vld [vmem:[#allocation3 + $0x280] sm:$0xff]
        %v1642 = vld [vmem:[#allocation3 + $0x288] sm:$0xff]
        %v1643 = vld [vmem:[#allocation3 + $0x290] sm:$0xff]
        %v1644 = vld [vmem:[#allocation3 + $0x298] sm:$0xff]
        %v1645 = vld [vmem:[#allocation3 + $0x2a0] sm:$0xff]
        %v1646 = vld [vmem:[#allocation3 + $0x2a8] sm:$0xff]
        %v1647 = vld [vmem:[#allocation3 + $0x2b0] sm:$0xff]
        %v1648 = vld [vmem:[#allocation3 + $0x2b8] sm:$0xff]
        %v1649 = vld [vmem:[#allocation3 + $0x2c0] sm:$0xff]
        %v1650 = vld [vmem:[#allocation3 + $0x2c8] sm:$0xff]
        %v1651 = vld [vmem:[#allocation3 + $0x2d0] sm:$0xff]
        %v1652 = vld [vmem:[#allocation3 + $0x2d8] sm:$0xff]
        %v1653 = vld [vmem:[#allocation3 + $0x2e0] sm:$0xff]
        %v1654 = vld [vmem:[#allocation3 + $0x2e8] sm:$0xff]
        %v1655 = vld [vmem:[#allocation3 + $0x2f0] sm:$0xff]
        %v1656 = vld [vmem:[#allocation3 + $0x2f8] sm:$0xff]
        %v1657 = vld [vmem:[#allocation3 + $0x300] sm:$0xff]
        %v1658 = vld [vmem:[#allocation3 + $0x308] sm:$0xff]
        %v1659 = vld [vmem:[#allocation3 + $0x310] sm:$0xff]
        %v1660 = vld [vmem:[#allocation3 + $0x318] sm:$0xff]
        %v1661 = vld [vmem:[#allocation3 + $0x320] sm:$0xff]
        %v1662 = vld [vmem:[#allocation3 + $0x328] sm:$0xff]
        %v1663 = vld [vmem:[#allocation3 + $0x330] sm:$0xff]
        %v1664 = vld [vmem:[#allocation3 + $0x338] sm:$0xff]
        %v1665 = vld [vmem:[#allocation3 + $0x340] sm:$0xff]
        %v1666 = vld [vmem:[#allocation3 + $0x348] sm:$0xff]
        %v1667 = vld [vmem:[#allocation3 + $0x350] sm:$0xff]
        %v1668 = vld [vmem:[#allocation3 + $0x358] sm:$0xff]
        %v1669 = vld [vmem:[#allocation3 + $0x360] sm:$0xff]
        %v1670 = vld [vmem:[#allocation3 + $0x368] sm:$0xff]
        %v1671 = vld [vmem:[#allocation3 + $0x370] sm:$0xff]
        %v1672 = vld [vmem:[#allocation3 + $0x378] sm:$0xff]
        %v1673 = vld [vmem:[#allocation3 + $0x380] sm:$0xff]
        %v1674 = vld [vmem:[#allocation3 + $0x388] sm:$0xff]
        %v1675 = vld [vmem:[#allocation3 + $0x390] sm:$0xff]
        %v1676 = vld [vmem:[#allocation3 + $0x398] sm:$0xff]
        %v1677 = vld [vmem:[#allocation3 + $0x3a0] sm:$0xff]
        %v1678 = vld [vmem:[#allocation3 + $0x3a8] sm:$0xff]
        %v1679 = vld [vmem:[#allocation3 + $0x3b0] sm:$0xff]
        %v1680 = vld [vmem:[#allocation3 + $0x3b8] sm:$0xff]
        %v1681 = vld [vmem:[#allocation3 + $0x3c0] sm:$0xff]
        %v1682 = vld [vmem:[#allocation3 + $0x3c8] sm:$0xff]
        %v1683 = vld [vmem:[#allocation3 + $0x3d0] sm:$0xff]
        %v1684 = vld [vmem:[#allocation3 + $0x3d8] sm:$0xff]
        %v1685 = vld [vmem:[#allocation3 + $0x3e0] sm:$0xff]
        %v1686 = vld [vmem:[#allocation3 + $0x3e8] sm:$0xff]
        %v1687 = vld [vmem:[#allocation3 + $0x3f0] sm:$0xff]
        %v1688 = vld [vmem:[#allocation3 + $0x3f8] sm:$0xff]
        %v1689 = vld [vmem:[#allocation3 + $0x400] sm:$0xff]
        %v1690 = vld [vmem:[#allocation3 + $0x408] sm:$0xff]
        %v1691 = vld [vmem:[#allocation3 + $0x410] sm:$0xff]
        %v1692 = vld [vmem:[#allocation3 + $0x418] sm:$0xff]
        %v1693 = vld [vmem:[#allocation3 + $0x420] sm:$0xff]
        %v1694 = vld [vmem:[#allocation3 + $0x428] sm:$0xff]
        %v1695 = vld [vmem:[#allocation3 + $0x430] sm:$0xff]
        %v1696 = vld [vmem:[#allocation3 + $0x438] sm:$0xff]
        %v1697 = vld [vmem:[#allocation3 + $0x440] sm:$0xff]
        %v1698 = vld [vmem:[#allocation3 + $0x448] sm:$0xff]
        %v1699 = vld [vmem:[#allocation3 + $0x450] sm:$0xff]
        %v1700 = vld [vmem:[#allocation3 + $0x458] sm:$0xff]
        %v1701 = vld [vmem:[#allocation3 + $0x460] sm:$0xff]
        %v1702 = vld [vmem:[#allocation3 + $0x468] sm:$0xff]
        %v1703 = vld [vmem:[#allocation3 + $0x470] sm:$0xff]
        %v1704 = vld [vmem:[#allocation3 + $0x478] sm:$0xff]
        %v1705 = vld [vmem:[#allocation3 + $0x480] sm:$0xff]
        %v1706 = vld [vmem:[#allocation3 + $0x488] sm:$0xff]
        %v1707 = vld [vmem:[#allocation3 + $0x490] sm:$0xff]
        %v1708 = vld [vmem:[#allocation3 + $0x498] sm:$0xff]
        %v1709 = vld [vmem:[#allocation3 + $0x4a0] sm:$0xff]
        %v1710 = vld [vmem:[#allocation3 + $0x4a8] sm:$0xff]
        %v1711 = vld [vmem:[#allocation3 + $0x4b0] sm:$0xff]
        %v1712 = vld [vmem:[#allocation3 + $0x4b8] sm:$0xff]
        %v1713 = vld [vmem:[#allocation3 + $0x4c0] sm:$0xff]
        %v1714 = vld [vmem:[#allocation3 + $0x4c8] sm:$0xff]
        %v1715 = vld [vmem:[#allocation3 + $0x4d0] sm:$0xff]
        %v1716 = vld [vmem:[#allocation3 + $0x4d8] sm:$0xff]
        %v1717 = vld [vmem:[#allocation3 + $0x4e0] sm:$0xff]
        %v1718 = vld [vmem:[#allocation3 + $0x4e8] sm:$0xff]
        %v1719 = vld [vmem:[#allocation3 + $0x4f0] sm:$0xff]
        %v1720 = vld [vmem:[#allocation3 + $0x4f8] sm:$0xff]
        %v1721 = vld [vmem:[#allocation3 + $0x500] sm:$0xff]
        %v1722 = vld [vmem:[#allocation3 + $0x508] sm:$0xff]
        %vm1723 = vcmask 392192
        %v1725 = vsel %vm1723, %v1532, 0
        %v1728 = vsel %vm1723, %v1536, 0
        %v1731 = vsel %vm1723, %v1540, 0
        %v1734 = vsel %vm1723, %v1544, 0
        %v1737 = vsel %vm1723, %v1548, 0
        %v1740 = vsel %vm1723, %v1552, 0
        %v1743 = vsel %vm1723, %v1556, 0
        %v1746 = vsel %vm1723, %v1560, 0
        %1748 = vmatprep.subr.mxu0 %v1562
        %1749 = vmatpush1.msra.mxu0 %v1561
        %1750 = vmatprep.subr.mxu0 %v1565
        %1751 = vmatpush1.msra.mxu0 %v1564
        %1752 = vmatprep.subr.mxu0 %v1568
        %1753 = vmatpush1.msra.mxu0 %v1567
        %1754 = vmatprep.subr.mxu0 %v1571
        %1755 = vmatpush1.msra.mxu0 %v1570
        %1756 = vmatprep.subr.mxu0 %v1574
        %1757 = vmatpush1.msra.mxu0 %v1573
        %1758 = vmatprep.subr.mxu0 %v1577
        %1759 = vmatpush1.msra.mxu0 %v1576
        %1760 = vmatprep.subr.mxu0 %v1580
        %1761 = vmatpush1.msra.mxu0 %v1579
        %1762 = vmatprep.subr.mxu0 %v1583
        %1763 = vmatpush1.msra.mxu0 %v1582
        %1764 = vmatprep.subr.mxu0 %v1586
        %1765 = vmatpush1.msra.mxu0 %v1585
        %1766 = vmatprep.subr.mxu0 %v1589
        %1767 = vmatpush1.msra.mxu0 %v1588
        %1768 = vmatprep.subr.mxu0 %v1592
        %1769 = vmatpush1.msra.mxu0 %v1591
        %1770 = vmatprep.subr.mxu0 %v1595
        %1771 = vmatpush1.msra.mxu0 %v1594
        %1772 = vmatprep.subr.mxu0 %v1598
        %1773 = vmatpush1.msra.mxu0 %v1597
        %1774 = vmatprep.subr.mxu0 %v1601
        %1775 = vmatpush1.msra.mxu0 %v1600
        %1776 = vmatprep.subr.mxu0 %v1604
        %1777 = vmatpush1.msra.mxu0 %v1603
        %1778 = vmatprep.subr.mxu0 %v1607
        %1779 = vmatpush1.msra.mxu0 %v1606
        %1780 = vmatprep.subr.mxu0 %v1610
        %1781 = vmatpush1.msra.mxu0 %v1609
        %1782 = vmatprep.subr.mxu0 %v1613
        %1783 = vmatpush1.msra.mxu0 %v1612
        %1784 = vmatprep.subr.mxu0 %v1616
        %1785 = vmatpush1.msra.mxu0 %v1615
        %1786 = vmatprep.subr.mxu0 %v1619
        %1787 = vmatpush1.msra.mxu0 %v1618
        %1788 = vmatprep.subr.mxu0 %v1622
        %1789 = vmatpush1.msra.mxu0 %v1621
        %1790 = vmatprep.subr.mxu0 %v1625
        %1791 = vmatpush1.msra.mxu0 %v1624
        %1792 = vmatprep.subr.mxu0 %v1628
        %1793 = vmatpush1.msra.mxu0 %v1627
        %1794 = vmatprep.subr.mxu0 %v1631
        %1795 = vmatpush1.msra.mxu0 %v1630
        %1796 = vmatprep.subr.mxu0 %v1634
        %1797 = vmatpush1.msra.mxu0 %v1633
        %1798 = vmatprep.subr.mxu0 %v1637
        %1799 = vmatpush1.msra.mxu0 %v1636
        %1800 = vmatprep.subr.mxu0 %v1640
        %1801 = vmatpush1.msra.mxu0 %v1639
        %1802 = vmatprep.subr.mxu0 %v1643
        %1803 = vmatpush1.msra.mxu0 %v1642
        %1804 = vmatprep.subr.mxu0 %v1646
        %1805 = vmatpush1.msra.mxu0 %v1645
        %1806 = vmatprep.subr.mxu0 %v1649
        %1807 = vmatpush1.msra.mxu0 %v1648
        %1808 = vmatprep.subr.mxu0 %v1652
        %1809 = vmatpush1.msra.mxu0 %v1651
        %1810 = vmatprep.subr.mxu0 %v1655
        %1811 = vmatpush1.msra.mxu0 %v1654
        %1812 = vmatprep.mubr.f32.mxu0 %v1530
        %1813 = vmatmul.mubr.f32.gmra.mrb[0].mxu0 %v1529
        %v1814 = vpop.f32.mrb[0].mxu0
        %v1815 = vadd.f32 0.0, %v1814
        %v1816 = vpop.f32.mrb[0].mxu0
        %v1817 = vadd.f32 0.0, %v1816
        %1818 = vmatprep.mubr.f32.mxu0 %v1534
        %1819 = vmatmul.mubr.f32.gmra.mrb[0].mxu0 %v1533
        %v1820 = vpop.f32.mrb[0].mxu0
        %v1821 = vadd.f32 0.0, %v1820
        %v1822 = vpop.f32.mrb[0].mxu0
        %v1823 = vadd.f32 0.0, %v1822
        %1824 = vmatprep.mubr.f32.mxu0 %v1538
        %1825 = vmatmul.mubr.f32.gmra.mrb[0].mxu0 %v1537
        %v1826 = vpop.f32.mrb[0].mxu0
        %v1827 = vadd.f32 0.0, %v1826
        %v1828 = vpop.f32.mrb[0].mxu0
        %v1829 = vadd.f32 0.0, %v1828
        %1830 = vmatprep.mubr.f32.mxu0 %v1542
        %1831 = vmatmul.mubr.f32.gmra.mrb[0].mxu0 %v1541
        %v1832 = vpop.f32.mrb[0].mxu0
        %v1833 = vadd.f32 0.0, %v1832
        %v1834 = vpop.f32.mrb[0].mxu0
        %v1835 = vadd.f32 0.0, %v1834
        %1836 = vmatprep.mubr.f32.mxu0 %v1546
        %1837 = vmatmul.mubr.f32.gmra.mrb[0].mxu0 %v1545
        %v1838 = vpop.f32.mrb[0].mxu0
        %v1839 = vadd.f32 0.0, %v1838
        %v1840 = vpop.f32.mrb[0].mxu0
        %v1841 = vadd.f32 0.0, %v1840
        %1842 = vmatprep.mubr.f32.mxu0 %v1550
        %1843 = vmatmul.mubr.f32.gmra.mrb[0].mxu0 %v1549
        %v1844 = vpop.f32.mrb[0].mxu0
        %v1845 = vadd.f32 0.0, %v1844
        %v1846 = vpop.f32.mrb[0].mxu0
        %v1847 = vadd.f32 0.0, %v1846
        %1848 = vmatprep.mubr.f32.mxu0 %v1554
        %1849 = vmatmul.mubr.f32.gmra.mrb[0].mxu0 %v1553
        %v1850 = vpop.f32.mrb[0].mxu0
        %v1851 = vadd.f32 0.0, %v1850
        %v1852 = vpop.f32.mrb[0].mxu0
        %v1853 = vadd.f32 0.0, %v1852
        %1854 = vmatprep.mubr.f32.mxu0 %v1558
        %1855 = vmatmul.mubr.f32.gmra.mrb[0].mxu0 %v1557
        %v1856 = vpop.f32.mrb[0].mxu0
        %v1857 = vadd.f32 0.0, %v1856
        %v1858 = vpop.f32.mrb[0].mxu0
        %v1859 = vadd.f32 0.0, %v1858
        %1860 = vdwg.mxu0
        %1861 = vmatprep.subr.mxu0 %v1658
        %1862 = vmatpush1.msra.mxu0 %v1657
        %1863 = vmatprep.subr.mxu0 %v1661
        %1864 = vmatpush1.msra.mxu0 %v1660
        %1865 = vmatprep.subr.mxu0 %v1664
        %1866 = vmatpush1.msra.mxu0 %v1663
        %1867 = vmatprep.subr.mxu0 %v1667
        %1868 = vmatpush1.msra.mxu0 %v1666
        %1869 = vmatprep.subr.mxu0 %v1670
        %1870 = vmatpush1.msra.mxu0 %v1669
        %1871 = vmatprep.subr.mxu0 %v1673
        %1872 = vmatpush1.msra.mxu0 %v1672
        %1873 = vmatprep.subr.mxu0 %v1676
        %1874 = vmatpush1.msra.mxu0 %v1675
        %1875 = vmatprep.subr.mxu0 %v1679
        %1876 = vmatpush1.msra.mxu0 %v1678
        %1877 = vmatprep.subr.mxu0 %v1682
        %1878 = vmatpush1.msra.mxu0 %v1681
        %1879 = vmatprep.subr.mxu0 %v1685
        %1880 = vmatpush1.msra.mxu0 %v1684
        %1881 = vmatprep.subr.mxu0 %v1688
        %1882 = vmatpush1.msra.mxu0 %v1687
        %1883 = vmatprep.subr.mxu0 %v1691
        %1884 = vmatpush1.msra.mxu0 %v1690
        %1885 = vmatprep.subr.mxu0 %v1694
        %1886 = vmatpush1.msra.mxu0 %v1693
        %1887 = vmatprep.subr.mxu0 %v1697
        %1888 = vmatpush1.msra.mxu0 %v1696
        %1889 = vmatprep.subr.mxu0 %v1700
        %1890 = vmatpush1.msra.mxu0 %v1699
        %1891 = vmatprep.subr.mxu0 %v1703
        %1892 = vmatpush1.msra.mxu0 %v1702
        %1893 = vmatprep.subr.mxu0 %v1706
        %1894 = vmatpush1.msra.mxu0 %v1705
        %1895 = vmatprep.subr.mxu0 %v1709
        %1896 = vmatpush1.msra.mxu0 %v1708
        %1897 = vmatprep.subr.mxu0 %v1712
        %1898 = vmatpush1.msra.mxu0 %v1711
        %1899 = vmatprep.subr.mxu0 %v1715
        %1900 = vmatpush1.msra.mxu0 %v1714
        %1901 = vmatprep.subr.mxu0 %v1718
        %1902 = vmatpush1.msra.mxu0 %v1717
        %1903 = vmatprep.subr.mxu0 %v1721
        %1904 = vmatpush1.msra.mxu0 %v1720
        %1905 = vmatprep.subr.mxu0 0.0
        %1906 = vmatpush1.msra.mxu0 0.0
        %1907 = vmatprep.subr.mxu0 0.0
        %1908 = vmatpush1.msra.mxu0 0.0
        %1909 = vmatprep.subr.mxu0 0.0
        %1910 = vmatpush1.msra.mxu0 0.0
        %1911 = vmatprep.subr.mxu0 0.0
        %1912 = vmatpush1.msra.mxu0 0.0
        %1913 = vmatprep.subr.mxu0 0.0
        %1914 = vmatpush1.msra.mxu0 0.0
        %1915 = vmatprep.subr.mxu0 0.0
        %1916 = vmatpush1.msra.mxu0 0.0
        %1917 = vmatprep.subr.mxu0 0.0
        %1918 = vmatpush1.msra.mxu0 0.0
        %1919 = vmatprep.subr.mxu0 0.0
        %1920 = vmatpush1.msra.mxu0 0.0
        %1921 = vmatprep.subr.mxu0 0.0
        %1922 = vmatpush1.msra.mxu0 0.0
        %1923 = vmatprep.subr.mxu0 0.0
        %1924 = vmatpush1.msra.mxu0 0.0
        %1925 = vmatprep.mubr.f32.mxu0 %v1725
        %1926 = vmatmul.mubr.f32.gmra.mrb[0].mxu0 %v1531
        %v1927 = vpop.f32.mrb[0].mxu0
        %v1928 = vadd.f32 %v1815, %v1927
        %v1929 = vpop.f32.mrb[0].mxu0
        %v1930 = vadd.f32 %v1817, %v1929
        %1931 = vmatprep.mubr.f32.mxu0 %v1728
        %1932 = vmatmul.mubr.f32.gmra.mrb[0].mxu0 %v1535
        %v1933 = vpop.f32.mrb[0].mxu0
        %v1934 = vadd.f32 %v1821, %v1933
        %v1935 = vpop.f32.mrb[0].mxu0
        %v1936 = vadd.f32 %v1823, %v1935
        %1937 = vmatprep.mubr.f32.mxu0 %v1731
        %1938 = vmatmul.mubr.f32.gmra.mrb[0].mxu0 %v1539
        %v1939 = vpop.f32.mrb[0].mxu0
        %v1940 = vadd.f32 %v1827, %v1939
        %v1941 = vpop.f32.mrb[0].mxu0
        %v1942 = vadd.f32 %v1829, %v1941
        %1943 = vmatprep.mubr.f32.mxu0 %v1734
        %1944 = vmatmul.mubr.f32.gmra.mrb[0].mxu0 %v1543
        %v1945 = vpop.f32.mrb[0].mxu0
        %v1946 = vadd.f32 %v1833, %v1945
        %v1947 = vpop.f32.mrb[0].mxu0
        %v1948 = vadd.f32 %v1835, %v1947
        %1949 = vmatprep.mubr.f32.mxu0 %v1737
        %1950 = vmatmul.mubr.f32.gmra.mrb[0].mxu0 %v1547
        %v1951 = vpop.f32.mrb[0].mxu0
        %v1952 = vadd.f32 %v1839, %v1951
        %v1953 = vpop.f32.mrb[0].mxu0
        %v1954 = vadd.f32 %v1841, %v1953
        %1955 = vmatprep.mubr.f32.mxu0 %v1740
        %1956 = vmatmul.mubr.f32.gmra.mrb[0].mxu0 %v1551
        %v1957 = vpop.f32.mrb[0].mxu0
        %v1958 = vadd.f32 %v1845, %v1957
        %v1959 = vpop.f32.mrb[0].mxu0
        %v1960 = vadd.f32 %v1847, %v1959
        %1961 = vmatprep.mubr.f32.mxu0 %v1743
        %1962 = vmatmul.mubr.f32.gmra.mrb[0].mxu0 %v1555
        %v1963 = vpop.f32.mrb[0].mxu0
        %v1964 = vadd.f32 %v1851, %v1963
        %v1965 = vpop.f32.mrb[0].mxu0
        %v1966 = vadd.f32 %v1853, %v1965
        %1967 = vmatprep.mubr.f32.mxu0 %v1746
        %1968 = vmatmul.mubr.f32.gmra.mrb[0].mxu0 %v1559
        %v1969 = vpop.f32.mrb[0].mxu0
        %v1970 = vadd.f32 %v1857, %v1969
        %v1971 = vpop.f32.mrb[0].mxu0
        %v1972 = vadd.f32 %v1859, %v1971
        %1973 = vdwg.mxu0
        %1974 = vmatprep.subr.mxu0 0.0
        %1975 = vmatpush1.msra.mxu0 %v1563
        %1976 = vmatprep.subr.mxu0 0.0
        %1977 = vmatpush1.msra.mxu0 %v1566
        %1978 = vmatprep.subr.mxu0 0.0
        %1979 = vmatpush1.msra.mxu0 %v1569
        %1980 = vmatprep.subr.mxu0 0.0
        %1981 = vmatpush1.msra.mxu0 %v1572
        %1982 = vmatprep.subr.mxu0 0.0
        %1983 = vmatpush1.msra.mxu0 %v1575
        %1984 = vmatprep.subr.mxu0 0.0
        %1985 = vmatpush1.msra.mxu0 %v1578
        %1986 = vmatprep.subr.mxu0 0.0
        %1987 = vmatpush1.msra.mxu0 %v1581
        %1988 = vmatprep.subr.mxu0 0.0
        %1989 = vmatpush1.msra.mxu0 %v1584
        %1990 = vmatprep.subr.mxu0 0.0
        %1991 = vmatpush1.msra.mxu0 %v1587
        %1992 = vmatprep.subr.mxu0 0.0
        %1993 = vmatpush1.msra.mxu0 %v1590
        %1994 = vmatprep.subr.mxu0 0.0
        %1995 = vmatpush1.msra.mxu0 %v1593
        %1996 = vmatprep.subr.mxu0 0.0
        %1997 = vmatpush1.msra.mxu0 %v1596
        %1998 = vmatprep.subr.mxu0 0.0
        %1999 = vmatpush1.msra.mxu0 %v1599
        %2000 = vmatprep.subr.mxu0 0.0
        %2001 = vmatpush1.msra.mxu0 %v1602
        %2002 = vmatprep.subr.mxu0 0.0
        %2003 = vmatpush1.msra.mxu0 %v1605
        %2004 = vmatprep.subr.mxu0 0.0
        %2005 = vmatpush1.msra.mxu0 %v1608
        %2006 = vmatprep.subr.mxu0 0.0
        %2007 = vmatpush1.msra.mxu0 %v1611
        %2008 = vmatprep.subr.mxu0 0.0
        %2009 = vmatpush1.msra.mxu0 %v1614
        %2010 = vmatprep.subr.mxu0 0.0
        %2011 = vmatpush1.msra.mxu0 %v1617
        %2012 = vmatprep.subr.mxu0 0.0
        %2013 = vmatpush1.msra.mxu0 %v1620
        %2014 = vmatprep.subr.mxu0 0.0
        %2015 = vmatpush1.msra.mxu0 %v1623
        %2016 = vmatprep.subr.mxu0 0.0
        %2017 = vmatpush1.msra.mxu0 %v1626
        %2018 = vmatprep.subr.mxu0 0.0
        %2019 = vmatpush1.msra.mxu0 %v1629
        %2020 = vmatprep.subr.mxu0 0.0
        %2021 = vmatpush1.msra.mxu0 %v1632
        %2022 = vmatprep.subr.mxu0 0.0
        %2023 = vmatpush1.msra.mxu0 %v1635
        %2024 = vmatprep.subr.mxu0 0.0
        %2025 = vmatpush1.msra.mxu0 %v1638
        %2026 = vmatprep.subr.mxu0 0.0
        %2027 = vmatpush1.msra.mxu0 %v1641
        %2028 = vmatprep.subr.mxu0 0.0
        %2029 = vmatpush1.msra.mxu0 %v1644
        %2030 = vmatprep.subr.mxu0 0.0
        %2031 = vmatpush1.msra.mxu0 %v1647
        %2032 = vmatprep.subr.mxu0 0.0
        %2033 = vmatpush1.msra.mxu0 %v1650
        %2034 = vmatprep.subr.mxu0 0.0
        %2035 = vmatpush1.msra.mxu0 %v1653
        %2036 = vmatprep.subr.mxu0 0.0
        %2037 = vmatpush1.msra.mxu0 %v1656
        %2038 = vmatprep.mubr.f32.mxu0 %v1530
        %2039 = vmatmul.mubr.f32.gmra.mrb[0].mxu0 %v1529
        %v2040 = vpop.f32.mrb[0].mxu0
        %v2041 = vadd.f32 0.0, %v2040
        %v2042 = vpop.f32.mrb[0].mxu0
        %2043 = vmatprep.mubr.f32.mxu0 %v1534
        %2044 = vmatmul.mubr.f32.gmra.mrb[0].mxu0 %v1533
        %v2045 = vpop.f32.mrb[0].mxu0
        %v2046 = vadd.f32 0.0, %v2045
        %v2047 = vpop.f32.mrb[0].mxu0
        %2048 = vmatprep.mubr.f32.mxu0 %v1538
        %2049 = vmatmul.mubr.f32.gmra.mrb[0].mxu0 %v1537
        %v2050 = vpop.f32.mrb[0].mxu0
        %v2051 = vadd.f32 0.0, %v2050
        %v2052 = vpop.f32.mrb[0].mxu0
        %2053 = vmatprep.mubr.f32.mxu0 %v1542
        %2054 = vmatmul.mubr.f32.gmra.mrb[0].mxu0 %v1541
        %v2055 = vpop.f32.mrb[0].mxu0
        %v2056 = vadd.f32 0.0, %v2055
        %v2057 = vpop.f32.mrb[0].mxu0
        %2058 = vmatprep.mubr.f32.mxu0 %v1546
        %2059 = vmatmul.mubr.f32.gmra.mrb[0].mxu0 %v1545
        %v2060 = vpop.f32.mrb[0].mxu0
        %v2061 = vadd.f32 0.0, %v2060
        %v2062 = vpop.f32.mrb[0].mxu0
        %2063 = vmatprep.mubr.f32.mxu0 %v1550
        %2064 = vmatmul.mubr.f32.gmra.mrb[0].mxu0 %v1549
        %v2065 = vpop.f32.mrb[0].mxu0
        %v2066 = vadd.f32 0.0, %v2065
        %v2067 = vpop.f32.mrb[0].mxu0
        %2068 = vmatprep.mubr.f32.mxu0 %v1554
        %2069 = vmatmul.mubr.f32.gmra.mrb[0].mxu0 %v1553
        %v2070 = vpop.f32.mrb[0].mxu0
        %v2071 = vadd.f32 0.0, %v2070
        %v2072 = vpop.f32.mrb[0].mxu0
        %2073 = vmatprep.mubr.f32.mxu0 %v1558
        %2074 = vmatmul.mubr.f32.gmra.mrb[0].mxu0 %v1557
        %v2075 = vpop.f32.mrb[0].mxu0
        %v2076 = vadd.f32 0.0, %v2075
        %v2077 = vpop.f32.mrb[0].mxu0
        %2078 = vdwg.mxu0
        %2079 = vmatprep.subr.mxu0 0.0
        %2080 = vmatpush1.msra.mxu0 %v1659
        %2081 = vmatprep.subr.mxu0 0.0
        %2082 = vmatpush1.msra.mxu0 %v1662
        %2083 = vmatprep.subr.mxu0 0.0
        %2084 = vmatpush1.msra.mxu0 %v1665
        %2085 = vmatprep.subr.mxu0 0.0
        %2086 = vmatpush1.msra.mxu0 %v1668
        %2087 = vmatprep.subr.mxu0 0.0
        %2088 = vmatpush1.msra.mxu0 %v1671
        %2089 = vmatprep.subr.mxu0 0.0
        %2090 = vmatpush1.msra.mxu0 %v1674
        %2091 = vmatprep.subr.mxu0 0.0
        %2092 = vmatpush1.msra.mxu0 %v1677
        %2093 = vmatprep.subr.mxu0 0.0
        %2094 = vmatpush1.msra.mxu0 %v1680
        %2095 = vmatprep.subr.mxu0 0.0
        %2096 = vmatpush1.msra.mxu0 %v1683
        %2097 = vmatprep.subr.mxu0 0.0
        %2098 = vmatpush1.msra.mxu0 %v1686
        %2099 = vmatprep.subr.mxu0 0.0
        %2100 = vmatpush1.msra.mxu0 %v1689
        %2101 = vmatprep.subr.mxu0 0.0
        %2102 = vmatpush1.msra.mxu0 %v1692
        %2103 = vmatprep.subr.mxu0 0.0
        %2104 = vmatpush1.msra.mxu0 %v1695
        %2105 = vmatprep.subr.mxu0 0.0
        %2106 = vmatpush1.msra.mxu0 %v1698
        %2107 = vmatprep.subr.mxu0 0.0
        %2108 = vmatpush1.msra.mxu0 %v1701
        %2109 = vmatprep.subr.mxu0 0.0
        %2110 = vmatpush1.msra.mxu0 %v1704
        %2111 = vmatprep.subr.mxu0 0.0
        %2112 = vmatpush1.msra.mxu0 %v1707
        %2113 = vmatprep.subr.mxu0 0.0
        %2114 = vmatpush1.msra.mxu0 %v1710
        %2115 = vmatprep.subr.mxu0 0.0
        %2116 = vmatpush1.msra.mxu0 %v1713
        %2117 = vmatprep.subr.mxu0 0.0
        %2118 = vmatpush1.msra.mxu0 %v1716
        %2119 = vmatprep.subr.mxu0 0.0
        %2120 = vmatpush1.msra.mxu0 %v1719
        %2121 = vmatprep.subr.mxu0 0.0
        %2122 = vmatpush1.msra.mxu0 %v1722
        %2123 = vmatprep.subr.mxu0 0.0
        %2124 = vmatpush1.msra.mxu0 0.0
        %2125 = vmatprep.subr.mxu0 0.0
        %2126 = vmatpush1.msra.mxu0 0.0
        %2127 = vmatprep.subr.mxu0 0.0
        %2128 = vmatpush1.msra.mxu0 0.0
        %2129 = vmatprep.subr.mxu0 0.0
        %2130 = vmatpush1.msra.mxu0 0.0
        %2131 = vmatprep.subr.mxu0 0.0
        %2132 = vmatpush1.msra.mxu0 0.0
        %2133 = vmatprep.subr.mxu0 0.0
        %2134 = vmatpush1.msra.mxu0 0.0
        %2135 = vmatprep.subr.mxu0 0.0
        %2136 = vmatpush1.msra.mxu0 0.0
        %2137 = vmatprep.subr.mxu0 0.0
        %2138 = vmatpush1.msra.mxu0 0.0
        %2139 = vmatprep.subr.mxu0 0.0
        %2140 = vmatpush1.msra.mxu0 0.0
        %2141 = vmatprep.subr.mxu0 0.0
        %2142 = vmatpush1.msra.mxu0 0.0
        %2143 = vmatprep.mubr.f32.mxu0 %v1725
        %2144 = vmatmul.mubr.f32.gmra.mrb[0].mxu0 %v1531
        %v2145 = vpop.f32.mrb[0].mxu0
        %v2146 = vadd.f32 %v2041, %v2145
        %v2147 = vpop.f32.mrb[0].mxu0
        %2148 = vmatprep.mubr.f32.mxu0 %v1728
        %2149 = vmatmul.mubr.f32.gmra.mrb[0].mxu0 %v1535
        %v2150 = vpop.f32.mrb[0].mxu0
        %v2151 = vadd.f32 %v2046, %v2150
        %v2152 = vpop.f32.mrb[0].mxu0
        %2153 = vmatprep.mubr.f32.mxu0 %v1731
        %2154 = vmatmul.mubr.f32.gmra.mrb[0].mxu0 %v1539
        %v2155 = vpop.f32.mrb[0].mxu0
        %v2156 = vadd.f32 %v2051, %v2155
        %v2157 = vpop.f32.mrb[0].mxu0
        %2158 = vmatprep.mubr.f32.mxu0 %v1734
        %2159 = vmatmul.mubr.f32.gmra.mrb[0].mxu0 %v1543
        %v2160 = vpop.f32.mrb[0].mxu0
        %v2161 = vadd.f32 %v2056, %v2160
        %v2162 = vpop.f32.mrb[0].mxu0
        %2163 = vmatprep.mubr.f32.mxu0 %v1737
        %2164 = vmatmul.mubr.f32.gmra.mrb[0].mxu0 %v1547
        %v2165 = vpop.f32.mrb[0].mxu0
        %v2166 = vadd.f32 %v2061, %v2165
        %v2167 = vpop.f32.mrb[0].mxu0
        %2168 = vmatprep.mubr.f32.mxu0 %v1740
        %2169 = vmatmul.mubr.f32.gmra.mrb[0].mxu0 %v1551
        %v2170 = vpop.f32.mrb[0].mxu0
        %v2171 = vadd.f32 %v2066, %v2170
        %v2172 = vpop.f32.mrb[0].mxu0
        %2173 = vmatprep.mubr.f32.mxu0 %v1743
        %2174 = vmatmul.mubr.f32.gmra.mrb[0].mxu0 %v1555
        %v2175 = vpop.f32.mrb[0].mxu0
        %v2176 = vadd.f32 %v2071, %v2175
        %v2177 = vpop.f32.mrb[0].mxu0
        %2178 = vmatprep.mubr.f32.mxu0 %v1746
        %2179 = vmatmul.mubr.f32.gmra.mrb[0].mxu0 %v1559
        %v2180 = vpop.f32.mrb[0].mxu0
        %v2181 = vadd.f32 %v2076, %v2180
        %v2182 = vpop.f32.mrb[0].mxu0
        %2183 = vdwg.mxu0
        %p2184 = scmp.lt.s32.totalorder %s21, 2
        // Predicated region
        $region37: #{pyconv4_apply.1} parent=27 // pred_check
          %p2185 = pneg %p2184
        $region38: #{pyconv4_apply.1} parent=27 // pred_check_branch
          %2187 = sbr.rel (%p2185) target = $region40
        $region39: #{pyconv4_apply.1} parent=27 // pred_region
          %v2188 = vld [vmem:[#allocation4] sm:$0xff]
          %v2189 = vld [vmem:[#allocation4 + $0x8] sm:$0xff]
          %v2190 = vld [vmem:[#allocation4 + $0x10] sm:$0xff]
          %v2191 = vld [vmem:[#allocation4 + $0x18] sm:$0xff]
          %v2192 = vld [vmem:[#allocation4 + $0x20] sm:$0xff]
          %v2193 = vld [vmem:[#allocation4 + $0x28] sm:$0xff]
          %v2194 = vld [vmem:[#allocation4 + $0x30] sm:$0xff]
          %v2195 = vld [vmem:[#allocation4 + $0x38] sm:$0xff]
          %v2196 = vld [vmem:[#allocation4 + $0x40] sm:$0xff]
          %v2197 = vld [vmem:[#allocation4 + $0x48] sm:$0xff]
          %v2198 = vld [vmem:[#allocation4 + $0x50] sm:$0xff]
          %v2199 = vld [vmem:[#allocation4 + $0x58] sm:$0xff]
          %v2200 = vld [vmem:[#allocation4 + $0x60] sm:$0xff]
          %v2201 = vld [vmem:[#allocation4 + $0x68] sm:$0xff]
          %v2202 = vld [vmem:[#allocation4 + $0x70] sm:$0xff]
          %v2203 = vld [vmem:[#allocation4 + $0x78] sm:$0xff]
          %v2204 = vld [vmem:[#allocation4 + $0x80] sm:$0xff]
          %v2205 = vld [vmem:[#allocation4 + $0x88] sm:$0xff]
          %v2206 = vld [vmem:[#allocation4 + $0x90] sm:$0xff]
          %v2207 = vld [vmem:[#allocation4 + $0x98] sm:$0xff]
          %v2208 = vld [vmem:[#allocation4 + $0xa0] sm:$0xff]
          %v2209 = vld [vmem:[#allocation4 + $0xa8] sm:$0xff]
          %v2210 = vld [vmem:[#allocation4 + $0xb0] sm:$0xff]
          %v2211 = vld [vmem:[#allocation4 + $0xb8] sm:$0xff]
          %v2212 = vadd.f32 %v2188, %v1928
          %v2213 = vadd.f32 %v2189, %v1930
          %v2214 = vadd.f32 %v2190, %v2146
          %v2215 = vadd.f32 %v2191, %v1934
          %v2216 = vadd.f32 %v2192, %v1936
          %v2217 = vadd.f32 %v2193, %v2151
          %v2218 = vadd.f32 %v2194, %v1940
          %v2219 = vadd.f32 %v2195, %v1942
          %v2220 = vadd.f32 %v2196, %v2156
          %v2221 = vadd.f32 %v2197, %v1946
          %v2222 = vadd.f32 %v2198, %v1948
          %v2223 = vadd.f32 %v2199, %v2161
          %v2224 = vadd.f32 %v2200, %v1952
          %v2225 = vadd.f32 %v2201, %v1954
          %v2226 = vadd.f32 %v2202, %v2166
          %v2227 = vadd.f32 %v2203, %v1958
          %v2228 = vadd.f32 %v2204, %v1960
          %v2229 = vadd.f32 %v2205, %v2171
          %v2230 = vadd.f32 %v2206, %v1964
          %v2231 = vadd.f32 %v2207, %v1966
          %v2232 = vadd.f32 %v2208, %v2176
          %v2233 = vadd.f32 %v2209, %v1970
          %v2234 = vadd.f32 %v2210, %v1972
          %v2235 = vadd.f32 %v2211, %v2181
          %2236 = vst [vmem:[#allocation4] sm:$0xff] %v2212
          %2237 = vst [vmem:[#allocation4 + $0x8] sm:$0xff] %v2213
          %2238 = vst [vmem:[#allocation4 + $0x10] sm:$0xff] %v2214
          %2239 = vst [vmem:[#allocation4 + $0x18] sm:$0xff] %v2215
          %2240 = vst [vmem:[#allocation4 + $0x20] sm:$0xff] %v2216
          %2241 = vst [vmem:[#allocation4 + $0x28] sm:$0xff] %v2217
          %2242 = vst [vmem:[#allocation4 + $0x30] sm:$0xff] %v2218
          %2243 = vst [vmem:[#allocation4 + $0x38] sm:$0xff] %v2219
          %2244 = vst [vmem:[#allocation4 + $0x40] sm:$0xff] %v2220
          %2245 = vst [vmem:[#allocation4 + $0x48] sm:$0xff] %v2221
          %2246 = vst [vmem:[#allocation4 + $0x50] sm:$0xff] %v2222
          %2247 = vst [vmem:[#allocation4 + $0x58] sm:$0xff] %v2223
          %2248 = vst [vmem:[#allocation4 + $0x60] sm:$0xff] %v2224
          %2249 = vst [vmem:[#allocation4 + $0x68] sm:$0xff] %v2225
          %2250 = vst [vmem:[#allocation4 + $0x70] sm:$0xff] %v2226
          %2251 = vst [vmem:[#allocation4 + $0x78] sm:$0xff] %v2227
          %2252 = vst [vmem:[#allocation4 + $0x80] sm:$0xff] %v2228
          %2253 = vst [vmem:[#allocation4 + $0x88] sm:$0xff] %v2229
          %2254 = vst [vmem:[#allocation4 + $0x90] sm:$0xff] %v2230
          %2255 = vst [vmem:[#allocation4 + $0x98] sm:$0xff] %v2231
          %2256 = vst [vmem:[#allocation4 + $0xa0] sm:$0xff] %v2232
          %2257 = vst [vmem:[#allocation4 + $0xa8] sm:$0xff] %v2233
          %2258 = vst [vmem:[#allocation4 + $0xb0] sm:$0xff] %v2234
          %2259 = vst [vmem:[#allocation4 + $0xb8] sm:$0xff] %v2235
        $region40: #{pyconv4_apply.1} parent=27 // pred_fallthru
          _
        %p2260 = scmp.eq.s32.totalorder %s21, 2
        // Predicated region
        $region41: #{pyconv4_apply.1} parent=27 // pred_check
          %p2261 = pneg %p2260
        $region42: #{pyconv4_apply.1} parent=27 // pred_check_branch
          %2263 = sbr.rel (%p2261) target = $region44
        $region43: #{pyconv4_apply.1} parent=27 // pred_region
          %v2264 = vld [vmem:[#allocation4] sm:$0xff]
          %v2265 = vld [vmem:[#allocation4 + $0x8] sm:$0xff]
          %v2266 = vld [vmem:[#allocation4 + $0x10] sm:$0xff]
          %v2267 = vld [vmem:[#allocation4 + $0x18] sm:$0xff]
          %v2268 = vld [vmem:[#allocation4 + $0x20] sm:$0xff]
          %v2269 = vld [vmem:[#allocation4 + $0x28] sm:$0xff]
          %v2270 = vld [vmem:[#allocation4 + $0x30] sm:$0xff]
          %v2271 = vld [vmem:[#allocation4 + $0x38] sm:$0xff]
          %v2272 = vld [vmem:[#allocation4 + $0x40] sm:$0xff]
          %v2273 = vld [vmem:[#allocation4 + $0x48] sm:$0xff]
          %v2274 = vld [vmem:[#allocation4 + $0x50] sm:$0xff]
          %v2275 = vld [vmem:[#allocation4 + $0x58] sm:$0xff]
          %v2276 = vld [vmem:[#allocation4 + $0x60] sm:$0xff]
          %v2277 = vld [vmem:[#allocation4 + $0x68] sm:$0xff]
          %v2278 = vld [vmem:[#allocation4 + $0x70] sm:$0xff]
          %v2279 = vld [vmem:[#allocation4 + $0x78] sm:$0xff]
          %v2280 = vld [vmem:[#allocation4 + $0x80] sm:$0xff]
          %v2281 = vld [vmem:[#allocation4 + $0x88] sm:$0xff]
          %v2282 = vld [vmem:[#allocation4 + $0x90] sm:$0xff]
          %v2283 = vld [vmem:[#allocation4 + $0x98] sm:$0xff]
          %v2284 = vld [vmem:[#allocation4 + $0xa0] sm:$0xff]
          %v2285 = vld [vmem:[#allocation4 + $0xa8] sm:$0xff]
          %v2286 = vld [vmem:[#allocation4 + $0xb0] sm:$0xff]
          %v2287 = vld [vmem:[#allocation4 + $0xb8] sm:$0xff]
          %v2288 = vadd.f32 %v2264, %v1928
          %v2289 = vadd.f32 %v2265, %v1930
          %v2290 = vadd.f32 %v2266, %v2146
          %v2291 = vadd.f32 %v2267, %v1934
          %v2292 = vadd.f32 %v2268, %v1936
          %v2293 = vadd.f32 %v2269, %v2151
          %v2294 = vadd.f32 %v2270, %v1940
          %v2295 = vadd.f32 %v2271, %v1942
          %v2296 = vadd.f32 %v2272, %v2156
          %v2297 = vadd.f32 %v2273, %v1946
          %v2298 = vadd.f32 %v2274, %v1948
          %v2299 = vadd.f32 %v2275, %v2161
          %v2300 = vadd.f32 %v2276, %v1952
          %v2301 = vadd.f32 %v2277, %v1954
          %v2302 = vadd.f32 %v2278, %v2166
          %v2303 = vadd.f32 %v2279, %v1958
          %v2304 = vadd.f32 %v2280, %v1960
          %v2305 = vadd.f32 %v2281, %v2171
          %v2306 = vadd.f32 %v2282, %v1964
          %v2307 = vadd.f32 %v2283, %v1966
          %v2308 = vadd.f32 %v2284, %v2176
          %v2309 = vadd.f32 %v2285, %v1970
          %v2310 = vadd.f32 %v2286, %v1972
          %v2311 = vadd.f32 %v2287, %v2181
          %vm2312 = vcmask 130048
          %2313 = vst.msk [vmem:[%s195] sm:$0xff] %vm2312, %v2288
          %2314 = vst.msk [vmem:[%s195 + $0x10] sm:$0xff] %vm2312, %v2291
          %2315 = vst.msk [vmem:[%s195 + $0x20] sm:$0xff] %vm2312, %v2294
          %2316 = vst.msk [vmem:[%s195 + $0x30] sm:$0xff] %vm2312, %v2297
          %2317 = vst.msk [vmem:[%s195 + $0x40] sm:$0xff] %vm2312, %v2300
          %2318 = vst.msk [vmem:[%s195 + $0x50] sm:$0xff] %vm2312, %v2303
          %2319 = vst.msk [vmem:[%s195 + $0x60] sm:$0xff] %vm2312, %v2306
          %2320 = vst.msk [vmem:[%s195 + $0x70] sm:$0xff] %vm2312, %v2309
          %2329 = vrot.lane.b32.xlu0 %v2288, 120
          %v2330 = vpop.permute.xlu0 %2329
          %2331 = vrot.lane.b32.xlu0 %v2291, 120
          %v2332 = vpop.permute.xlu0 %2331
          %2333 = vrot.lane.b32.xlu0 %v2294, 120
          %v2334 = vpop.permute.xlu0 %2333
          %2335 = vrot.lane.b32.xlu0 %v2297, 120
          %v2336 = vpop.permute.xlu0 %2335
          %2337 = vrot.lane.b32.xlu0 %v2300, 120
          %v2338 = vpop.permute.xlu0 %2337
          %2339 = vrot.lane.b32.xlu0 %v2303, 120
          %v2340 = vpop.permute.xlu0 %2339
          %2341 = vrot.lane.b32.xlu0 %v2306, 120
          %v2342 = vpop.permute.xlu0 %2341
          %2343 = vrot.lane.b32.xlu0 %v2309, 120
          %v2344 = vpop.permute.xlu0 %2343
          %vm2353 = vcmask 261248
          %2354 = vst.msk [vmem:[%s195] sm:$0xff] %vm2353, %v2330
          %2355 = vst.msk [vmem:[%s195 + $0x10] sm:$0xff] %vm2353, %v2332
          %2356 = vst.msk [vmem:[%s195 + $0x20] sm:$0xff] %vm2353, %v2334
          %2357 = vst.msk [vmem:[%s195 + $0x30] sm:$0xff] %vm2353, %v2336
          %2358 = vst.msk [vmem:[%s195 + $0x40] sm:$0xff] %vm2353, %v2338
          %2359 = vst.msk [vmem:[%s195 + $0x50] sm:$0xff] %vm2353, %v2340
          %2360 = vst.msk [vmem:[%s195 + $0x60] sm:$0xff] %vm2353, %v2342
          %2361 = vst.msk [vmem:[%s195 + $0x70] sm:$0xff] %vm2353, %v2344
          %2362 = vrot.lane.b32.xlu0 %v2288, 112
          %v2363 = vpop.permute.xlu0 %2362
          %2364 = vrot.lane.b32.xlu0 %v2291, 112
          %v2365 = vpop.permute.xlu0 %2364
          %2366 = vrot.lane.b32.xlu0 %v2294, 112
          %v2367 = vpop.permute.xlu0 %2366
          %2368 = vrot.lane.b32.xlu0 %v2297, 112
          %v2369 = vpop.permute.xlu0 %2368
          %2370 = vrot.lane.b32.xlu0 %v2300, 112
          %v2371 = vpop.permute.xlu0 %2370
          %2372 = vrot.lane.b32.xlu0 %v2303, 112
          %v2373 = vpop.permute.xlu0 %2372
          %2374 = vrot.lane.b32.xlu0 %v2306, 112
          %v2375 = vpop.permute.xlu0 %2374
          %2376 = vrot.lane.b32.xlu0 %v2309, 112
          %v2377 = vpop.permute.xlu0 %2376
          %vm2386 = vcmask 392448
          %2387 = vst.msk [vmem:[%s195] sm:$0xff] %vm2386, %v2363
          %2388 = vst.msk [vmem:[%s195 + $0x10] sm:$0xff] %vm2386, %v2365
          %2389 = vst.msk [vmem:[%s195 + $0x20] sm:$0xff] %vm2386, %v2367
          %2390 = vst.msk [vmem:[%s195 + $0x30] sm:$0xff] %vm2386, %v2369
          %2391 = vst.msk [vmem:[%s195 + $0x40] sm:$0xff] %vm2386, %v2371
          %2392 = vst.msk [vmem:[%s195 + $0x50] sm:$0xff] %vm2386, %v2373
          %2393 = vst.msk [vmem:[%s195 + $0x60] sm:$0xff] %vm2386, %v2375
          %2394 = vst.msk [vmem:[%s195 + $0x70] sm:$0xff] %vm2386, %v2377
          %2395 = vrot.lane.b32.xlu0 %v2288, 104
          %v2396 = vpop.permute.xlu0 %2395
          %2397 = vrot.lane.b32.xlu0 %v2291, 104
          %v2398 = vpop.permute.xlu0 %2397
          %2399 = vrot.lane.b32.xlu0 %v2294, 104
          %v2400 = vpop.permute.xlu0 %2399
          %2401 = vrot.lane.b32.xlu0 %v2297, 104
          %v2402 = vpop.permute.xlu0 %2401
          %2403 = vrot.lane.b32.xlu0 %v2300, 104
          %v2404 = vpop.permute.xlu0 %2403
          %2405 = vrot.lane.b32.xlu0 %v2303, 104
          %v2406 = vpop.permute.xlu0 %2405
          %2407 = vrot.lane.b32.xlu0 %v2306, 104
          %v2408 = vpop.permute.xlu0 %2407
          %2409 = vrot.lane.b32.xlu0 %v2309, 104
          %v2410 = vpop.permute.xlu0 %2409
          %vm2419 = vcmask 523648
          %2420 = vst.msk [vmem:[%s195] sm:$0xff] %vm2419, %v2396
          %2421 = vst.msk [vmem:[%s195 + $0x10] sm:$0xff] %vm2419, %v2398
          %2422 = vst.msk [vmem:[%s195 + $0x20] sm:$0xff] %vm2419, %v2400
          %2423 = vst.msk [vmem:[%s195 + $0x30] sm:$0xff] %vm2419, %v2402
          %2424 = vst.msk [vmem:[%s195 + $0x40] sm:$0xff] %vm2419, %v2404
          %2425 = vst.msk [vmem:[%s195 + $0x50] sm:$0xff] %vm2419, %v2406
          %2426 = vst.msk [vmem:[%s195 + $0x60] sm:$0xff] %vm2419, %v2408
          %2427 = vst.msk [vmem:[%s195 + $0x70] sm:$0xff] %vm2419, %v2410
          %2428 = vrot.lane.b32.xlu0 %v2288, 96
          %v2429 = vpop.permute.xlu0 %2428
          %2430 = vrot.lane.b32.xlu0 %v2291, 96
          %v2431 = vpop.permute.xlu0 %2430
          %2432 = vrot.lane.b32.xlu0 %v2294, 96
          %v2433 = vpop.permute.xlu0 %2432
          %2434 = vrot.lane.b32.xlu0 %v2297, 96
          %v2435 = vpop.permute.xlu0 %2434
          %2436 = vrot.lane.b32.xlu0 %v2300, 96
          %v2437 = vpop.permute.xlu0 %2436
          %2438 = vrot.lane.b32.xlu0 %v2303, 96
          %v2439 = vpop.permute.xlu0 %2438
          %2440 = vrot.lane.b32.xlu0 %v2306, 96
          %v2441 = vpop.permute.xlu0 %2440
          %2442 = vrot.lane.b32.xlu0 %v2309, 96
          %v2443 = vpop.permute.xlu0 %2442
          %vm2452 = vcmask 654848
          %2453 = vst.msk [vmem:[%s195] sm:$0xff] %vm2452, %v2429
          %2454 = vst.msk [vmem:[%s195 + $0x10] sm:$0xff] %vm2452, %v2431
          %2455 = vst.msk [vmem:[%s195 + $0x20] sm:$0xff] %vm2452, %v2433
          %2456 = vst.msk [vmem:[%s195 + $0x30] sm:$0xff] %vm2452, %v2435
          %2457 = vst.msk [vmem:[%s195 + $0x40] sm:$0xff] %vm2452, %v2437
          %2458 = vst.msk [vmem:[%s195 + $0x50] sm:$0xff] %vm2452, %v2439
          %2459 = vst.msk [vmem:[%s195 + $0x60] sm:$0xff] %vm2452, %v2441
          %2460 = vst.msk [vmem:[%s195 + $0x70] sm:$0xff] %vm2452, %v2443
          %2469 = vrot.lane.b32.xlu0 %v2288, 88
          %v2470 = vpop.permute.xlu0 %2469
          %2471 = vrot.lane.b32.xlu0 %v2289, 88
          %v2472 = vpop.permute.xlu0 %2471
          %2473 = vrot.lane.b32.xlu0 %v2291, 88
          %v2474 = vpop.permute.xlu0 %2473
          %2475 = vrot.lane.b32.xlu0 %v2292, 88
          %v2476 = vpop.permute.xlu0 %2475
          %2477 = vrot.lane.b32.xlu0 %v2294, 88
          %v2478 = vpop.permute.xlu0 %2477
          %2479 = vrot.lane.b32.xlu0 %v2295, 88
          %v2480 = vpop.permute.xlu0 %2479
          %2481 = vrot.lane.b32.xlu0 %v2297, 88
          %v2482 = vpop.permute.xlu0 %2481
          %2483 = vrot.lane.b32.xlu0 %v2298, 88
          %v2484 = vpop.permute.xlu0 %2483
          %2485 = vrot.lane.b32.xlu0 %v2300, 88
          %v2486 = vpop.permute.xlu0 %2485
          %2487 = vrot.lane.b32.xlu0 %v2301, 88
          %v2488 = vpop.permute.xlu0 %2487
          %2489 = vrot.lane.b32.xlu0 %v2303, 88
          %v2490 = vpop.permute.xlu0 %2489
          %2491 = vrot.lane.b32.xlu0 %v2304, 88
          %v2492 = vpop.permute.xlu0 %2491
          %2493 = vrot.lane.b32.xlu0 %v2306, 88
          %v2494 = vpop.permute.xlu0 %2493
          %2495 = vrot.lane.b32.xlu0 %v2307, 88
          %v2496 = vpop.permute.xlu0 %2495
          %2497 = vrot.lane.b32.xlu0 %v2309, 88
          %v2498 = vpop.permute.xlu0 %2497
          %2499 = vrot.lane.b32.xlu0 %v2310, 88
          %v2500 = vpop.permute.xlu0 %2499
          %vm2501 = vcmask 719872
          %v2502 = vsel %vm2501, %v2470, %v2472
          %v2503 = vsel %vm2501, %v2474, %v2476
          %v2504 = vsel %vm2501, %v2478, %v2480
          %v2505 = vsel %vm2501, %v2482, %v2484
          %v2506 = vsel %vm2501, %v2486, %v2488
          %v2507 = vsel %vm2501, %v2490, %v2492
          %v2508 = vsel %vm2501, %v2494, %v2496
          %v2509 = vsel %vm2501, %v2498, %v2500
          %vm2518 = vcmask 786048
          %2519 = vst.msk [vmem:[%s195] sm:$0xff] %vm2518, %v2502
          %2520 = vst.msk [vmem:[%s195 + $0x10] sm:$0xff] %vm2518, %v2503
          %2521 = vst.msk [vmem:[%s195 + $0x20] sm:$0xff] %vm2518, %v2504
          %2522 = vst.msk [vmem:[%s195 + $0x30] sm:$0xff] %vm2518, %v2505
          %2523 = vst.msk [vmem:[%s195 + $0x40] sm:$0xff] %vm2518, %v2506
          %2524 = vst.msk [vmem:[%s195 + $0x50] sm:$0xff] %vm2518, %v2507
          %2525 = vst.msk [vmem:[%s195 + $0x60] sm:$0xff] %vm2518, %v2508
          %2526 = vst.msk [vmem:[%s195 + $0x70] sm:$0xff] %vm2518, %v2509
          %2527 = vrot.lane.b32.xlu0 %v2289, 80
          %v2528 = vpop.permute.xlu0 %2527
          %2529 = vrot.lane.b32.xlu0 %v2292, 80
          %v2530 = vpop.permute.xlu0 %2529
          %2531 = vrot.lane.b32.xlu0 %v2295, 80
          %v2532 = vpop.permute.xlu0 %2531
          %2533 = vrot.lane.b32.xlu0 %v2298, 80
          %v2534 = vpop.permute.xlu0 %2533
          %2535 = vrot.lane.b32.xlu0 %v2301, 80
          %v2536 = vpop.permute.xlu0 %2535
          %2537 = vrot.lane.b32.xlu0 %v2304, 80
          %v2538 = vpop.permute.xlu0 %2537
          %2539 = vrot.lane.b32.xlu0 %v2307, 80
          %v2540 = vpop.permute.xlu0 %2539
          %2541 = vrot.lane.b32.xlu0 %v2310, 80
          %v2542 = vpop.permute.xlu0 %2541
          %vm2551 = vcmask 917248
          %2552 = vst.msk [vmem:[%s195] sm:$0xff] %vm2551, %v2528
          %2553 = vst.msk [vmem:[%s195 + $0x10] sm:$0xff] %vm2551, %v2530
          %2554 = vst.msk [vmem:[%s195 + $0x20] sm:$0xff] %vm2551, %v2532
          %2555 = vst.msk [vmem:[%s195 + $0x30] sm:$0xff] %vm2551, %v2534
          %2556 = vst.msk [vmem:[%s195 + $0x40] sm:$0xff] %vm2551, %v2536
          %2557 = vst.msk [vmem:[%s195 + $0x50] sm:$0xff] %vm2551, %v2538
          %2558 = vst.msk [vmem:[%s195 + $0x60] sm:$0xff] %vm2551, %v2540
          %2559 = vst.msk [vmem:[%s195 + $0x70] sm:$0xff] %vm2551, %v2542
          %2560 = vrot.lane.b32.xlu0 %v2289, 72
          %v2561 = vpop.permute.xlu0 %2560
          %2562 = vrot.lane.b32.xlu0 %v2292, 72
          %v2563 = vpop.permute.xlu0 %2562
          %2564 = vrot.lane.b32.xlu0 %v2295, 72
          %v2565 = vpop.permute.xlu0 %2564
          %2566 = vrot.lane.b32.xlu0 %v2298, 72
          %v2567 = vpop.permute.xlu0 %2566
          %2568 = vrot.lane.b32.xlu0 %v2301, 72
          %v2569 = vpop.permute.xlu0 %2568
          %2570 = vrot.lane.b32.xlu0 %v2304, 72
          %v2571 = vpop.permute.xlu0 %2570
          %2572 = vrot.lane.b32.xlu0 %v2307, 72
          %v2573 = vpop.permute.xlu0 %2572
          %2574 = vrot.lane.b32.xlu0 %v2310, 72
          %v2575 = vpop.permute.xlu0 %2574
          %vm2584 = vcmask 1048448
          %2585 = vst.msk [vmem:[%s195] sm:$0xff] %vm2584, %v2561
          %2586 = vst.msk [vmem:[%s195 + $0x10] sm:$0xff] %vm2584, %v2563
          %2587 = vst.msk [vmem:[%s195 + $0x20] sm:$0xff] %vm2584, %v2565
          %2588 = vst.msk [vmem:[%s195 + $0x30] sm:$0xff] %vm2584, %v2567
          %2589 = vst.msk [vmem:[%s195 + $0x40] sm:$0xff] %vm2584, %v2569
          %2590 = vst.msk [vmem:[%s195 + $0x50] sm:$0xff] %vm2584, %v2571
          %2591 = vst.msk [vmem:[%s195 + $0x60] sm:$0xff] %vm2584, %v2573
          %2592 = vst.msk [vmem:[%s195 + $0x70] sm:$0xff] %vm2584, %v2575
          %2593 = vrot.lane.b32.xlu0 %v2289, 64
          %v2594 = vpop.permute.xlu0 %2593
          %2595 = vrot.lane.b32.xlu0 %v2292, 64
          %v2596 = vpop.permute.xlu0 %2595
          %2597 = vrot.lane.b32.xlu0 %v2295, 64
          %v2598 = vpop.permute.xlu0 %2597
          %2599 = vrot.lane.b32.xlu0 %v2298, 64
          %v2600 = vpop.permute.xlu0 %2599
          %2601 = vrot.lane.b32.xlu0 %v2301, 64
          %v2602 = vpop.permute.xlu0 %2601
          %2603 = vrot.lane.b32.xlu0 %v2304, 64
          %v2604 = vpop.permute.xlu0 %2603
          %2605 = vrot.lane.b32.xlu0 %v2307, 64
          %v2606 = vpop.permute.xlu0 %2605
          %2607 = vrot.lane.b32.xlu0 %v2310, 64
          %v2608 = vpop.permute.xlu0 %2607
          %2617 = vst.msk [vmem:[%s195 + $0x8] sm:$0xff] %vm2312, %v2594
          %2618 = vst.msk [vmem:[%s195 + $0x18] sm:$0xff] %vm2312, %v2596
          %2619 = vst.msk [vmem:[%s195 + $0x28] sm:$0xff] %vm2312, %v2598
          %2620 = vst.msk [vmem:[%s195 + $0x38] sm:$0xff] %vm2312, %v2600
          %2621 = vst.msk [vmem:[%s195 + $0x48] sm:$0xff] %vm2312, %v2602
          %2622 = vst.msk [vmem:[%s195 + $0x58] sm:$0xff] %vm2312, %v2604
          %2623 = vst.msk [vmem:[%s195 + $0x68] sm:$0xff] %vm2312, %v2606
          %2624 = vst.msk [vmem:[%s195 + $0x78] sm:$0xff] %vm2312, %v2608
          %2625 = vrot.lane.b32.xlu0 %v2289, 56
          %v2626 = vpop.permute.xlu0 %2625
          %2627 = vrot.lane.b32.xlu0 %v2292, 56
          %v2628 = vpop.permute.xlu0 %2627
          %2629 = vrot.lane.b32.xlu0 %v2295, 56
          %v2630 = vpop.permute.xlu0 %2629
          %2631 = vrot.lane.b32.xlu0 %v2298, 56
          %v2632 = vpop.permute.xlu0 %2631
          %2633 = vrot.lane.b32.xlu0 %v2301, 56
          %v2634 = vpop.permute.xlu0 %2633
          %2635 = vrot.lane.b32.xlu0 %v2304, 56
          %v2636 = vpop.permute.xlu0 %2635
          %2637 = vrot.lane.b32.xlu0 %v2307, 56
          %v2638 = vpop.permute.xlu0 %2637
          %2639 = vrot.lane.b32.xlu0 %v2310, 56
          %v2640 = vpop.permute.xlu0 %2639
          %2649 = vst.msk [vmem:[%s195 + $0x8] sm:$0xff] %vm2353, %v2626
          %2650 = vst.msk [vmem:[%s195 + $0x18] sm:$0xff] %vm2353, %v2628
          %2651 = vst.msk [vmem:[%s195 + $0x28] sm:$0xff] %vm2353, %v2630
          %2652 = vst.msk [vmem:[%s195 + $0x38] sm:$0xff] %vm2353, %v2632
          %2653 = vst.msk [vmem:[%s195 + $0x48] sm:$0xff] %vm2353, %v2634
          %2654 = vst.msk [vmem:[%s195 + $0x58] sm:$0xff] %vm2353, %v2636
          %2655 = vst.msk [vmem:[%s195 + $0x68] sm:$0xff] %vm2353, %v2638
          %2656 = vst.msk [vmem:[%s195 + $0x78] sm:$0xff] %vm2353, %v2640
          %2657 = vrot.lane.b32.xlu0 %v2289, 48
          %v2658 = vpop.permute.xlu0 %2657
          %2659 = vrot.lane.b32.xlu0 %v2292, 48
          %v2660 = vpop.permute.xlu0 %2659
          %2661 = vrot.lane.b32.xlu0 %v2295, 48
          %v2662 = vpop.permute.xlu0 %2661
          %2663 = vrot.lane.b32.xlu0 %v2298, 48
          %v2664 = vpop.permute.xlu0 %2663
          %2665 = vrot.lane.b32.xlu0 %v2301, 48
          %v2666 = vpop.permute.xlu0 %2665
          %2667 = vrot.lane.b32.xlu0 %v2304, 48
          %v2668 = vpop.permute.xlu0 %2667
          %2669 = vrot.lane.b32.xlu0 %v2307, 48
          %v2670 = vpop.permute.xlu0 %2669
          %2671 = vrot.lane.b32.xlu0 %v2310, 48
          %v2672 = vpop.permute.xlu0 %2671
          %2681 = vst.msk [vmem:[%s195 + $0x8] sm:$0xff] %vm2386, %v2658
          %2682 = vst.msk [vmem:[%s195 + $0x18] sm:$0xff] %vm2386, %v2660
          %2683 = vst.msk [vmem:[%s195 + $0x28] sm:$0xff] %vm2386, %v2662
          %2684 = vst.msk [vmem:[%s195 + $0x38] sm:$0xff] %vm2386, %v2664
          %2685 = vst.msk [vmem:[%s195 + $0x48] sm:$0xff] %vm2386, %v2666
          %2686 = vst.msk [vmem:[%s195 + $0x58] sm:$0xff] %vm2386, %v2668
          %2687 = vst.msk [vmem:[%s195 + $0x68] sm:$0xff] %vm2386, %v2670
          %2688 = vst.msk [vmem:[%s195 + $0x78] sm:$0xff] %vm2386, %v2672
          %2697 = vrot.lane.b32.xlu0 %v2290, 40
          %v2698 = vpop.permute.xlu0 %2697
          %2699 = vrot.lane.b32.xlu0 %v2293, 40
          %v2700 = vpop.permute.xlu0 %2699
          %2701 = vrot.lane.b32.xlu0 %v2296, 40
          %v2702 = vpop.permute.xlu0 %2701
          %2703 = vrot.lane.b32.xlu0 %v2299, 40
          %v2704 = vpop.permute.xlu0 %2703
          %2705 = vrot.lane.b32.xlu0 %v2302, 40
          %v2706 = vpop.permute.xlu0 %2705
          %2707 = vrot.lane.b32.xlu0 %v2305, 40
          %v2708 = vpop.permute.xlu0 %2707
          %2709 = vrot.lane.b32.xlu0 %v2308, 40
          %v2710 = vpop.permute.xlu0 %2709
          %2711 = vrot.lane.b32.xlu0 %v2311, 40
          %v2712 = vpop.permute.xlu0 %2711
          %2721 = vst.msk [vmem:[%s195 + $0x8] sm:$0xff] %vm2419, %v2698
          %2722 = vst.msk [vmem:[%s195 + $0x18] sm:$0xff] %vm2419, %v2700
          %2723 = vst.msk [vmem:[%s195 + $0x28] sm:$0xff] %vm2419, %v2702
          %2724 = vst.msk [vmem:[%s195 + $0x38] sm:$0xff] %vm2419, %v2704
          %2725 = vst.msk [vmem:[%s195 + $0x48] sm:$0xff] %vm2419, %v2706
          %2726 = vst.msk [vmem:[%s195 + $0x58] sm:$0xff] %vm2419, %v2708
          %2727 = vst.msk [vmem:[%s195 + $0x68] sm:$0xff] %vm2419, %v2710
          %2728 = vst.msk [vmem:[%s195 + $0x78] sm:$0xff] %vm2419, %v2712
          %2729 = vrot.lane.b32.xlu0 %v2290, 32
          %v2730 = vpop.permute.xlu0 %2729
          %2731 = vrot.lane.b32.xlu0 %v2293, 32
          %v2732 = vpop.permute.xlu0 %2731
          %2733 = vrot.lane.b32.xlu0 %v2296, 32
          %v2734 = vpop.permute.xlu0 %2733
          %2735 = vrot.lane.b32.xlu0 %v2299, 32
          %v2736 = vpop.permute.xlu0 %2735
          %2737 = vrot.lane.b32.xlu0 %v2302, 32
          %v2738 = vpop.permute.xlu0 %2737
          %2739 = vrot.lane.b32.xlu0 %v2305, 32
          %v2740 = vpop.permute.xlu0 %2739
          %2741 = vrot.lane.b32.xlu0 %v2308, 32
          %v2742 = vpop.permute.xlu0 %2741
          %2743 = vrot.lane.b32.xlu0 %v2311, 32
          %v2744 = vpop.permute.xlu0 %2743
          %2753 = vst.msk [vmem:[%s195 + $0x8] sm:$0xff] %vm2452, %v2730
          %2754 = vst.msk [vmem:[%s195 + $0x18] sm:$0xff] %vm2452, %v2732
          %2755 = vst.msk [vmem:[%s195 + $0x28] sm:$0xff] %vm2452, %v2734
          %2756 = vst.msk [vmem:[%s195 + $0x38] sm:$0xff] %vm2452, %v2736
          %2757 = vst.msk [vmem:[%s195 + $0x48] sm:$0xff] %vm2452, %v2738
          %2758 = vst.msk [vmem:[%s195 + $0x58] sm:$0xff] %vm2452, %v2740
          %2759 = vst.msk [vmem:[%s195 + $0x68] sm:$0xff] %vm2452, %v2742
          %2760 = vst.msk [vmem:[%s195 + $0x78] sm:$0xff] %vm2452, %v2744
          %2761 = vrot.lane.b32.xlu0 %v2290, 24
          %v2762 = vpop.permute.xlu0 %2761
          %2763 = vrot.lane.b32.xlu0 %v2293, 24
          %v2764 = vpop.permute.xlu0 %2763
          %2765 = vrot.lane.b32.xlu0 %v2296, 24
          %v2766 = vpop.permute.xlu0 %2765
          %2767 = vrot.lane.b32.xlu0 %v2299, 24
          %v2768 = vpop.permute.xlu0 %2767
          %2769 = vrot.lane.b32.xlu0 %v2302, 24
          %v2770 = vpop.permute.xlu0 %2769
          %2771 = vrot.lane.b32.xlu0 %v2305, 24
          %v2772 = vpop.permute.xlu0 %2771
          %2773 = vrot.lane.b32.xlu0 %v2308, 24
          %v2774 = vpop.permute.xlu0 %2773
          %2775 = vrot.lane.b32.xlu0 %v2311, 24
          %v2776 = vpop.permute.xlu0 %2775
          %2785 = vst.msk [vmem:[%s195 + $0x8] sm:$0xff] %vm2518, %v2762
          %2786 = vst.msk [vmem:[%s195 + $0x18] sm:$0xff] %vm2518, %v2764
          %2787 = vst.msk [vmem:[%s195 + $0x28] sm:$0xff] %vm2518, %v2766
          %2788 = vst.msk [vmem:[%s195 + $0x38] sm:$0xff] %vm2518, %v2768
          %2789 = vst.msk [vmem:[%s195 + $0x48] sm:$0xff] %vm2518, %v2770
          %2790 = vst.msk [vmem:[%s195 + $0x58] sm:$0xff] %vm2518, %v2772
          %2791 = vst.msk [vmem:[%s195 + $0x68] sm:$0xff] %vm2518, %v2774
          %2792 = vst.msk [vmem:[%s195 + $0x78] sm:$0xff] %vm2518, %v2776
          %2793 = vrot.lane.b32.xlu0 %v2290, 16
          %v2794 = vpop.permute.xlu0 %2793
          %2795 = vrot.lane.b32.xlu0 %v2293, 16
          %v2796 = vpop.permute.xlu0 %2795
          %2797 = vrot.lane.b32.xlu0 %v2296, 16
          %v2798 = vpop.permute.xlu0 %2797
          %2799 = vrot.lane.b32.xlu0 %v2299, 16
          %v2800 = vpop.permute.xlu0 %2799
          %2801 = vrot.lane.b32.xlu0 %v2302, 16
          %v2802 = vpop.permute.xlu0 %2801
          %2803 = vrot.lane.b32.xlu0 %v2305, 16
          %v2804 = vpop.permute.xlu0 %2803
          %2805 = vrot.lane.b32.xlu0 %v2308, 16
          %v2806 = vpop.permute.xlu0 %2805
          %2807 = vrot.lane.b32.xlu0 %v2311, 16
          %v2808 = vpop.permute.xlu0 %2807
          %2817 = vst.msk [vmem:[%s195 + $0x8] sm:$0xff] %vm2551, %v2794
          %2818 = vst.msk [vmem:[%s195 + $0x18] sm:$0xff] %vm2551, %v2796
          %2819 = vst.msk [vmem:[%s195 + $0x28] sm:$0xff] %vm2551, %v2798
          %2820 = vst.msk [vmem:[%s195 + $0x38] sm:$0xff] %vm2551, %v2800
          %2821 = vst.msk [vmem:[%s195 + $0x48] sm:$0xff] %vm2551, %v2802
          %2822 = vst.msk [vmem:[%s195 + $0x58] sm:$0xff] %vm2551, %v2804
          %2823 = vst.msk [vmem:[%s195 + $0x68] sm:$0xff] %vm2551, %v2806
          %2824 = vst.msk [vmem:[%s195 + $0x78] sm:$0xff] %vm2551, %v2808
          %2825 = vrot.lane.b32.xlu0 %v2290, 8
          %v2826 = vpop.permute.xlu0 %2825
          %2827 = vrot.lane.b32.xlu0 %v2293, 8
          %v2828 = vpop.permute.xlu0 %2827
          %2829 = vrot.lane.b32.xlu0 %v2296, 8
          %v2830 = vpop.permute.xlu0 %2829
          %2831 = vrot.lane.b32.xlu0 %v2299, 8
          %v2832 = vpop.permute.xlu0 %2831
          %2833 = vrot.lane.b32.xlu0 %v2302, 8
          %v2834 = vpop.permute.xlu0 %2833
          %2835 = vrot.lane.b32.xlu0 %v2305, 8
          %v2836 = vpop.permute.xlu0 %2835
          %2837 = vrot.lane.b32.xlu0 %v2308, 8
          %v2838 = vpop.permute.xlu0 %2837
          %2839 = vrot.lane.b32.xlu0 %v2311, 8
          %v2840 = vpop.permute.xlu0 %2839
          %2849 = vst.msk [vmem:[%s195 + $0x8] sm:$0xff] %vm2584, %v2826
          %2850 = vst.msk [vmem:[%s195 + $0x18] sm:$0xff] %vm2584, %v2828
          %2851 = vst.msk [vmem:[%s195 + $0x28] sm:$0xff] %vm2584, %v2830
          %2852 = vst.msk [vmem:[%s195 + $0x38] sm:$0xff] %vm2584, %v2832
          %2853 = vst.msk [vmem:[%s195 + $0x48] sm:$0xff] %vm2584, %v2834
          %2854 = vst.msk [vmem:[%s195 + $0x58] sm:$0xff] %vm2584, %v2836
          %2855 = vst.msk [vmem:[%s195 + $0x68] sm:$0xff] %vm2584, %v2838
          %2856 = vst.msk [vmem:[%s195 + $0x78] sm:$0xff] %vm2584, %v2840
        $region44: #{pyconv4_apply.1} parent=27 // pred_fallthru
          _
        %p2857 = scmp.lt.s32.totalorder %s20, 1
        %s2858 = scalar_select %p2857, %s20, 1
        %s2859 = smul.addr %s2858, 16
        %s2860 = smul.addr %s2859, 8
        %s2861 = scalar_lea.vmem %s2, %s2860
        // Predicated region
        $region45: #{pyconv4_apply.1} parent=27 // pred_check
          %p2862 = pneg %p98
        $region46: #{pyconv4_apply.1} parent=27 // pred_check_branch
          %2864 = sbr.rel (%p2862) target = $region48
        $region47: #{pyconv4_apply.1} parent=27 // pred_region
          _
        $region48: #{pyconv4_apply.1} parent=27 // pred_fallthru
          _
      $region28: #{pyconv4_apply.1} parent=5 // pred_fallthru
        _
      %p2865 = scmp.le.s32.totalorder 2, %s11
      // Predicated region
      $region49: #{pyconv4_apply.1} parent=5 // pred_check
        %p2866 = pneg %p2865
      $region50: #{pyconv4_apply.1} parent=5 // pred_check_branch
        %2868 = sbr.rel (%p2866) target = $region52
      $region51: #{pyconv4_apply.1} parent=5 // pred_region
        %s2869 = ssub.s32 %s11, 2
        // Predicated region
        $region53: #{pyconv4_apply.1} parent=51 // pred_check
          %p2870 = pneg %p104
        $region54: #{pyconv4_apply.1} parent=51 // pred_check_branch
          %2872 = sbr.rel (%p2870) target = $region56
        $region55: #{pyconv4_apply.1} parent=51 // pred_region
          %p2873 = scmp.lt.s32.totalorder %s22, 1
          %s2874 = scalar_select %p2873, %s22, 1
          %s2875 = smul.addr %s2874, 16
          %s2876 = smul.addr %s2875, 8
          %s2877 = scalar_lea.vmem %s2, %s2876
        $region56: #{pyconv4_apply.1} parent=51 // pred_fallthru
          _
      $region52: #{pyconv4_apply.1} parent=5 // pred_fallthru
        _
    $region6: #{pyconv4_apply.1} parent=1 // loop_footer
      %s15 = sadd.s32 1, %s11
    $region7: #{pyconv4_apply.1} parent=1 // loop_footer_branch
      %10 = sbr.rel target = $region3
    $region8: #{pyconv4_apply.1} parent=1 // loop_exit
      _
    %2878 = vsyncpa [#allocation6], 1
    %s2879 = scalar_lea.sflag [#allocation6], 1
    %2880 = vsyncpa %s2879, 1

</llo_original>
